<compile_context>
chip_gen: v5e
topology: v5e:2x2
jax: 0.10.0
libtpu: 0.0.40
codegen_flags: <defaults>
</compile_context>

<pallas_src>
import functools

import jax
import jax.numpy as jnp
from jax import lax
from jax.experimental import pallas as pl
from jax.experimental.pallas import tpu as pltpu


# -----------------------------------------------------------------------------
# Fused BasicBlock kernel (one image per grid step)
# -----------------------------------------------------------------------------
def _basic_block_kernel(x_ref, mask_ref, w1_ref, b1_ref, w2_ref, b2_ref,
                        wsc_ref, bsc_ref, o_ref, pext1_ref, pext2_ref,
                        *, H, W, Cin, Cout):
    Wp = W + 2                          # padded width
    Mp = (H + 2) * Wp                   # rows of the flattened padded image
    offs = [dy * Wp + dx for dy in range(3) for dx in range(3)]
    bf16 = jnp.bfloat16

    # --- zero-padded conv1 input, flattened row-major ("q-space") ------------
    pext1_ref[...] = jnp.zeros(pext1_ref.shape, pext1_ref.dtype)
    for i in range(H):                  # interior rows; halo / tail stay zero
        pext1_ref[pl.ds((i + 1) * Wp + 1, W), :] = x_ref[0, i]

    # --- conv1 + BN1 + ReLU: one im2col matmul, K = 9*Cin --------------------
    taps1 = [pext1_ref[pl.ds(o, Mp), :] for o in offs]
    patch1 = jnp.concatenate(taps1, axis=-1).astype(bf16)        # (Mp, 9*Cin)
    acc1 = jnp.dot(patch1, w1_ref[...], preferred_element_type=jnp.float32)
    out1 = jnp.maximum(acc1 + b1_ref[...], 0.0)                  # (Mp, Cout) f32

    # --- shortcut: 1x1 conv + BN (identity path passes eye weights) ----------
    sc = jnp.dot(taps1[4].astype(bf16), wsc_ref[...],
                 preferred_element_type=jnp.float32) + bsc_ref[...]

    # --- re-pad out1 into q-space for conv2 (halo zeroed via mask) -----------
    pext2_ref[...] = jnp.zeros(pext2_ref.shape, pext2_ref.dtype)
    pext2_ref[pl.ds(Wp + 1, Mp), :] = out1 * mask_ref[...]

    # --- conv2 + BN2 + residual add + ReLU: one im2col matmul, K = 9*Cout ----
    taps2 = [pext2_ref[pl.ds(o, Mp), :] for o in offs]
    patch2 = jnp.concatenate(taps2, axis=-1).astype(bf16)        # (Mp, 9*Cout)
    acc2 = jnp.dot(patch2, w2_ref[...], preferred_element_type=jnp.float32)
    outq = jnp.maximum(acc2 + b2_ref[...] + sc, 0.0)             # (Mp, Cout)

    # --- drop padded rows/columns and store ----------------------------------
    for i in range(H):
        o_ref[0, i] = outq[i * Wp:i * Wp + W, :].astype(o_ref.dtype)


# -----------------------------------------------------------------------------
# BN folding + parameter construction
# -----------------------------------------------------------------------------
def fold_bn(gamma, beta, mean, var, eps=1e-5):
    scale = gamma / jnp.sqrt(var + eps)
    bias = beta - mean * scale
    return scale, bias


def make_basic_block_params(key, in_planes, planes, stride=1):
    assert stride == 1, "only stride=1 implemented"
    ks = jax.random.split(key, 12)
    f32 = jnp.float32

    def bn_params(k0, k1, k2, k3, c):
        gamma = jax.random.uniform(k0, (c,), f32, 0.5, 1.5)
        beta = 0.1 * jax.random.normal(k1, (c,), f32)
        mean = 0.1 * jax.random.normal(k2, (c,), f32)
        var = jax.random.uniform(k3, (c,), f32, 0.5, 1.5)
        return fold_bn(gamma, beta, mean, var)

    params = {}
    params["w1"] = 0.2 * jax.random.normal(ks[0], (3, 3, in_planes, planes), f32)
    params["s1"], params["b1"] = bn_params(ks[1], ks[2], ks[3], ks[4], planes)
    params["w2"] = 0.2 * jax.random.normal(ks[5], (3, 3, planes, planes), f32)
    params["s2"], params["b2"] = bn_params(ks[6], ks[7], ks[8], ks[9], planes)
    if stride != 1 or in_planes != planes:
        params["wsc"] = 0.2 * jax.random.normal(ks[10], (1, 1, in_planes, planes), f32)
        params["ssc"], params["bsc"] = bn_params(ks[11], ks[2], ks[4], ks[6], planes)
    return params


# -----------------------------------------------------------------------------
# Wrapper: NCHW in/out, fused kernel call
# -----------------------------------------------------------------------------
def basic_block_forward(x_nchw, params):
    x = jnp.transpose(x_nchw, (0, 2, 3, 1))          # NCHW -> NHWC
    N, H, W, Cin = x.shape
    Cout = params["w1"].shape[-1]
    Wp = W + 2
    Mp = (H + 2) * Wp
    ext = Mp + 2 * Wp + 2                            # room for the largest tap offset
    bf16 = jnp.bfloat16

    # Fold BN scale into the conv weights (once, wrapper-side); bf16 weights for MXU.
    w1 = (params["w1"] * params["s1"]).reshape(9 * Cin, Cout).astype(bf16)
    b1 = params["b1"].reshape(1, Cout).astype(jnp.float32)
    w2 = (params["w2"] * params["s2"]).reshape(9 * Cout, Cout).astype(bf16)
    b2 = params["b2"].reshape(1, Cout).astype(jnp.float32)
    if "wsc" in params:                              # 1x1 projection shortcut
        wsc = (params["wsc"].reshape(Cin, Cout) * params["ssc"]).astype(bf16)
        bsc = params["bsc"].reshape(1, Cout).astype(jnp.float32)
    else:                                            # identity shortcut (Cin == Cout)
        # TODO(synk): identity residual goes through a bf16 round-trip so one
        # kernel body covers both shortcut variants.
        wsc = jnp.eye(Cin, dtype=bf16)
        bsc = jnp.zeros((1, Cout), jnp.float32)

    # 0/1 mask over q-space marking rows that correspond to valid output pixels.
    q = jnp.arange(Mp)
    mask = (((q % Wp) < W) & ((q // Wp) < H)).astype(jnp.float32).reshape(Mp, 1)

    kern = functools.partial(_basic_block_kernel, H=H, W=W, Cin=Cin, Cout=Cout)
    out = pl.pallas_call(
        kern,
        out_shape=jax.ShapeDtypeStruct((N, H, W, Cout), jnp.float32),
        grid=(N,),
        in_specs=[
            pl.BlockSpec((1, H, W, Cin), lambda n: (n, 0, 0, 0)),
            pl.BlockSpec((Mp, 1), lambda n: (0, 0)),
            pl.BlockSpec((9 * Cin, Cout), lambda n: (0, 0)),
            pl.BlockSpec((1, Cout), lambda n: (0, 0)),
            pl.BlockSpec((9 * Cout, Cout), lambda n: (0, 0)),
            pl.BlockSpec((1, Cout), lambda n: (0, 0)),
            pl.BlockSpec((Cin, Cout), lambda n: (0, 0)),
            pl.BlockSpec((1, Cout), lambda n: (0, 0)),
        ],
        out_specs=pl.BlockSpec((1, H, W, Cout), lambda n: (n, 0, 0, 0)),
        scratch_shapes=[
            pltpu.VMEM((ext, Cin), jnp.float32),     # padded conv1 input (q-space)
            pltpu.VMEM((ext, Cout), jnp.float32),    # padded conv2 input (q-space)
        ],
        compiler_params=pltpu.CompilerParams(
            dimension_semantics=("parallel",),
            # Explicit budget: fits comfortably on v5e (16 MiB default scoped) and
            # v7x (64 MiB physical per TensorCore).
            vmem_limit_bytes=32 * 1024 * 1024),
    )(x, mask, w1, b1, w2, b2, wsc, bsc)

    return jnp.transpose(out, (0, 3, 1, 2))          # NHWC -> NCHW


# -----------------------------------------------------------------------------
# Pure-JAX (f32) reference for correctness checking
# -----------------------------------------------------------------------------
def basic_block_reference(x_nchw, params):
    x = jnp.transpose(x_nchw, (0, 2, 3, 1))
    dn = ("NHWC", "HWIO", "NHWC")

    def conv(inp, w, pad):
        return lax.conv_general_dilated(inp, w, (1, 1), pad, dimension_numbers=dn)

    o = jnp.maximum(conv(x, params["w1"], "SAME") * params["s1"] + params["b1"], 0.0)
    o2 = conv(o, params["w2"], "SAME") * params["s2"] + params["b2"]
    if "wsc" in params:
        sc = conv(x, params["wsc"], "VALID") * params["ssc"] + params["bsc"]
    else:
        sc = x
    return jnp.transpose(jnp.maximum(o2 + sc, 0.0), (0, 3, 1, 2))


# -----------------------------------------------------------------------------
if __name__ == "__main__":
    key = jax.random.PRNGKey(0)
    k_x, k_p = jax.random.split(key)

    # channel-changing block -> exercises the 1x1 projection shortcut
    N, in_planes, planes, H, W = 2, 4, 8, 16, 16
    x = jax.random.normal(k_x, (N, in_planes, H, W), jnp.float32)  # NCHW (PyTorch)

    params = make_basic_block_params(k_p, in_planes, planes, stride=1)

    out = jax.block_until_ready(basic_block_forward(x, params))
    ref = basic_block_reference(x, params)

    assert out.shape == (N, planes, H, W)
    max_err = float(jnp.max(jnp.abs(out - ref)))
    # bf16 MXU inputs (f32 accumulation) vs. f32 reference -> loosened tolerance.
    assert jnp.allclose(out, ref, atol=1e-1, rtol=5e-2), max_err

    print("KERNEL_OK")
</pallas_src>

<mosaic_0001>
module attributes {stable_mosaic.version = 11 : i64} {
  func.func @_basic_block_kernel(%arg0: i32, %arg1: memref<1x16x16x4xf32, #tpu.memory_space<vmem>>, %arg2: memref<324x1xf32, #tpu.memory_space<vmem>>, %arg3: memref<36x8xbf16, #tpu.memory_space<vmem>>, %arg4: memref<1x8xf32, #tpu.memory_space<vmem>>, %arg5: memref<72x8xbf16, #tpu.memory_space<vmem>>, %arg6: memref<1x8xf32, #tpu.memory_space<vmem>>, %arg7: memref<4x8xbf16, #tpu.memory_space<vmem>>, %arg8: memref<1x8xf32, #tpu.memory_space<vmem>>, %arg9: memref<1x16x16x8xf32, #tpu.memory_space<vmem>>, %arg10: memref<362x4xf32, #tpu.memory_space<vmem>>, %arg11: memref<362x8xf32, #tpu.memory_space<vmem>>) attributes {dimension_semantics = [#tpu.dimension_semantics<parallel>], iteration_bounds = array<i64: 2>, scalar_prefetch = 0 : i64, scratch_operands = 2 : i64, tpu.core_type = #tpu.core_type<tc>, window_params = [{transform_indices = @transform_0, window_bounds = array<i64: 1, 16, 16, 4>}, {pipeline_mode = #tpu.pipeline_mode<synchronous>, transform_indices = @transform_1, window_bounds = array<i64: 324, 1>}, {pipeline_mode = #tpu.pipeline_mode<synchronous>, transform_indices = @transform_2, window_bounds = array<i64: 36, 8>}, {pipeline_mode = #tpu.pipeline_mode<synchronous>, transform_indices = @transform_3, window_bounds = array<i64: 1, 8>}, {pipeline_mode = #tpu.pipeline_mode<synchronous>, transform_indices = @transform_4, window_bounds = array<i64: 72, 8>}, {pipeline_mode = #tpu.pipeline_mode<synchronous>, transform_indices = @transform_5, window_bounds = array<i64: 1, 8>}, {pipeline_mode = #tpu.pipeline_mode<synchronous>, transform_indices = @transform_6, window_bounds = array<i64: 4, 8>}, {pipeline_mode = #tpu.pipeline_mode<synchronous>, transform_indices = @transform_7, window_bounds = array<i64: 1, 8>}, {transform_indices = @transform_8, window_bounds = array<i64: 1, 16, 16, 8>}]} {
    %cst = arith.constant 0.000000e+00 : f32
    %0 = vector.broadcast %cst : f32 to vector<362x4xf32>
    %c0 = arith.constant 0 : index
    %c0_0 = arith.constant 0 : index
    %1 = vector.load %arg10[%c0, %c0_0] : memref<362x4xf32, #tpu.memory_space<vmem>>, vector<362x4xf32>
    tpu.vector_store %arg10[%c0, %c0_0], %0 {strides = array<i32>} : memref<362x4xf32, #tpu.memory_space<vmem>>, vector<362x4xf32>,
    %c0_1 = arith.constant 0 : index
    %c0_2 = arith.constant 0 : index
    %c0_3 = arith.constant 0 : index
    %c0_4 = arith.constant 0 : index
    %2 = vector.load %arg1[%c0_1, %c0_2, %c0_3, %c0_4] : memref<1x16x16x4xf32, #tpu.memory_space<vmem>>, vector<1x1x16x4xf32>
    %3 = vector.shape_cast %2 : vector<1x1x16x4xf32> to vector<16x4xf32>
    %c19 = arith.constant 19 : index
    %c0_5 = arith.constant 0 : index
    %4 = vector.load %arg10[%c19, %c0_5] : memref<362x4xf32, #tpu.memory_space<vmem>>, vector<16x4xf32>
    tpu.vector_store %arg10[%c19, %c0_5], %3 {strides = array<i32>} : memref<362x4xf32, #tpu.memory_space<vmem>>, vector<16x4xf32>,
    %c0_6 = arith.constant 0 : index
    %c1 = arith.constant 1 : index
    %c0_7 = arith.constant 0 : index
    %c0_8 = arith.constant 0 : index
    %5 = vector.load %arg1[%c0_6, %c1, %c0_7, %c0_8] : memref<1x16x16x4xf32, #tpu.memory_space<vmem>>, vector<1x1x16x4xf32>
    %6 = vector.shape_cast %5 : vector<1x1x16x4xf32> to vector<16x4xf32>
    %c37 = arith.constant 37 : index
    %c0_9 = arith.constant 0 : index
    %7 = vector.load %arg10[%c37, %c0_9] : memref<362x4xf32, #tpu.memory_space<vmem>>, vector<16x4xf32>
    tpu.vector_store %arg10[%c37, %c0_9], %6 {strides = array<i32>} : memref<362x4xf32, #tpu.memory_space<vmem>>, vector<16x4xf32>,
    %c0_10 = arith.constant 0 : index
    %c2 = arith.constant 2 : index
    %c0_11 = arith.constant 0 : index
    %c0_12 = arith.constant 0 : index
    %8 = vector.load %arg1[%c0_10, %c2, %c0_11, %c0_12] : memref<1x16x16x4xf32, #tpu.memory_space<vmem>>, vector<1x1x16x4xf32>
    %9 = vector.shape_cast %8 : vector<1x1x16x4xf32> to vector<16x4xf32>
    %c55 = arith.constant 55 : index
    %c0_13 = arith.constant 0 : index
    %10 = vector.load %arg10[%c55, %c0_13] : memref<362x4xf32, #tpu.memory_space<vmem>>, vector<16x4xf32>
    tpu.vector_store %arg10[%c55, %c0_13], %9 {strides = array<i32>} : memref<362x4xf32, #tpu.memory_space<vmem>>, vector<16x4xf32>,
    %c0_14 = arith.constant 0 : index
    %c3 = arith.constant 3 : index
    %c0_15 = arith.constant 0 : index
    %c0_16 = arith.constant 0 : index
    %11 = vector.load %arg1[%c0_14, %c3, %c0_15, %c0_16] : memref<1x16x16x4xf32, #tpu.memory_space<vmem>>, vector<1x1x16x4xf32>
    %12 = vector.shape_cast %11 : vector<1x1x16x4xf32> to vector<16x4xf32>
    %c73 = arith.constant 73 : index
    %c0_17 = arith.constant 0 : index
    %13 = vector.load %arg10[%c73, %c0_17] : memref<362x4xf32, #tpu.memory_space<vmem>>, vector<16x4xf32>
    tpu.vector_store %arg10[%c73, %c0_17], %12 {strides = array<i32>} : memref<362x4xf32, #tpu.memory_space<vmem>>, vector<16x4xf32>,
    %c0_18 = arith.constant 0 : index
    %c4 = arith.constant 4 : index
    %c0_19 = arith.constant 0 : index
    %c0_20 = arith.constant 0 : index
    %14 = vector.load %arg1[%c0_18, %c4, %c0_19, %c0_20] : memref<1x16x16x4xf32, #tpu.memory_space<vmem>>, vector<1x1x16x4xf32>
    %15 = vector.shape_cast %14 : vector<1x1x16x4xf32> to vector<16x4xf32>
    %c91 = arith.constant 91 : index
    %c0_21 = arith.constant 0 : index
    %16 = vector.load %arg10[%c91, %c0_21] : memref<362x4xf32, #tpu.memory_space<vmem>>, vector<16x4xf32>
    tpu.vector_store %arg10[%c91, %c0_21], %15 {strides = array<i32>} : memref<362x4xf32, #tpu.memory_space<vmem>>, vector<16x4xf32>,
    %c0_22 = arith.constant 0 : index
    %c5 = arith.constant 5 : index
    %c0_23 = arith.constant 0 : index
    %c0_24 = arith.constant 0 : index
    %17 = vector.load %arg1[%c0_22, %c5, %c0_23, %c0_24] : memref<1x16x16x4xf32, #tpu.memory_space<vmem>>, vector<1x1x16x4xf32>
    %18 = vector.shape_cast %17 : vector<1x1x16x4xf32> to vector<16x4xf32>
    %c109 = arith.constant 109 : index
    %c0_25 = arith.constant 0 : index
    %19 = vector.load %arg10[%c109, %c0_25] : memref<362x4xf32, #tpu.memory_space<vmem>>, vector<16x4xf32>
    tpu.vector_store %arg10[%c109, %c0_25], %18 {strides = array<i32>} : memref<362x4xf32, #tpu.memory_space<vmem>>, vector<16x4xf32>,
    %c0_26 = arith.constant 0 : index
    %c6 = arith.constant 6 : index
    %c0_27 = arith.constant 0 : index
    %c0_28 = arith.constant 0 : index
    %20 = vector.load %arg1[%c0_26, %c6, %c0_27, %c0_28] : memref<1x16x16x4xf32, #tpu.memory_space<vmem>>, vector<1x1x16x4xf32>
    %21 = vector.shape_cast %20 : vector<1x1x16x4xf32> to vector<16x4xf32>
    %c127 = arith.constant 127 : index
    %c0_29 = arith.constant 0 : index
    %22 = vector.load %arg10[%c127, %c0_29] : memref<362x4xf32, #tpu.memory_space<vmem>>, vector<16x4xf32>
    tpu.vector_store %arg10[%c127, %c0_29], %21 {strides = array<i32>} : memref<362x4xf32, #tpu.memory_space<vmem>>, vector<16x4xf32>,
    %c0_30 = arith.constant 0 : index
    %c7 = arith.constant 7 : index
    %c0_31 = arith.constant 0 : index
    %c0_32 = arith.constant 0 : index
    %23 = vector.load %arg1[%c0_30, %c7, %c0_31, %c0_32] : memref<1x16x16x4xf32, #tpu.memory_space<vmem>>, vector<1x1x16x4xf32>
    %24 = vector.shape_cast %23 : vector<1x1x16x4xf32> to vector<16x4xf32>
    %c145 = arith.constant 145 : index
    %c0_33 = arith.constant 0 : index
    %25 = vector.load %arg10[%c145, %c0_33] : memref<362x4xf32, #tpu.memory_space<vmem>>, vector<16x4xf32>
    tpu.vector_store %arg10[%c145, %c0_33], %24 {strides = array<i32>} : memref<362x4xf32, #tpu.memory_space<vmem>>, vector<16x4xf32>,
    %c0_34 = arith.constant 0 : index
    %c8 = arith.constant 8 : index
    %c0_35 = arith.constant 0 : index
    %c0_36 = arith.constant 0 : index
    %26 = vector.load %arg1[%c0_34, %c8, %c0_35, %c0_36] : memref<1x16x16x4xf32, #tpu.memory_space<vmem>>, vector<1x1x16x4xf32>
    %27 = vector.shape_cast %26 : vector<1x1x16x4xf32> to vector<16x4xf32>
    %c163 = arith.constant 163 : index
    %c0_37 = arith.constant 0 : index
    %28 = vector.load %arg10[%c163, %c0_37] : memref<362x4xf32, #tpu.memory_space<vmem>>, vector<16x4xf32>
    tpu.vector_store %arg10[%c163, %c0_37], %27 {strides = array<i32>} : memref<362x4xf32, #tpu.memory_space<vmem>>, vector<16x4xf32>,
    %c0_38 = arith.constant 0 : index
    %c9 = arith.constant 9 : index
    %c0_39 = arith.constant 0 : index
    %c0_40 = arith.constant 0 : index
    %29 = vector.load %arg1[%c0_38, %c9, %c0_39, %c0_40] : memref<1x16x16x4xf32, #tpu.memory_space<vmem>>, vector<1x1x16x4xf32>
    %30 = vector.shape_cast %29 : vector<1x1x16x4xf32> to vector<16x4xf32>
    %c181 = arith.constant 181 : index
    %c0_41 = arith.constant 0 : index
    %31 = vector.load %arg10[%c181, %c0_41] : memref<362x4xf32, #tpu.memory_space<vmem>>, vector<16x4xf32>
    tpu.vector_store %arg10[%c181, %c0_41], %30 {strides = array<i32>} : memref<362x4xf32, #tpu.memory_space<vmem>>, vector<16x4xf32>,
    %c0_42 = arith.constant 0 : index
    %c10 = arith.constant 10 : index
    %c0_43 = arith.constant 0 : index
    %c0_44 = arith.constant 0 : index
    %32 = vector.load %arg1[%c0_42, %c10, %c0_43, %c0_44] : memref<1x16x16x4xf32, #tpu.memory_space<vmem>>, vector<1x1x16x4xf32>
    %33 = vector.shape_cast %32 : vector<1x1x16x4xf32> to vector<16x4xf32>
    %c199 = arith.constant 199 : index
    %c0_45 = arith.constant 0 : index
    %34 = vector.load %arg10[%c199, %c0_45] : memref<362x4xf32, #tpu.memory_space<vmem>>, vector<16x4xf32>
    tpu.vector_store %arg10[%c199, %c0_45], %33 {strides = array<i32>} : memref<362x4xf32, #tpu.memory_space<vmem>>, vector<16x4xf32>,
    %c0_46 = arith.constant 0 : index
    %c11 = arith.constant 11 : index
    %c0_47 = arith.constant 0 : index
    %c0_48 = arith.constant 0 : index
    %35 = vector.load %arg1[%c0_46, %c11, %c0_47, %c0_48] : memref<1x16x16x4xf32, #tpu.memory_space<vmem>>, vector<1x1x16x4xf32>
    %36 = vector.shape_cast %35 : vector<1x1x16x4xf32> to vector<16x4xf32>
    %c217 = arith.constant 217 : index
    %c0_49 = arith.constant 0 : index
    %37 = vector.load %arg10[%c217, %c0_49] : memref<362x4xf32, #tpu.memory_space<vmem>>, vector<16x4xf32>
    tpu.vector_store %arg10[%c217, %c0_49], %36 {strides = array<i32>} : memref<362x4xf32, #tpu.memory_space<vmem>>, vector<16x4xf32>,
    %c0_50 = arith.constant 0 : index
    %c12 = arith.constant 12 : index
    %c0_51 = arith.constant 0 : index
    %c0_52 = arith.constant 0 : index
    %38 = vector.load %arg1[%c0_50, %c12, %c0_51, %c0_52] : memref<1x16x16x4xf32, #tpu.memory_space<vmem>>, vector<1x1x16x4xf32>
    %39 = vector.shape_cast %38 : vector<1x1x16x4xf32> to vector<16x4xf32>
    %c235 = arith.constant 235 : index
    %c0_53 = arith.constant 0 : index
    %40 = vector.load %arg10[%c235, %c0_53] : memref<362x4xf32, #tpu.memory_space<vmem>>, vector<16x4xf32>
    tpu.vector_store %arg10[%c235, %c0_53], %39 {strides = array<i32>} : memref<362x4xf32, #tpu.memory_space<vmem>>, vector<16x4xf32>,
    %c0_54 = arith.constant 0 : index
    %c13 = arith.constant 13 : index
    %c0_55 = arith.constant 0 : index
    %c0_56 = arith.constant 0 : index
    %41 = vector.load %arg1[%c0_54, %c13, %c0_55, %c0_56] : memref<1x16x16x4xf32, #tpu.memory_space<vmem>>, vector<1x1x16x4xf32>
    %42 = vector.shape_cast %41 : vector<1x1x16x4xf32> to vector<16x4xf32>
    %c253 = arith.constant 253 : index
    %c0_57 = arith.constant 0 : index
    %43 = vector.load %arg10[%c253, %c0_57] : memref<362x4xf32, #tpu.memory_space<vmem>>, vector<16x4xf32>
    tpu.vector_store %arg10[%c253, %c0_57], %42 {strides = array<i32>} : memref<362x4xf32, #tpu.memory_space<vmem>>, vector<16x4xf32>,
    %c0_58 = arith.constant 0 : index
    %c14 = arith.constant 14 : index
    %c0_59 = arith.constant 0 : index
    %c0_60 = arith.constant 0 : index
    %44 = vector.load %arg1[%c0_58, %c14, %c0_59, %c0_60] : memref<1x16x16x4xf32, #tpu.memory_space<vmem>>, vector<1x1x16x4xf32>
    %45 = vector.shape_cast %44 : vector<1x1x16x4xf32> to vector<16x4xf32>
    %c271 = arith.constant 271 : index
    %c0_61 = arith.constant 0 : index
    %46 = vector.load %arg10[%c271, %c0_61] : memref<362x4xf32, #tpu.memory_space<vmem>>, vector<16x4xf32>
    tpu.vector_store %arg10[%c271, %c0_61], %45 {strides = array<i32>} : memref<362x4xf32, #tpu.memory_space<vmem>>, vector<16x4xf32>,
    %c0_62 = arith.constant 0 : index
    %c15 = arith.constant 15 : index
    %c0_63 = arith.constant 0 : index
    %c0_64 = arith.constant 0 : index
    %47 = vector.load %arg1[%c0_62, %c15, %c0_63, %c0_64] : memref<1x16x16x4xf32, #tpu.memory_space<vmem>>, vector<1x1x16x4xf32>
    %48 = vector.shape_cast %47 : vector<1x1x16x4xf32> to vector<16x4xf32>
    %c289 = arith.constant 289 : index
    %c0_65 = arith.constant 0 : index
    %49 = vector.load %arg10[%c289, %c0_65] : memref<362x4xf32, #tpu.memory_space<vmem>>, vector<16x4xf32>
    tpu.vector_store %arg10[%c289, %c0_65], %48 {strides = array<i32>} : memref<362x4xf32, #tpu.memory_space<vmem>>, vector<16x4xf32>,
    %c0_66 = arith.constant 0 : index
    %c0_67 = arith.constant 0 : index
    %50 = vector.load %arg10[%c0_66, %c0_67] : memref<362x4xf32, #tpu.memory_space<vmem>>, vector<324x4xf32>
    %c1_68 = arith.constant 1 : index
    %c0_69 = arith.constant 0 : index
    %51 = vector.load %arg10[%c1_68, %c0_69] : memref<362x4xf32, #tpu.memory_space<vmem>>, vector<324x4xf32>
    %c2_70 = arith.constant 2 : index
    %c0_71 = arith.constant 0 : index
    %52 = vector.load %arg10[%c2_70, %c0_71] : memref<362x4xf32, #tpu.memory_space<vmem>>, vector<324x4xf32>
    %c18 = arith.constant 18 : index
    %c0_72 = arith.constant 0 : index
    %53 = vector.load %arg10[%c18, %c0_72] : memref<362x4xf32, #tpu.memory_space<vmem>>, vector<324x4xf32>
    %c19_73 = arith.constant 19 : index
    %c0_74 = arith.constant 0 : index
    %54 = vector.load %arg10[%c19_73, %c0_74] : memref<362x4xf32, #tpu.memory_space<vmem>>, vector<324x4xf32>
    %c20 = arith.constant 20 : index
    %c0_75 = arith.constant 0 : index
    %55 = vector.load %arg10[%c20, %c0_75] : memref<362x4xf32, #tpu.memory_space<vmem>>, vector<324x4xf32>
    %c36 = arith.constant 36 : index
    %c0_76 = arith.constant 0 : index
    %56 = vector.load %arg10[%c36, %c0_76] : memref<362x4xf32, #tpu.memory_space<vmem>>, vector<324x4xf32>
    %c37_77 = arith.constant 37 : index
    %c0_78 = arith.constant 0 : index
    %57 = vector.load %arg10[%c37_77, %c0_78] : memref<362x4xf32, #tpu.memory_space<vmem>>, vector<324x4xf32>
    %c38 = arith.constant 38 : index
    %c0_79 = arith.constant 0 : index
    %58 = vector.load %arg10[%c38, %c0_79] : memref<362x4xf32, #tpu.memory_space<vmem>>, vector<324x4xf32>
    %59 = tpu.concatenate %50, %51, %52, %53, %54, %55, %56, %57, %58 in 1 : vector<324x4xf32>, vector<324x4xf32>, vector<324x4xf32>, vector<324x4xf32>, vector<324x4xf32>, vector<324x4xf32>, vector<324x4xf32>, vector<324x4xf32>, vector<324x4xf32> -> vector<324x36xf32>
    %60 = arith.truncf %59 : vector<324x36xf32> to vector<324x36xbf16>
    %c0_80 = arith.constant 0 : index
    %c0_81 = arith.constant 0 : index
    %61 = vector.load %arg3[%c0_80, %c0_81] : memref<36x8xbf16, #tpu.memory_space<vmem>>, vector<36x8xbf16>
    %cst_82 = arith.constant dense<0.000000e+00> : vector<324x8xf32>
    %62 = tpu.matmul %60, %61, %cst_82 {dimension_numbers = #tpu.dot_dimension_numbers<[1], [0], [0], [1], [0, 0, 1, 1], [], []>} : vector<324x36xbf16>, vector<36x8xbf16>, vector<324x8xf32> -> vector<324x8xf32>
    %c0_83 = arith.constant 0 : index
    %c0_84 = arith.constant 0 : index
    %63 = vector.load %arg4[%c0_83, %c0_84] : memref<1x8xf32, #tpu.memory_space<vmem>>, vector<1x8xf32>
    %64 = vector.broadcast %63 : vector<1x8xf32> to vector<324x8xf32>
    %65 = arith.addf %62, %64 : vector<324x8xf32>
    %cst_85 = arith.constant 0.000000e+00 : f32
    %66 = vector.broadcast %cst_85 : f32 to vector<324x8xf32>
    %67 = arith.maximumf %65, %66 : vector<324x8xf32>
    %68 = arith.truncf %54 : vector<324x4xf32> to vector<324x4xbf16>
    %c0_86 = arith.constant 0 : index
    %c0_87 = arith.constant 0 : index
    %69 = vector.load %arg7[%c0_86, %c0_87] : memref<4x8xbf16, #tpu.memory_space<vmem>>, vector<4x8xbf16>
    %cst_88 = arith.constant dense<0.000000e+00> : vector<324x8xf32>
    %70 = tpu.matmul %68, %69, %cst_88 {dimension_numbers = #tpu.dot_dimension_numbers<[1], [0], [0], [1], [0, 0, 1, 1], [], []>} : vector<324x4xbf16>, vector<4x8xbf16>, vector<324x8xf32> -> vector<324x8xf32>
    %c0_89 = arith.constant 0 : index
    %c0_90 = arith.constant 0 : index
    %71 = vector.load %arg8[%c0_89, %c0_90] : memref<1x8xf32, #tpu.memory_space<vmem>>, vector<1x8xf32>
    %72 = vector.broadcast %71 : vector<1x8xf32> to vector<324x8xf32>
    %73 = arith.addf %70, %72 : vector<324x8xf32>
    %cst_91 = arith.constant 0.000000e+00 : f32
    %74 = vector.broadcast %cst_91 : f32 to vector<362x8xf32>
    %c0_92 = arith.constant 0 : index
    %c0_93 = arith.constant 0 : index
    %75 = vector.load %arg11[%c0_92, %c0_93] : memref<362x8xf32, #tpu.memory_space<vmem>>, vector<362x8xf32>
    tpu.vector_store %arg11[%c0_92, %c0_93], %74 {strides = array<i32>} : memref<362x8xf32, #tpu.memory_space<vmem>>, vector<362x8xf32>,
    %c0_94 = arith.constant 0 : index
    %c0_95 = arith.constant 0 : index
    %76 = vector.load %arg2[%c0_94, %c0_95] : memref<324x1xf32, #tpu.memory_space<vmem>>, vector<324x1xf32>
    %77 = vector.broadcast %76 : vector<324x1xf32> to vector<324x8xf32>
    %78 = arith.mulf %67, %77 : vector<324x8xf32>
    %c19_96 = arith.constant 19 : index
    %c0_97 = arith.constant 0 : index
    %79 = vector.load %arg11[%c19_96, %c0_97] : memref<362x8xf32, #tpu.memory_space<vmem>>, vector<324x8xf32>
    tpu.vector_store %arg11[%c19_96, %c0_97], %78 {strides = array<i32>} : memref<362x8xf32, #tpu.memory_space<vmem>>, vector<324x8xf32>,
    %c0_98 = arith.constant 0 : index
    %c0_99 = arith.constant 0 : index
    %80 = vector.load %arg11[%c0_98, %c0_99] : memref<362x8xf32, #tpu.memory_space<vmem>>, vector<324x8xf32>
    %c1_100 = arith.constant 1 : index
    %c0_101 = arith.constant 0 : index
    %81 = vector.load %arg11[%c1_100, %c0_101] : memref<362x8xf32, #tpu.memory_space<vmem>>, vector<324x8xf32>
    %c2_102 = arith.constant 2 : index
    %c0_103 = arith.constant 0 : index
    %82 = vector.load %arg11[%c2_102, %c0_103] : memref<362x8xf32, #tpu.memory_space<vmem>>, vector<324x8xf32>
    %c18_104 = arith.constant 18 : index
    %c0_105 = arith.constant 0 : index
    %83 = vector.load %arg11[%c18_104, %c0_105] : memref<362x8xf32, #tpu.memory_space<vmem>>, vector<324x8xf32>
    %c19_106 = arith.constant 19 : index
    %c0_107 = arith.constant 0 : index
    %84 = vector.load %arg11[%c19_106, %c0_107] : memref<362x8xf32, #tpu.memory_space<vmem>>, vector<324x8xf32>
    %c20_108 = arith.constant 20 : index
    %c0_109 = arith.constant 0 : index
    %85 = vector.load %arg11[%c20_108, %c0_109] : memref<362x8xf32, #tpu.memory_space<vmem>>, vector<324x8xf32>
    %c36_110 = arith.constant 36 : index
    %c0_111 = arith.constant 0 : index
    %86 = vector.load %arg11[%c36_110, %c0_111] : memref<362x8xf32, #tpu.memory_space<vmem>>, vector<324x8xf32>
    %c37_112 = arith.constant 37 : index
    %c0_113 = arith.constant 0 : index
    %87 = vector.load %arg11[%c37_112, %c0_113] : memref<362x8xf32, #tpu.memory_space<vmem>>, vector<324x8xf32>
    %c38_114 = arith.constant 38 : index
    %c0_115 = arith.constant 0 : index
    %88 = vector.load %arg11[%c38_114, %c0_115] : memref<362x8xf32, #tpu.memory_space<vmem>>, vector<324x8xf32>
    %89 = tpu.concatenate %80, %81, %82, %83, %84, %85, %86, %87, %88 in 1 : vector<324x8xf32>, vector<324x8xf32>, vector<324x8xf32>, vector<324x8xf32>, vector<324x8xf32>, vector<324x8xf32>, vector<324x8xf32>, vector<324x8xf32>, vector<324x8xf32> -> vector<324x72xf32>
    %90 = arith.truncf %89 : vector<324x72xf32> to vector<324x72xbf16>
    %c0_116 = arith.constant 0 : index
    %c0_117 = arith.constant 0 : index
    %91 = vector.load %arg5[%c0_116, %c0_117] : memref<72x8xbf16, #tpu.memory_space<vmem>>, vector<72x8xbf16>
    %cst_118 = arith.constant dense<0.000000e+00> : vector<324x8xf32>
    %92 = tpu.matmul %90, %91, %cst_118 {dimension_numbers = #tpu.dot_dimension_numbers<[1], [0], [0], [1], [0, 0, 1, 1], [], []>} : vector<324x72xbf16>, vector<72x8xbf16>, vector<324x8xf32> -> vector<324x8xf32>
    %c0_119 = arith.constant 0 : index
    %c0_120 = arith.constant 0 : index
    %93 = vector.load %arg6[%c0_119, %c0_120] : memref<1x8xf32, #tpu.memory_space<vmem>>, vector<1x8xf32>
    %94 = vector.broadcast %93 : vector<1x8xf32> to vector<324x8xf32>
    %95 = arith.addf %92, %94 : vector<324x8xf32>
    %96 = arith.addf %95, %73 : vector<324x8xf32>
    %cst_121 = arith.constant 0.000000e+00 : f32
    %97 = vector.broadcast %cst_121 : f32 to vector<324x8xf32>
    %98 = arith.maximumf %96, %97 : vector<324x8xf32>
    %99 = vector.extract_strided_slice %98 {offsets = [0, 0], sizes = [16, 8], strides = [1, 1]} : vector<324x8xf32> to vector<16x8xf32>
    %c0_122 = arith.constant 0 : index
    %c0_123 = arith.constant 0 : index
    %c0_124 = arith.constant 0 : index
    %c0_125 = arith.constant 0 : index
    %100 = vector.load %arg9[%c0_122, %c0_123, %c0_124, %c0_125] : memref<1x16x16x8xf32, #tpu.memory_space<vmem>>, vector<1x1x16x8xf32>
    %101 = vector.shape_cast %100 : vector<1x1x16x8xf32> to vector<16x8xf32>
    %102 = vector.shape_cast %99 : vector<16x8xf32> to vector<1x1x16x8xf32>
    tpu.vector_store %arg9[%c0_122, %c0_123, %c0_124, %c0_125], %102 {strides = array<i32>} : memref<1x16x16x8xf32, #tpu.memory_space<vmem>>, vector<1x1x16x8xf32>,
    %103 = vector.extract_strided_slice %98 {offsets = [18, 0], sizes = [16, 8], strides = [1, 1]} : vector<324x8xf32> to vector<16x8xf32>
    %c0_126 = arith.constant 0 : index
    %c1_127 = arith.constant 1 : index
    %c0_128 = arith.constant 0 : index
    %c0_129 = arith.constant 0 : index
    %104 = vector.load %arg9[%c0_126, %c1_127, %c0_128, %c0_129] : memref<1x16x16x8xf32, #tpu.memory_space<vmem>>, vector<1x1x16x8xf32>
    %105 = vector.shape_cast %104 : vector<1x1x16x8xf32> to vector<16x8xf32>
    %106 = vector.shape_cast %103 : vector<16x8xf32> to vector<1x1x16x8xf32>
    tpu.vector_store %arg9[%c0_126, %c1_127, %c0_128, %c0_129], %106 {strides = array<i32>} : memref<1x16x16x8xf32, #tpu.memory_space<vmem>>, vector<1x1x16x8xf32>,
    %107 = vector.extract_strided_slice %98 {offsets = [36, 0], sizes = [16, 8], strides = [1, 1]} : vector<324x8xf32> to vector<16x8xf32>
    %c0_130 = arith.constant 0 : index
    %c2_131 = arith.constant 2 : index
    %c0_132 = arith.constant 0 : index
    %c0_133 = arith.constant 0 : index
    %108 = vector.load %arg9[%c0_130, %c2_131, %c0_132, %c0_133] : memref<1x16x16x8xf32, #tpu.memory_space<vmem>>, vector<1x1x16x8xf32>
    %109 = vector.shape_cast %108 : vector<1x1x16x8xf32> to vector<16x8xf32>
    %110 = vector.shape_cast %107 : vector<16x8xf32> to vector<1x1x16x8xf32>
    tpu.vector_store %arg9[%c0_130, %c2_131, %c0_132, %c0_133], %110 {strides = array<i32>} : memref<1x16x16x8xf32, #tpu.memory_space<vmem>>, vector<1x1x16x8xf32>,
    %111 = vector.extract_strided_slice %98 {offsets = [54, 0], sizes = [16, 8], strides = [1, 1]} : vector<324x8xf32> to vector<16x8xf32>
    %c0_134 = arith.constant 0 : index
    %c3_135 = arith.constant 3 : index
    %c0_136 = arith.constant 0 : index
    %c0_137 = arith.constant 0 : index
    %112 = vector.load %arg9[%c0_134, %c3_135, %c0_136, %c0_137] : memref<1x16x16x8xf32, #tpu.memory_space<vmem>>, vector<1x1x16x8xf32>
    %113 = vector.shape_cast %112 : vector<1x1x16x8xf32> to vector<16x8xf32>
    %114 = vector.shape_cast %111 : vector<16x8xf32> to vector<1x1x16x8xf32>
    tpu.vector_store %arg9[%c0_134, %c3_135, %c0_136, %c0_137], %114 {strides = array<i32>} : memref<1x16x16x8xf32, #tpu.memory_space<vmem>>, vector<1x1x16x8xf32>,
    %115 = vector.extract_strided_slice %98 {offsets = [72, 0], sizes = [16, 8], strides = [1, 1]} : vector<324x8xf32> to vector<16x8xf32>
    %c0_138 = arith.constant 0 : index
    %c4_139 = arith.constant 4 : index
    %c0_140 = arith.constant 0 : index
    %c0_141 = arith.constant 0 : index
    %116 = vector.load %arg9[%c0_138, %c4_139, %c0_140, %c0_141] : memref<1x16x16x8xf32, #tpu.memory_space<vmem>>, vector<1x1x16x8xf32>
    %117 = vector.shape_cast %116 : vector<1x1x16x8xf32> to vector<16x8xf32>
    %118 = vector.shape_cast %115 : vector<16x8xf32> to vector<1x1x16x8xf32>
    tpu.vector_store %arg9[%c0_138, %c4_139, %c0_140, %c0_141], %118 {strides = array<i32>} : memref<1x16x16x8xf32, #tpu.memory_space<vmem>>, vector<1x1x16x8xf32>,
    %119 = vector.extract_strided_slice %98 {offsets = [90, 0], sizes = [16, 8], strides = [1, 1]} : vector<324x8xf32> to vector<16x8xf32>
    %c0_142 = arith.constant 0 : index
    %c5_143 = arith.constant 5 : index
    %c0_144 = arith.constant 0 : index
    %c0_145 = arith.constant 0 : index
    %120 = vector.load %arg9[%c0_142, %c5_143, %c0_144, %c0_145] : memref<1x16x16x8xf32, #tpu.memory_space<vmem>>, vector<1x1x16x8xf32>
    %121 = vector.shape_cast %120 : vector<1x1x16x8xf32> to vector<16x8xf32>
    %122 = vector.shape_cast %119 : vector<16x8xf32> to vector<1x1x16x8xf32>
    tpu.vector_store %arg9[%c0_142, %c5_143, %c0_144, %c0_145], %122 {strides = array<i32>} : memref<1x16x16x8xf32, #tpu.memory_space<vmem>>, vector<1x1x16x8xf32>,
    %123 = vector.extract_strided_slice %98 {offsets = [108, 0], sizes = [16, 8], strides = [1, 1]} : vector<324x8xf32> to vector<16x8xf32>
    %c0_146 = arith.constant 0 : index
    %c6_147 = arith.constant 6 : index
    %c0_148 = arith.constant 0 : index
    %c0_149 = arith.constant 0 : index
    %124 = vector.load %arg9[%c0_146, %c6_147, %c0_148, %c0_149] : memref<1x16x16x8xf32, #tpu.memory_space<vmem>>, vector<1x1x16x8xf32>
    %125 = vector.shape_cast %124 : vector<1x1x16x8xf32> to vector<16x8xf32>
    %126 = vector.shape_cast %123 : vector<16x8xf32> to vector<1x1x16x8xf32>
    tpu.vector_store %arg9[%c0_146, %c6_147, %c0_148, %c0_149], %126 {strides = array<i32>} : memref<1x16x16x8xf32, #tpu.memory_space<vmem>>, vector<1x1x16x8xf32>,
    %127 = vector.extract_strided_slice %98 {offsets = [126, 0], sizes = [16, 8], strides = [1, 1]} : vector<324x8xf32> to vector<16x8xf32>
    %c0_150 = arith.constant 0 : index
    %c7_151 = arith.constant 7 : index
    %c0_152 = arith.constant 0 : index
    %c0_153 = arith.constant 0 : index
    %128 = vector.load %arg9[%c0_150, %c7_151, %c0_152, %c0_153] : memref<1x16x16x8xf32, #tpu.memory_space<vmem>>, vector<1x1x16x8xf32>
    %129 = vector.shape_cast %128 : vector<1x1x16x8xf32> to vector<16x8xf32>
    %130 = vector.shape_cast %127 : vector<16x8xf32> to vector<1x1x16x8xf32>
    tpu.vector_store %arg9[%c0_150, %c7_151, %c0_152, %c0_153], %130 {strides = array<i32>} : memref<1x16x16x8xf32, #tpu.memory_space<vmem>>, vector<1x1x16x8xf32>,
    %131 = vector.extract_strided_slice %98 {offsets = [144, 0], sizes = [16, 8], strides = [1, 1]} : vector<324x8xf32> to vector<16x8xf32>
    %c0_154 = arith.constant 0 : index
    %c8_155 = arith.constant 8 : index
    %c0_156 = arith.constant 0 : index
    %c0_157 = arith.constant 0 : index
    %132 = vector.load %arg9[%c0_154, %c8_155, %c0_156, %c0_157] : memref<1x16x16x8xf32, #tpu.memory_space<vmem>>, vector<1x1x16x8xf32>
    %133 = vector.shape_cast %132 : vector<1x1x16x8xf32> to vector<16x8xf32>
    %134 = vector.shape_cast %131 : vector<16x8xf32> to vector<1x1x16x8xf32>
    tpu.vector_store %arg9[%c0_154, %c8_155, %c0_156, %c0_157], %134 {strides = array<i32>} : memref<1x16x16x8xf32, #tpu.memory_space<vmem>>, vector<1x1x16x8xf32>,
    %135 = vector.extract_strided_slice %98 {offsets = [162, 0], sizes = [16, 8], strides = [1, 1]} : vector<324x8xf32> to vector<16x8xf32>
    %c0_158 = arith.constant 0 : index
    %c9_159 = arith.constant 9 : index
    %c0_160 = arith.constant 0 : index
    %c0_161 = arith.constant 0 : index
    %136 = vector.load %arg9[%c0_158, %c9_159, %c0_160, %c0_161] : memref<1x16x16x8xf32, #tpu.memory_space<vmem>>, vector<1x1x16x8xf32>
    %137 = vector.shape_cast %136 : vector<1x1x16x8xf32> to vector<16x8xf32>
    %138 = vector.shape_cast %135 : vector<16x8xf32> to vector<1x1x16x8xf32>
    tpu.vector_store %arg9[%c0_158, %c9_159, %c0_160, %c0_161], %138 {strides = array<i32>} : memref<1x16x16x8xf32, #tpu.memory_space<vmem>>, vector<1x1x16x8xf32>,
    %139 = vector.extract_strided_slice %98 {offsets = [180, 0], sizes = [16, 8], strides = [1, 1]} : vector<324x8xf32> to vector<16x8xf32>
    %c0_162 = arith.constant 0 : index
    %c10_163 = arith.constant 10 : index
    %c0_164 = arith.constant 0 : index
    %c0_165 = arith.constant 0 : index
    %140 = vector.load %arg9[%c0_162, %c10_163, %c0_164, %c0_165] : memref<1x16x16x8xf32, #tpu.memory_space<vmem>>, vector<1x1x16x8xf32>
    %141 = vector.shape_cast %140 : vector<1x1x16x8xf32> to vector<16x8xf32>
    %142 = vector.shape_cast %139 : vector<16x8xf32> to vector<1x1x16x8xf32>
    tpu.vector_store %arg9[%c0_162, %c10_163, %c0_164, %c0_165], %142 {strides = array<i32>} : memref<1x16x16x8xf32, #tpu.memory_space<vmem>>, vector<1x1x16x8xf32>,
    %143 = vector.extract_strided_slice %98 {offsets = [198, 0], sizes = [16, 8], strides = [1, 1]} : vector<324x8xf32> to vector<16x8xf32>
    %c0_166 = arith.constant 0 : index
    %c11_167 = arith.constant 11 : index
    %c0_168 = arith.constant 0 : index
    %c0_169 = arith.constant 0 : index
    %144 = vector.load %arg9[%c0_166, %c11_167, %c0_168, %c0_169] : memref<1x16x16x8xf32, #tpu.memory_space<vmem>>, vector<1x1x16x8xf32>
    %145 = vector.shape_cast %144 : vector<1x1x16x8xf32> to vector<16x8xf32>
    %146 = vector.shape_cast %143 : vector<16x8xf32> to vector<1x1x16x8xf32>
    tpu.vector_store %arg9[%c0_166, %c11_167, %c0_168, %c0_169], %146 {strides = array<i32>} : memref<1x16x16x8xf32, #tpu.memory_space<vmem>>, vector<1x1x16x8xf32>,
    %147 = vector.extract_strided_slice %98 {offsets = [216, 0], sizes = [16, 8], strides = [1, 1]} : vector<324x8xf32> to vector<16x8xf32>
    %c0_170 = arith.constant 0 : index
    %c12_171 = arith.constant 12 : index
    %c0_172 = arith.constant 0 : index
    %c0_173 = arith.constant 0 : index
    %148 = vector.load %arg9[%c0_170, %c12_171, %c0_172, %c0_173] : memref<1x16x16x8xf32, #tpu.memory_space<vmem>>, vector<1x1x16x8xf32>
    %149 = vector.shape_cast %148 : vector<1x1x16x8xf32> to vector<16x8xf32>
    %150 = vector.shape_cast %147 : vector<16x8xf32> to vector<1x1x16x8xf32>
    tpu.vector_store %arg9[%c0_170, %c12_171, %c0_172, %c0_173], %150 {strides = array<i32>} : memref<1x16x16x8xf32, #tpu.memory_space<vmem>>, vector<1x1x16x8xf32>,
    %151 = vector.extract_strided_slice %98 {offsets = [234, 0], sizes = [16, 8], strides = [1, 1]} : vector<324x8xf32> to vector<16x8xf32>
    %c0_174 = arith.constant 0 : index
    %c13_175 = arith.constant 13 : index
    %c0_176 = arith.constant 0 : index
    %c0_177 = arith.constant 0 : index
    %152 = vector.load %arg9[%c0_174, %c13_175, %c0_176, %c0_177] : memref<1x16x16x8xf32, #tpu.memory_space<vmem>>, vector<1x1x16x8xf32>
    %153 = vector.shape_cast %152 : vector<1x1x16x8xf32> to vector<16x8xf32>
    %154 = vector.shape_cast %151 : vector<16x8xf32> to vector<1x1x16x8xf32>
    tpu.vector_store %arg9[%c0_174, %c13_175, %c0_176, %c0_177], %154 {strides = array<i32>} : memref<1x16x16x8xf32, #tpu.memory_space<vmem>>, vector<1x1x16x8xf32>,
    %155 = vector.extract_strided_slice %98 {offsets = [252, 0], sizes = [16, 8], strides = [1, 1]} : vector<324x8xf32> to vector<16x8xf32>
    %c0_178 = arith.constant 0 : index
    %c14_179 = arith.constant 14 : index
    %c0_180 = arith.constant 0 : index
    %c0_181 = arith.constant 0 : index
    %156 = vector.load %arg9[%c0_178, %c14_179, %c0_180, %c0_181] : memref<1x16x16x8xf32, #tpu.memory_space<vmem>>, vector<1x1x16x8xf32>
    %157 = vector.shape_cast %156 : vector<1x1x16x8xf32> to vector<16x8xf32>
    %158 = vector.shape_cast %155 : vector<16x8xf32> to vector<1x1x16x8xf32>
    tpu.vector_store %arg9[%c0_178, %c14_179, %c0_180, %c0_181], %158 {strides = array<i32>} : memref<1x16x16x8xf32, #tpu.memory_space<vmem>>, vector<1x1x16x8xf32>,
    %159 = vector.extract_strided_slice %98 {offsets = [270, 0], sizes = [16, 8], strides = [1, 1]} : vector<324x8xf32> to vector<16x8xf32>
    %c0_182 = arith.constant 0 : index
    %c15_183 = arith.constant 15 : index
    %c0_184 = arith.constant 0 : index
    %c0_185 = arith.constant 0 : index
    %160 = vector.load %arg9[%c0_182, %c15_183, %c0_184, %c0_185] : memref<1x16x16x8xf32, #tpu.memory_space<vmem>>, vector<1x1x16x8xf32>
    %161 = vector.shape_cast %160 : vector<1x1x16x8xf32> to vector<16x8xf32>
    %162 = vector.shape_cast %159 : vector<16x8xf32> to vector<1x1x16x8xf32>
    tpu.vector_store %arg9[%c0_182, %c15_183, %c0_184, %c0_185], %162 {strides = array<i32>} : memref<1x16x16x8xf32, #tpu.memory_space<vmem>>, vector<1x1x16x8xf32>,
    return
  }
  func.func @transform_0(%arg0: i32) -> (i32, i32, i32, i32) {
    %c0_i32 = arith.constant 0 : i32
    %c0_i32_0 = arith.constant 0 : i32
    %c0_i32_1 = arith.constant 0 : i32
    %c0_i32_2 = arith.constant 0 : i32
    return %arg0, %c0_i32, %c0_i32_0, %c0_i32_1 : i32, i32, i32, i32
  }
  func.func @transform_1(%arg0: i32) -> (i32, i32) {
    %c0_i32 = arith.constant 0 : i32
    %c0_i32_0 = arith.constant 0 : i32
    %c0_i32_1 = arith.constant 0 : i32
    return %c0_i32, %c0_i32_0 : i32, i32
  }
  func.func @transform_2(%arg0: i32) -> (i32, i32) {
    %c0_i32 = arith.constant 0 : i32
    %c0_i32_0 = arith.constant 0 : i32
    %c0_i32_1 = arith.constant 0 : i32
    return %c0_i32, %c0_i32_0 : i32, i32
  }
  func.func @transform_3(%arg0: i32) -> (i32, i32) {
    %c0_i32 = arith.constant 0 : i32
    %c0_i32_0 = arith.constant 0 : i32
    %c0_i32_1 = arith.constant 0 : i32
    return %c0_i32, %c0_i32_0 : i32, i32
  }
  func.func @transform_4(%arg0: i32) -> (i32, i32) {
    %c0_i32 = arith.constant 0 : i32
    %c0_i32_0 = arith.constant 0 : i32
    %c0_i32_1 = arith.constant 0 : i32
    return %c0_i32, %c0_i32_0 : i32, i32
  }
  func.func @transform_5(%arg0: i32) -> (i32, i32) {
    %c0_i32 = arith.constant 0 : i32
    %c0_i32_0 = arith.constant 0 : i32
    %c0_i32_1 = arith.constant 0 : i32
    return %c0_i32, %c0_i32_0 : i32, i32
  }
  func.func @transform_6(%arg0: i32) -> (i32, i32) {
    %c0_i32 = arith.constant 0 : i32
    %c0_i32_0 = arith.constant 0 : i32
    %c0_i32_1 = arith.constant 0 : i32
    return %c0_i32, %c0_i32_0 : i32, i32
  }
  func.func @transform_7(%arg0: i32) -> (i32, i32) {
    %c0_i32 = arith.constant 0 : i32
    %c0_i32_0 = arith.constant 0 : i32
    %c0_i32_1 = arith.constant 0 : i32
    return %c0_i32, %c0_i32_0 : i32, i32
  }
  func.func @transform_8(%arg0: i32) -> (i32, i32, i32, i32) {
    %c0_i32 = arith.constant 0 : i32
    %c0_i32_0 = arith.constant 0 : i32
    %c0_i32_1 = arith.constant 0 : i32
    %c0_i32_2 = arith.constant 0 : i32
    return %arg0, %c0_i32, %c0_i32_0, %c0_i32_1 : i32, i32, i32, i32
  }
}

</mosaic_0001>

<llo_original>
// kernel: tpu_custom_call.1
$region0: #{tpu_custom_call.1}
  #allocation0 [shape = 'u32[]', space=smem, size = 0x4, offset = 0x4, fixed_abs, tag = 'smem constant byte address 0x4 - core index']
  #allocation1 [shape = 'u32[72,128]{1,0:T(1,128)}', space=vmem, size = 0x9000, scoped, tag = 'internal scratch']
  #allocation2 [shape = 'f32[362,4]{1,0:T(8,128)}', space=vmem, size = 0x2e000, scoped, tag = 'scratch operand']
  #allocation3 [shape = 'f32[362,8]{1,0:T(8,128)}', space=vmem, size = 0x2e000, scoped, tag = 'scratch operand']
  %s0 = inlined_call_operand.vmem [shape: f32[2,16,16,4], index: 0, kind: input, shape index: {}]
  %s1 = inlined_call_operand.vmem [shape: f32[324,1], index: 1, kind: input, shape index: {}]
  %s2 = inlined_call_operand.vmem [shape: bf16[36,8], index: 2, kind: input, shape index: {}]
  %s3 = inlined_call_operand.vmem [shape: f32[1,8], index: 3, kind: input, shape index: {}]
  %s4 = inlined_call_operand.vmem [shape: bf16[72,8], index: 4, kind: input, shape index: {}]
  %s5 = inlined_call_operand.vmem [shape: f32[1,8], index: 5, kind: input, shape index: {}]
  %s6 = inlined_call_operand.vmem [shape: bf16[4,8], index: 6, kind: input, shape index: {}]
  %s7 = inlined_call_operand.vmem [shape: f32[1,8], index: 7, kind: input, shape index: {}]
  %s8 = inlined_call_operand.vmem [shape: f32[2,16,16,8], index: 8, kind: output, shape index: {}]
  %s9 = sld [smem:[#allocation0]]
  $region65: #{tpu_custom_call.1} parent=0
    _
  %s11 = ssub.s32 1, %s9
  %s12 = scalar_select 0, %s11, %s9
  loop: start=0, step=1, limit=4
  $region2: #{tpu_custom_call.1} parent=0 // loop_pre_header
    _
  $region3: #{tpu_custom_call.1} parent=0 // loop_header
    %s14 = sphi 0, %s18
    %p15 = scmp.ge.s32.totalorder %s14, 4
    %s24 = sphi 0, %s26
    %s27 = sphi 0, %s24
    %s28 = sphi 0, %s27
    %s44 = sphi 0, %s28
    %s48 = sphi 0, %s48
    %s50 = sphi 0, %s48
    %s51 = sphi 0, %s50
    %s65 = sphi 0, %s51
    %s69 = sphi 0, %s69
    %s71 = sphi 0, %s69
    %s72 = sphi 0, %s71
    %s86 = sphi 0, %s72
    %s90 = sphi 0, %s90
    %s92 = sphi 0, %s90
    %s93 = sphi 0, %s92
    %s107 = sphi 0, %s93
    %s111 = sphi 0, %s111
    %s113 = sphi 0, %s111
    %s114 = sphi 0, %s113
    %s128 = sphi 0, %s114
    %s132 = sphi 0, %s132
    %s134 = sphi 0, %s132
    %s135 = sphi 0, %s134
    %s149 = sphi 0, %s135
    %s153 = sphi 0, %s153
    %s155 = sphi 0, %s153
    %s156 = sphi 0, %s155
    %s170 = sphi 0, %s156
    %s174 = sphi 0, %s174
    %s176 = sphi 0, %s174
    %s177 = sphi 0, %s176
    %s191 = sphi 0, %s177
    %s197 = sphi 0, %s199
    %s200 = sphi 0, %s197
    %s201 = sphi 0, %s200
    %s217 = sphi 0, %s201
  $region4: #{tpu_custom_call.1} parent=0 // loop_header_branch
    %17 = sbr.rel (%p15) target = $region8
  $region5: #{tpu_custom_call.1} parent=0 // loop_body
    %s19 = ssub.s32 %s14, 1
    %s20 = ssub.s32 %s14, 2
    %s21 = sadd.s32 %s14, 1
    %s22 = ssub.s32 %s14, %s21
    %p23 = scmp.eq.s32.totalorder %s22, 0
    %s25 = sadd.s32 %s24, 1
    %s26 = scalar_select %p23, %s24, %s25
    %p29 = pneg %p23
    %p30 = scmp.eq.s32.totalorder %s14, 1
    %p31 = por %p29, %p30
    %p32 = scmp.ne.s32.totalorder %s24, %s27
    %p33 = scmp.eq.s32.totalorder %s14, 0
    %p34 = por %p32, %p33
    %p35 = scmp.ne.s32.totalorder %s24, %s27
    %p36 = scmp.eq.s32.totalorder %s19, 1
    %p37 = por %p35, %p36
    %p38 = scmp.ne.s32.totalorder %s27, %s28
    %p39 = scmp.eq.s32.totalorder %s19, 0
    %p40 = por %p38, %p39
    %p41 = scmp.ne.s32.totalorder %s27, %s28
    %p42 = scmp.eq.s32.totalorder %s20, 1
    %p43 = por %p41, %p42
    %p45 = scmp.ne.s32.totalorder %s28, %s44
    %p46 = scmp.eq.s32.totalorder %s20, 0
    %p47 = por %p45, %p46
    %s49 = sadd.s32 %s48, 1
    %p52 = scmp.eq.s32.totalorder %s14, 1
    %p53 = scmp.ne.s32.totalorder %s48, %s50
    %p54 = scmp.eq.s32.totalorder %s14, 0
    %p55 = por %p53, %p54
    %p56 = scmp.ne.s32.totalorder %s48, %s50
    %p57 = scmp.eq.s32.totalorder %s19, 1
    %p58 = por %p56, %p57
    %p59 = scmp.ne.s32.totalorder %s50, %s51
    %p60 = scmp.eq.s32.totalorder %s19, 0
    %p61 = por %p59, %p60
    %p62 = scmp.ne.s32.totalorder %s50, %s51
    %p63 = scmp.eq.s32.totalorder %s20, 1
    %p64 = por %p62, %p63
    %p66 = scmp.ne.s32.totalorder %s51, %s65
    %p67 = scmp.eq.s32.totalorder %s20, 0
    %p68 = por %p66, %p67
    %s70 = sadd.s32 %s69, 1
    %p73 = scmp.eq.s32.totalorder %s14, 1
    %p74 = scmp.ne.s32.totalorder %s69, %s71
    %p75 = scmp.eq.s32.totalorder %s14, 0
    %p76 = por %p74, %p75
    %p77 = scmp.ne.s32.totalorder %s69, %s71
    %p78 = scmp.eq.s32.totalorder %s19, 1
    %p79 = por %p77, %p78
    %p80 = scmp.ne.s32.totalorder %s71, %s72
    %p81 = scmp.eq.s32.totalorder %s19, 0
    %p82 = por %p80, %p81
    %p83 = scmp.ne.s32.totalorder %s71, %s72
    %p84 = scmp.eq.s32.totalorder %s20, 1
    %p85 = por %p83, %p84
    %p87 = scmp.ne.s32.totalorder %s72, %s86
    %p88 = scmp.eq.s32.totalorder %s20, 0
    %p89 = por %p87, %p88
    %s91 = sadd.s32 %s90, 1
    %p94 = scmp.eq.s32.totalorder %s14, 1
    %p95 = scmp.ne.s32.totalorder %s90, %s92
    %p96 = scmp.eq.s32.totalorder %s14, 0
    %p97 = por %p95, %p96
    %p98 = scmp.ne.s32.totalorder %s90, %s92
    %p99 = scmp.eq.s32.totalorder %s19, 1
    %p100 = por %p98, %p99
    %p101 = scmp.ne.s32.totalorder %s92, %s93
    %p102 = scmp.eq.s32.totalorder %s19, 0
    %p103 = por %p101, %p102
    %p104 = scmp.ne.s32.totalorder %s92, %s93
    %p105 = scmp.eq.s32.totalorder %s20, 1
    %p106 = por %p104, %p105
    %p108 = scmp.ne.s32.totalorder %s93, %s107
    %p109 = scmp.eq.s32.totalorder %s20, 0
    %p110 = por %p108, %p109
    %s112 = sadd.s32 %s111, 1
    %p115 = scmp.eq.s32.totalorder %s14, 1
    %p116 = scmp.ne.s32.totalorder %s111, %s113
    %p117 = scmp.eq.s32.totalorder %s14, 0
    %p118 = por %p116, %p117
    %p119 = scmp.ne.s32.totalorder %s111, %s113
    %p120 = scmp.eq.s32.totalorder %s19, 1
    %p121 = por %p119, %p120
    %p122 = scmp.ne.s32.totalorder %s113, %s114
    %p123 = scmp.eq.s32.totalorder %s19, 0
    %p124 = por %p122, %p123
    %p125 = scmp.ne.s32.totalorder %s113, %s114
    %p126 = scmp.eq.s32.totalorder %s20, 1
    %p127 = por %p125, %p126
    %p129 = scmp.ne.s32.totalorder %s114, %s128
    %p130 = scmp.eq.s32.totalorder %s20, 0
    %p131 = por %p129, %p130
    %s133 = sadd.s32 %s132, 1
    %p136 = scmp.eq.s32.totalorder %s14, 1
    %p137 = scmp.ne.s32.totalorder %s132, %s134
    %p138 = scmp.eq.s32.totalorder %s14, 0
    %p139 = por %p137, %p138
    %p140 = scmp.ne.s32.totalorder %s132, %s134
    %p141 = scmp.eq.s32.totalorder %s19, 1
    %p142 = por %p140, %p141
    %p143 = scmp.ne.s32.totalorder %s134, %s135
    %p144 = scmp.eq.s32.totalorder %s19, 0
    %p145 = por %p143, %p144
    %p146 = scmp.ne.s32.totalorder %s134, %s135
    %p147 = scmp.eq.s32.totalorder %s20, 1
    %p148 = por %p146, %p147
    %p150 = scmp.ne.s32.totalorder %s135, %s149
    %p151 = scmp.eq.s32.totalorder %s20, 0
    %p152 = por %p150, %p151
    %s154 = sadd.s32 %s153, 1
    %p157 = scmp.eq.s32.totalorder %s14, 1
    %p158 = scmp.ne.s32.totalorder %s153, %s155
    %p159 = scmp.eq.s32.totalorder %s14, 0
    %p160 = por %p158, %p159
    %p161 = scmp.ne.s32.totalorder %s153, %s155
    %p162 = scmp.eq.s32.totalorder %s19, 1
    %p163 = por %p161, %p162
    %p164 = scmp.ne.s32.totalorder %s155, %s156
    %p165 = scmp.eq.s32.totalorder %s19, 0
    %p166 = por %p164, %p165
    %p167 = scmp.ne.s32.totalorder %s155, %s156
    %p168 = scmp.eq.s32.totalorder %s20, 1
    %p169 = por %p167, %p168
    %p171 = scmp.ne.s32.totalorder %s156, %s170
    %p172 = scmp.eq.s32.totalorder %s20, 0
    %p173 = por %p171, %p172
    %s175 = sadd.s32 %s174, 1
    %p178 = scmp.eq.s32.totalorder %s14, 1
    %p179 = scmp.ne.s32.totalorder %s174, %s176
    %p180 = scmp.eq.s32.totalorder %s14, 0
    %p181 = por %p179, %p180
    %p182 = scmp.ne.s32.totalorder %s174, %s176
    %p183 = scmp.eq.s32.totalorder %s19, 1
    %p184 = por %p182, %p183
    %p185 = scmp.ne.s32.totalorder %s176, %s177
    %p186 = scmp.eq.s32.totalorder %s19, 0
    %p187 = por %p185, %p186
    %p188 = scmp.ne.s32.totalorder %s176, %s177
    %p189 = scmp.eq.s32.totalorder %s20, 1
    %p190 = por %p188, %p189
    %p192 = scmp.ne.s32.totalorder %s177, %s191
    %p193 = scmp.eq.s32.totalorder %s20, 0
    %p194 = por %p192, %p193
    %s195 = ssub.s32 %s14, %s21
    %p196 = scmp.eq.s32.totalorder %s195, 0
    %s198 = sadd.s32 %s197, 1
    %s199 = scalar_select %p196, %s197, %s198
    %p202 = pneg %p196
    %p203 = scmp.eq.s32.totalorder %s14, 1
    %p204 = por %p202, %p203
    %p205 = scmp.ne.s32.totalorder %s197, %s200
    %p206 = scmp.eq.s32.totalorder %s14, 0
    %p207 = por %p205, %p206
    %p208 = scmp.ne.s32.totalorder %s197, %s200
    %p209 = scmp.eq.s32.totalorder %s19, 1
    %p210 = por %p208, %p209
    %p211 = scmp.ne.s32.totalorder %s200, %s201
    %p212 = scmp.eq.s32.totalorder %s19, 0
    %p213 = por %p211, %p212
    %p214 = scmp.ne.s32.totalorder %s200, %s201
    %p215 = scmp.eq.s32.totalorder %s20, 1
    %p216 = por %p214, %p215
    %p218 = scmp.ne.s32.totalorder %s201, %s217
    %p219 = scmp.eq.s32.totalorder %s20, 0
    %p220 = por %p218, %p219
    %p221 = scmp.le.s32.totalorder 1, %s14
    %p222 = scmp.lt.s32.totalorder %s14, 3
    %p223 = pnand %p221, %p222
    %p224 = pneg %p223
    // Predicated region
    $region9: #{tpu_custom_call.1} parent=5 // pred_check
      _
    $region10: #{tpu_custom_call.1} parent=5 // pred_check_branch
      %226 = sbr.rel (%p223) target = $region12
    $region11: #{tpu_custom_call.1} parent=5 // pred_region
      %s227 = ssub.s32 %s14, 1
      // Predicated region
      $region13: #{tpu_custom_call.1} parent=11 // pred_check
        %p228 = pneg %p61
      $region14: #{tpu_custom_call.1} parent=11 // pred_check_branch
        %230 = sbr.rel (%p228) target = $region16
      $region15: #{tpu_custom_call.1} parent=11 // pred_region
        _
      $region16: #{tpu_custom_call.1} parent=11 // pred_fallthru
        _
      // Predicated region
      $region17: #{tpu_custom_call.1} parent=11 // pred_check
        %p231 = pneg %p82
      $region18: #{tpu_custom_call.1} parent=11 // pred_check_branch
        %233 = sbr.rel (%p231) target = $region20
      $region19: #{tpu_custom_call.1} parent=11 // pred_region
        _
      $region20: #{tpu_custom_call.1} parent=11 // pred_fallthru
        _
      // Predicated region
      $region21: #{tpu_custom_call.1} parent=11 // pred_check
        %p234 = pneg %p103
      $region22: #{tpu_custom_call.1} parent=11 // pred_check_branch
        %236 = sbr.rel (%p234) target = $region24
      $region23: #{tpu_custom_call.1} parent=11 // pred_region
        _
      $region24: #{tpu_custom_call.1} parent=11 // pred_fallthru
        _
      // Predicated region
      $region25: #{tpu_custom_call.1} parent=11 // pred_check
        %p237 = pneg %p124
      $region26: #{tpu_custom_call.1} parent=11 // pred_check_branch
        %239 = sbr.rel (%p237) target = $region28
      $region27: #{tpu_custom_call.1} parent=11 // pred_region
        _
      $region28: #{tpu_custom_call.1} parent=11 // pred_fallthru
        _
      // Predicated region
      $region29: #{tpu_custom_call.1} parent=11 // pred_check
        %p240 = pneg %p145
      $region30: #{tpu_custom_call.1} parent=11 // pred_check_branch
        %242 = sbr.rel (%p240) target = $region32
      $region31: #{tpu_custom_call.1} parent=11 // pred_region
        _
      $region32: #{tpu_custom_call.1} parent=11 // pred_fallthru
        _
      // Predicated region
      $region33: #{tpu_custom_call.1} parent=11 // pred_check
        %p243 = pneg %p166
      $region34: #{tpu_custom_call.1} parent=11 // pred_check_branch
        %245 = sbr.rel (%p243) target = $region36
      $region35: #{tpu_custom_call.1} parent=11 // pred_region
        _
      $region36: #{tpu_custom_call.1} parent=11 // pred_fallthru
        _
      // Predicated region
      $region37: #{tpu_custom_call.1} parent=11 // pred_check
        %p246 = pneg %p187
      $region38: #{tpu_custom_call.1} parent=11 // pred_check_branch
        %248 = sbr.rel (%p246) target = $region40
      $region39: #{tpu_custom_call.1} parent=11 // pred_region
        _
      $region40: #{tpu_custom_call.1} parent=11 // pred_fallthru
        _
    $region12: #{tpu_custom_call.1} parent=5 // pred_fallthru
      _
    %p249 = scmp.lt.s32.totalorder %s14, 2
    // Predicated region
    $region41: #{tpu_custom_call.1} parent=5 // pred_check
      %p250 = pneg %p249
    $region42: #{tpu_custom_call.1} parent=5 // pred_check_branch
      %252 = sbr.rel (%p250) target = $region44
    $region43: #{tpu_custom_call.1} parent=5 // pred_region
      // Predicated region
      $region45: #{tpu_custom_call.1} parent=43 // pred_check
        %p253 = pneg %p34
      $region46: #{tpu_custom_call.1} parent=43 // pred_check_branch
        %255 = sbr.rel (%p253) target = $region48
      $region47: #{tpu_custom_call.1} parent=43 // pred_region
        %p256 = scmp.lt.s32.totalorder %s14, 1
        %s257 = scalar_select %p256, %s14, 1
        %s258 = smul.addr %s257, 32
        %s259 = smul.addr %s258, 8
        %s260 = scalar_lea.vmem %s0, %s259
      $region48: #{tpu_custom_call.1} parent=43 // pred_fallthru
        _
    $region44: #{tpu_custom_call.1} parent=5 // pred_fallthru
      _
    %p261 = scmp.le.s32.totalorder 1, %s14
    %p262 = scmp.lt.s32.totalorder %s14, 3
    %p263 = pnand %p261, %p262
    %p264 = pneg %p263
    // Predicated region
    $region49: #{tpu_custom_call.1} parent=5 // pred_check
      _
    $region50: #{tpu_custom_call.1} parent=5 // pred_check_branch
      %266 = sbr.rel (%p263) target = $region52
    $region51: #{tpu_custom_call.1} parent=5 // pred_region
      %s267 = ssub.s32 %s14, 1
      %p268 = scmp.lt.s32.totalorder %s19, 1
      %s269 = scalar_select %p268, %s19, 1
      %s270 = smul.addr %s269, 32
      %s271 = smul.addr %s270, 8
      %s272 = scalar_lea.vmem %s0, %s271
      %p273 = pneg %p40
      %p274 = pneg %p37
      %p275 = pneg %p61
      %p276 = pneg %p58
      %p277 = pneg %p82
      %p278 = pneg %p79
      %p279 = pneg %p103
      %p280 = pneg %p100
      %p281 = pneg %p124
      %p282 = pneg %p121
      %p283 = pneg %p145
      %p284 = pneg %p142
      %p285 = pneg %p166
      %p286 = pneg %p163
      %p287 = pneg %p187
      %p288 = pneg %p184
      %p289 = pneg %p213
      %p290 = pneg %p210
      %p291 = scmp.lt.s32.totalorder %s19, 1
      %s292 = scalar_select %p291, %s19, 1
      %s293 = smul.addr %s292, 32
      %s294 = smul.addr %s293, 8
      %s295 = scalar_lea.vmem %s8, %s294
      %p296 = scmp.lt.s32.totalorder %s19, 1
      %s297 = scalar_select %p296, %s19, 1
      %s298 = smul.addr %s297, 32
      %s299 = smul.addr %s298, 8
      %s300 = scalar_lea.vmem %s0, %s299
      %p301 = scmp.lt.s32.totalorder %s19, 1
      %s302 = scalar_select %p301, %s19, 1
      %s303 = smul.addr %s302, 32
      %s304 = smul.addr %s303, 8
      %s305 = scalar_lea.vmem %s8, %s304
      %vm307 = vcmask 31744
      %308 = vst.msk [vmem:[#allocation2] sm:$0xff] %vm307, 0.0
      %309 = vst.msk [vmem:[#allocation2 + $0x8] sm:$0xff] %vm307, 0.0
      %310 = vst.msk [vmem:[#allocation2 + $0x10] sm:$0xff] %vm307, 0.0
      %311 = vst.msk [vmem:[#allocation2 + $0x18] sm:$0xff] %vm307, 0.0
      %312 = vst.msk [vmem:[#allocation2 + $0x20] sm:$0xff] %vm307, 0.0
      %313 = vst.msk [vmem:[#allocation2 + $0x28] sm:$0xff] %vm307, 0.0
      %314 = vst.msk [vmem:[#allocation2 + $0x30] sm:$0xff] %vm307, 0.0
      %315 = vst.msk [vmem:[#allocation2 + $0x38] sm:$0xff] %vm307, 0.0
      %316 = vst.msk [vmem:[#allocation2 + $0x40] sm:$0xff] %vm307, 0.0
      %317 = vst.msk [vmem:[#allocation2 + $0x48] sm:$0xff] %vm307, 0.0
      %318 = vst.msk [vmem:[#allocation2 + $0x50] sm:$0xff] %vm307, 0.0
      %319 = vst.msk [vmem:[#allocation2 + $0x58] sm:$0xff] %vm307, 0.0
      %320 = vst.msk [vmem:[#allocation2 + $0x60] sm:$0xff] %vm307, 0.0
      %321 = vst.msk [vmem:[#allocation2 + $0x68] sm:$0xff] %vm307, 0.0
      %322 = vst.msk [vmem:[#allocation2 + $0x70] sm:$0xff] %vm307, 0.0
      %323 = vst.msk [vmem:[#allocation2 + $0x78] sm:$0xff] %vm307, 0.0
      %324 = vst.msk [vmem:[#allocation2 + $0x80] sm:$0xff] %vm307, 0.0
      %325 = vst.msk [vmem:[#allocation2 + $0x88] sm:$0xff] %vm307, 0.0
      %326 = vst.msk [vmem:[#allocation2 + $0x90] sm:$0xff] %vm307, 0.0
      %327 = vst.msk [vmem:[#allocation2 + $0x98] sm:$0xff] %vm307, 0.0
      %328 = vst.msk [vmem:[#allocation2 + $0xa0] sm:$0xff] %vm307, 0.0
      %329 = vst.msk [vmem:[#allocation2 + $0xa8] sm:$0xff] %vm307, 0.0
      %330 = vst.msk [vmem:[#allocation2 + $0xb0] sm:$0xff] %vm307, 0.0
      %331 = vst.msk [vmem:[#allocation2 + $0xb8] sm:$0xff] %vm307, 0.0
      %332 = vst.msk [vmem:[#allocation2 + $0xc0] sm:$0xff] %vm307, 0.0
      %333 = vst.msk [vmem:[#allocation2 + $0xc8] sm:$0xff] %vm307, 0.0
      %334 = vst.msk [vmem:[#allocation2 + $0xd0] sm:$0xff] %vm307, 0.0
      %335 = vst.msk [vmem:[#allocation2 + $0xd8] sm:$0xff] %vm307, 0.0
      %336 = vst.msk [vmem:[#allocation2 + $0xe0] sm:$0xff] %vm307, 0.0
      %337 = vst.msk [vmem:[#allocation2 + $0xe8] sm:$0xff] %vm307, 0.0
      %338 = vst.msk [vmem:[#allocation2 + $0xf0] sm:$0xff] %vm307, 0.0
      %339 = vst.msk [vmem:[#allocation2 + $0xf8] sm:$0xff] %vm307, 0.0
      %340 = vst.msk [vmem:[#allocation2 + $0x100] sm:$0xff] %vm307, 0.0
      %341 = vst.msk [vmem:[#allocation2 + $0x108] sm:$0xff] %vm307, 0.0
      %342 = vst.msk [vmem:[#allocation2 + $0x110] sm:$0xff] %vm307, 0.0
      %343 = vst.msk [vmem:[#allocation2 + $0x118] sm:$0xff] %vm307, 0.0
      %344 = vst.msk [vmem:[#allocation2 + $0x120] sm:$0xff] %vm307, 0.0
      %345 = vst.msk [vmem:[#allocation2 + $0x128] sm:$0xff] %vm307, 0.0
      %346 = vst.msk [vmem:[#allocation2 + $0x130] sm:$0xff] %vm307, 0.0
      %347 = vst.msk [vmem:[#allocation2 + $0x138] sm:$0xff] %vm307, 0.0
      %348 = vst.msk [vmem:[#allocation2 + $0x140] sm:$0xff] %vm307, 0.0
      %349 = vst.msk [vmem:[#allocation2 + $0x148] sm:$0xff] %vm307, 0.0
      %350 = vst.msk [vmem:[#allocation2 + $0x150] sm:$0xff] %vm307, 0.0
      %351 = vst.msk [vmem:[#allocation2 + $0x158] sm:$0xff] %vm307, 0.0
      %352 = vst.msk [vmem:[#allocation2 + $0x160] sm:$0xff] %vm307, 0.0
      %vm353 = vcmask 25600
      %354 = vst.msk [vmem:[#allocation2 + $0x168] sm:$0x3] %vm353, 0.0
      %v355 = vld [vmem:[%s300] sm:$0xff]
      %v356 = vld [vmem:[%s300 + $0x8] sm:$0xff]
      %357 = vst.msk [vmem:[#allocation2 + $0x13] sm:$0xff] %vm307, %v355
      %358 = vst.msk [vmem:[#allocation2 + $0x1b] sm:$0xff] %vm307, %v356
      %s359 = scalar_lea.vmem %s300, 16
      %v360 = vld [vmem:[%s359] sm:$0xff]
      %v361 = vld [vmem:[%s359 + $0x8] sm:$0xff]
      %362 = vst.msk [vmem:[#allocation2 + $0x25] sm:$0xff] %vm307, %v360
      %363 = vst.msk [vmem:[#allocation2 + $0x2d] sm:$0xff] %vm307, %v361
      %s364 = scalar_lea.vmem %s300, 32
      %v365 = vld [vmem:[%s364] sm:$0xff]
      %v366 = vld [vmem:[%s364 + $0x8] sm:$0xff]
      %367 = vst.msk [vmem:[#allocation2 + $0x37] sm:$0xff] %vm307, %v365
      %368 = vst.msk [vmem:[#allocation2 + $0x3f] sm:$0xff] %vm307, %v366
      %s369 = scalar_lea.vmem %s300, 48
      %v370 = vld [vmem:[%s369] sm:$0xff]
      %v371 = vld [vmem:[%s369 + $0x8] sm:$0xff]
      %372 = vst.msk [vmem:[#allocation2 + $0x49] sm:$0xff] %vm307, %v370
      %373 = vst.msk [vmem:[#allocation2 + $0x51] sm:$0xff] %vm307, %v371
      %s374 = scalar_lea.vmem %s300, 64
      %v375 = vld [vmem:[%s374] sm:$0xff]
      %v376 = vld [vmem:[%s374 + $0x8] sm:$0xff]
      %377 = vst.msk [vmem:[#allocation2 + $0x5b] sm:$0xff] %vm307, %v375
      %378 = vst.msk [vmem:[#allocation2 + $0x63] sm:$0xff] %vm307, %v376
      %s379 = scalar_lea.vmem %s300, 80
      %v380 = vld [vmem:[%s379] sm:$0xff]
      %v381 = vld [vmem:[%s379 + $0x8] sm:$0xff]
      %382 = vst.msk [vmem:[#allocation2 + $0x6d] sm:$0xff] %vm307, %v380
      %383 = vst.msk [vmem:[#allocation2 + $0x75] sm:$0xff] %vm307, %v381
      %s384 = scalar_lea.vmem %s300, 96
      %v385 = vld [vmem:[%s384] sm:$0xff]
      %v386 = vld [vmem:[%s384 + $0x8] sm:$0xff]
      %387 = vst.msk [vmem:[#allocation2 + $0x7f] sm:$0xff] %vm307, %v385
      %388 = vst.msk [vmem:[#allocation2 + $0x87] sm:$0xff] %vm307, %v386
      %s389 = scalar_lea.vmem %s300, 112
      %v390 = vld [vmem:[%s389] sm:$0xff]
      %v391 = vld [vmem:[%s389 + $0x8] sm:$0xff]
      %392 = vst.msk [vmem:[#allocation2 + $0x91] sm:$0xff] %vm307, %v390
      %393 = vst.msk [vmem:[#allocation2 + $0x99] sm:$0xff] %vm307, %v391
      %s394 = scalar_lea.vmem %s300, 128
      %v395 = vld [vmem:[%s394] sm:$0xff]
      %v396 = vld [vmem:[%s394 + $0x8] sm:$0xff]
      %397 = vst.msk [vmem:[#allocation2 + $0xa3] sm:$0xff] %vm307, %v395
      %398 = vst.msk [vmem:[#allocation2 + $0xab] sm:$0xff] %vm307, %v396
      %s399 = scalar_lea.vmem %s300, 144
      %v400 = vld [vmem:[%s399] sm:$0xff]
      %v401 = vld [vmem:[%s399 + $0x8] sm:$0xff]
      %402 = vst.msk [vmem:[#allocation2 + $0xb5] sm:$0xff] %vm307, %v400
      %403 = vst.msk [vmem:[#allocation2 + $0xbd] sm:$0xff] %vm307, %v401
      %s404 = scalar_lea.vmem %s300, 160
      %v405 = vld [vmem:[%s404] sm:$0xff]
      %v406 = vld [vmem:[%s404 + $0x8] sm:$0xff]
      %407 = vst.msk [vmem:[#allocation2 + $0xc7] sm:$0xff] %vm307, %v405
      %408 = vst.msk [vmem:[#allocation2 + $0xcf] sm:$0xff] %vm307, %v406
      %s409 = scalar_lea.vmem %s300, 176
      %v410 = vld [vmem:[%s409] sm:$0xff]
      %v411 = vld [vmem:[%s409 + $0x8] sm:$0xff]
      %412 = vst.msk [vmem:[#allocation2 + $0xd9] sm:$0xff] %vm307, %v410
      %413 = vst.msk [vmem:[#allocation2 + $0xe1] sm:$0xff] %vm307, %v411
      %s414 = scalar_lea.vmem %s300, 192
      %v415 = vld [vmem:[%s414] sm:$0xff]
      %v416 = vld [vmem:[%s414 + $0x8] sm:$0xff]
      %417 = vst.msk [vmem:[#allocation2 + $0xeb] sm:$0xff] %vm307, %v415
      %418 = vst.msk [vmem:[#allocation2 + $0xf3] sm:$0xff] %vm307, %v416
      %s419 = scalar_lea.vmem %s300, 208
      %v420 = vld [vmem:[%s419] sm:$0xff]
      %v421 = vld [vmem:[%s419 + $0x8] sm:$0xff]
      %422 = vst.msk [vmem:[#allocation2 + $0xfd] sm:$0xff] %vm307, %v420
      %423 = vst.msk [vmem:[#allocation2 + $0x105] sm:$0xff] %vm307, %v421
      %s424 = scalar_lea.vmem %s300, 224
      %v425 = vld [vmem:[%s424] sm:$0xff]
      %v426 = vld [vmem:[%s424 + $0x8] sm:$0xff]
      %427 = vst.msk [vmem:[#allocation2 + $0x10f] sm:$0xff] %vm307, %v425
      %428 = vst.msk [vmem:[#allocation2 + $0x117] sm:$0xff] %vm307, %v426
      %s429 = scalar_lea.vmem %s300, 240
      %v430 = vld [vmem:[%s429] sm:$0xff]
      %v431 = vld [vmem:[%s429 + $0x8] sm:$0xff]
      %432 = vst.msk [vmem:[#allocation2 + $0x121] sm:$0xff] %vm307, %v430
      %433 = vst.msk [vmem:[#allocation2 + $0x129] sm:$0xff] %vm307, %v431
      %v434 = vld [vmem:[#allocation2] sm:$0xff]
      %v435 = vld [vmem:[#allocation2 + $0x8] sm:$0xff]
      %v436 = vld [vmem:[#allocation2 + $0x10] sm:$0xff]
      %v437 = vld [vmem:[#allocation2 + $0x18] sm:$0xff]
      %v438 = vld [vmem:[#allocation2 + $0x20] sm:$0xff]
      %v439 = vld [vmem:[#allocation2 + $0x28] sm:$0xff]
      %v440 = vld [vmem:[#allocation2 + $0x30] sm:$0xff]
      %v441 = vld [vmem:[#allocation2 + $0x38] sm:$0xff]
      %v442 = vld [vmem:[#allocation2 + $0x40] sm:$0xff]
      %v443 = vld [vmem:[#allocation2 + $0x48] sm:$0xff]
      %v444 = vld [vmem:[#allocation2 + $0x50] sm:$0xff]
      %v445 = vld [vmem:[#allocation2 + $0x58] sm:$0xff]
      %v446 = vld [vmem:[#allocation2 + $0x60] sm:$0xff]
      %v447 = vld [vmem:[#allocation2 + $0x68] sm:$0xff]
      %v448 = vld [vmem:[#allocation2 + $0x70] sm:$0xff]
      %v449 = vld [vmem:[#allocation2 + $0x78] sm:$0xff]
      %v450 = vld [vmem:[#allocation2 + $0x80] sm:$0xff]
      %v451 = vld [vmem:[#allocation2 + $0x88] sm:$0xff]
      %v452 = vld [vmem:[#allocation2 + $0x90] sm:$0xff]
      %v453 = vld [vmem:[#allocation2 + $0x98] sm:$0xff]
      %v454 = vld [vmem:[#allocation2 + $0xa0] sm:$0xff]
      %v455 = vld [vmem:[#allocation2 + $0xa8] sm:$0xff]
      %v456 = vld [vmem:[#allocation2 + $0xb0] sm:$0xff]
      %v457 = vld [vmem:[#allocation2 + $0xb8] sm:$0xff]
      %v458 = vld [vmem:[#allocation2 + $0xc0] sm:$0xff]
      %v459 = vld [vmem:[#allocation2 + $0xc8] sm:$0xff]
      %v460 = vld [vmem:[#allocation2 + $0xd0] sm:$0xff]
      %v461 = vld [vmem:[#allocation2 + $0xd8] sm:$0xff]
      %v462 = vld [vmem:[#allocation2 + $0xe0] sm:$0xff]
      %v463 = vld [vmem:[#allocation2 + $0xe8] sm:$0xff]
      %v464 = vld [vmem:[#allocation2 + $0xf0] sm:$0xff]
      %v465 = vld [vmem:[#allocation2 + $0xf8] sm:$0xff]
      %v466 = vld [vmem:[#allocation2 + $0x100] sm:$0xff]
      %v467 = vld [vmem:[#allocation2 + $0x108] sm:$0xff]
      %v468 = vld [vmem:[#allocation2 + $0x110] sm:$0xff]
      %v469 = vld [vmem:[#allocation2 + $0x118] sm:$0xff]
      %v470 = vld [vmem:[#allocation2 + $0x120] sm:$0xff]
      %v471 = vld [vmem:[#allocation2 + $0x128] sm:$0xff]
      %v472 = vld [vmem:[#allocation2 + $0x130] sm:$0xff]
      %v473 = vld [vmem:[#allocation2 + $0x138] sm:$0xff]
      %v474 = vld [vmem:[#allocation2 + $0x140] sm:$0xf]
      %v475 = vld [vmem:[#allocation2 + $0x1] sm:$0xff]
      %v476 = vld [vmem:[#allocation2 + $0x9] sm:$0xff]
      %v477 = vld [vmem:[#allocation2 + $0x11] sm:$0xff]
      %v478 = vld [vmem:[#allocation2 + $0x19] sm:$0xff]
      %v479 = vld [vmem:[#allocation2 + $0x21] sm:$0xff]
      %v480 = vld [vmem:[#allocation2 + $0x29] sm:$0xff]
      %v481 = vld [vmem:[#allocation2 + $0x31] sm:$0xff]
      %v482 = vld [vmem:[#allocation2 + $0x39] sm:$0xff]
      %v483 = vld [vmem:[#allocation2 + $0x41] sm:$0xff]
      %v484 = vld [vmem:[#allocation2 + $0x49] sm:$0xff]
      %v485 = vld [vmem:[#allocation2 + $0x51] sm:$0xff]
      %v486 = vld [vmem:[#allocation2 + $0x59] sm:$0xff]
      %v487 = vld [vmem:[#allocation2 + $0x61] sm:$0xff]
      %v488 = vld [vmem:[#allocation2 + $0x69] sm:$0xff]
      %v489 = vld [vmem:[#allocation2 + $0x71] sm:$0xff]
      %v490 = vld [vmem:[#allocation2 + $0x79] sm:$0xff]
      %v491 = vld [vmem:[#allocation2 + $0x81] sm:$0xff]
      %v492 = vld [vmem:[#allocation2 + $0x89] sm:$0xff]
      %v493 = vld [vmem:[#allocation2 + $0x91] sm:$0xff]
      %v494 = vld [vmem:[#allocation2 + $0x99] sm:$0xff]
      %v495 = vld [vmem:[#allocation2 + $0xa1] sm:$0xff]
      %v496 = vld [vmem:[#allocation2 + $0xa9] sm:$0xff]
      %v497 = vld [vmem:[#allocation2 + $0xb1] sm:$0xff]
      %v498 = vld [vmem:[#allocation2 + $0xb9] sm:$0xff]
      %v499 = vld [vmem:[#allocation2 + $0xc1] sm:$0xff]
      %v500 = vld [vmem:[#allocation2 + $0xc9] sm:$0xff]
      %v501 = vld [vmem:[#allocation2 + $0xd1] sm:$0xff]
      %v502 = vld [vmem:[#allocation2 + $0xd9] sm:$0xff]
      %v503 = vld [vmem:[#allocation2 + $0xe1] sm:$0xff]
      %v504 = vld [vmem:[#allocation2 + $0xe9] sm:$0xff]
      %v505 = vld [vmem:[#allocation2 + $0xf1] sm:$0xff]
      %v506 = vld [vmem:[#allocation2 + $0xf9] sm:$0xff]
      %v507 = vld [vmem:[#allocation2 + $0x101] sm:$0xff]
      %v508 = vld [vmem:[#allocation2 + $0x109] sm:$0xff]
      %v509 = vld [vmem:[#allocation2 + $0x111] sm:$0xff]
      %v510 = vld [vmem:[#allocation2 + $0x119] sm:$0xff]
      %v511 = vld [vmem:[#allocation2 + $0x121] sm:$0xff]
      %v512 = vld [vmem:[#allocation2 + $0x129] sm:$0xff]
      %v513 = vld [vmem:[#allocation2 + $0x131] sm:$0xff]
      %v514 = vld [vmem:[#allocation2 + $0x139] sm:$0xff]
      %v515 = vld [vmem:[#allocation2 + $0x141] sm:$0xf]
      %v516 = vld [vmem:[#allocation2 + $0x2] sm:$0xff]
      %v517 = vld [vmem:[#allocation2 + $0xa] sm:$0xff]
      %v518 = vld [vmem:[#allocation2 + $0x12] sm:$0xff]
      %v519 = vld [vmem:[#allocation2 + $0x1a] sm:$0xff]
      %v520 = vld [vmem:[#allocation2 + $0x22] sm:$0xff]
      %v521 = vld [vmem:[#allocation2 + $0x2a] sm:$0xff]
      %v522 = vld [vmem:[#allocation2 + $0x32] sm:$0xff]
      %v523 = vld [vmem:[#allocation2 + $0x3a] sm:$0xff]
      %v524 = vld [vmem:[#allocation2 + $0x42] sm:$0xff]
      %v525 = vld [vmem:[#allocation2 + $0x4a] sm:$0xff]
      %v526 = vld [vmem:[#allocation2 + $0x52] sm:$0xff]
      %v527 = vld [vmem:[#allocation2 + $0x5a] sm:$0xff]
      %v528 = vld [vmem:[#allocation2 + $0x62] sm:$0xff]
      %v529 = vld [vmem:[#allocation2 + $0x6a] sm:$0xff]
      %v530 = vld [vmem:[#allocation2 + $0x72] sm:$0xff]
      %v531 = vld [vmem:[#allocation2 + $0x7a] sm:$0xff]
      %v532 = vld [vmem:[#allocation2 + $0x82] sm:$0xff]
      %v533 = vld [vmem:[#allocation2 + $0x8a] sm:$0xff]
      %v534 = vld [vmem:[#allocation2 + $0x92] sm:$0xff]
      %v535 = vld [vmem:[#allocation2 + $0x9a] sm:$0xff]
      %v536 = vld [vmem:[#allocation2 + $0xa2] sm:$0xff]
      %v537 = vld [vmem:[#allocation2 + $0xaa] sm:$0xff]
      %v538 = vld [vmem:[#allocation2 + $0xb2] sm:$0xff]
      %v539 = vld [vmem:[#allocation2 + $0xba] sm:$0xff]
      %v540 = vld [vmem:[#allocation2 + $0xc2] sm:$0xff]
      %v541 = vld [vmem:[#allocation2 + $0xca] sm:$0xff]
      %v542 = vld [vmem:[#allocation2 + $0xd2] sm:$0xff]
      %v543 = vld [vmem:[#allocation2 + $0xda] sm:$0xff]
      %v544 = vld [vmem:[#allocation2 + $0xe2] sm:$0xff]
      %v545 = vld [vmem:[#allocation2 + $0xea] sm:$0xff]
      %v546 = vld [vmem:[#allocation2 + $0xf2] sm:$0xff]
      %v547 = vld [vmem:[#allocation2 + $0xfa] sm:$0xff]
      %v548 = vld [vmem:[#allocation2 + $0x102] sm:$0xff]
      %v549 = vld [vmem:[#allocation2 + $0x10a] sm:$0xff]
      %v550 = vld [vmem:[#allocation2 + $0x112] sm:$0xff]
      %v551 = vld [vmem:[#allocation2 + $0x11a] sm:$0xff]
      %v552 = vld [vmem:[#allocation2 + $0x122] sm:$0xff]
      %v553 = vld [vmem:[#allocation2 + $0x12a] sm:$0xff]
      %v554 = vld [vmem:[#allocation2 + $0x132] sm:$0xff]
      %v555 = vld [vmem:[#allocation2 + $0x13a] sm:$0xff]
      %v556 = vld [vmem:[#allocation2 + $0x142] sm:$0xf]
      %v557 = vld [vmem:[#allocation2 + $0x142] sm:$0xff]
      %v558 = vld [vmem:[#allocation2 + $0x14a] sm:$0xff]
      %v559 = vld [vmem:[#allocation2 + $0x152] sm:$0xf]
      %v560 = vld [vmem:[#allocation2 + $0x13] sm:$0xff]
      %v561 = vld [vmem:[#allocation2 + $0x1b] sm:$0xff]
      %v562 = vld [vmem:[#allocation2 + $0x23] sm:$0xff]
      %v563 = vld [vmem:[#allocation2 + $0x2b] sm:$0xff]
      %v564 = vld [vmem:[#allocation2 + $0x33] sm:$0xff]
      %v565 = vld [vmem:[#allocation2 + $0x3b] sm:$0xff]
      %v566 = vld [vmem:[#allocation2 + $0x43] sm:$0xff]
      %v567 = vld [vmem:[#allocation2 + $0x4b] sm:$0xff]
      %v568 = vld [vmem:[#allocation2 + $0x53] sm:$0xff]
      %v569 = vld [vmem:[#allocation2 + $0x5b] sm:$0xff]
      %v570 = vld [vmem:[#allocation2 + $0x63] sm:$0xff]
      %v571 = vld [vmem:[#allocation2 + $0x6b] sm:$0xff]
      %v572 = vld [vmem:[#allocation2 + $0x73] sm:$0xff]
      %v573 = vld [vmem:[#allocation2 + $0x7b] sm:$0xff]
      %v574 = vld [vmem:[#allocation2 + $0x83] sm:$0xff]
      %v575 = vld [vmem:[#allocation2 + $0x8b] sm:$0xff]
      %v576 = vld [vmem:[#allocation2 + $0x93] sm:$0xff]
      %v577 = vld [vmem:[#allocation2 + $0x9b] sm:$0xff]
      %v578 = vld [vmem:[#allocation2 + $0xa3] sm:$0xff]
      %v579 = vld [vmem:[#allocation2 + $0xab] sm:$0xff]
      %v580 = vld [vmem:[#allocation2 + $0xb3] sm:$0xff]
      %v581 = vld [vmem:[#allocation2 + $0xbb] sm:$0xff]
      %v582 = vld [vmem:[#allocation2 + $0xc3] sm:$0xff]
      %v583 = vld [vmem:[#allocation2 + $0xcb] sm:$0xff]
      %v584 = vld [vmem:[#allocation2 + $0xd3] sm:$0xff]
      %v585 = vld [vmem:[#allocation2 + $0xdb] sm:$0xff]
      %v586 = vld [vmem:[#allocation2 + $0xe3] sm:$0xff]
      %v587 = vld [vmem:[#allocation2 + $0xeb] sm:$0xff]
      %v588 = vld [vmem:[#allocation2 + $0xf3] sm:$0xff]
      %v589 = vld [vmem:[#allocation2 + $0xfb] sm:$0xff]
      %v590 = vld [vmem:[#allocation2 + $0x103] sm:$0xff]
      %v591 = vld [vmem:[#allocation2 + $0x10b] sm:$0xff]
      %v592 = vld [vmem:[#allocation2 + $0x113] sm:$0xff]
      %v593 = vld [vmem:[#allocation2 + $0x11b] sm:$0xff]
      %v594 = vld [vmem:[#allocation2 + $0x123] sm:$0xff]
      %v595 = vld [vmem:[#allocation2 + $0x12b] sm:$0xff]
      %v596 = vld [vmem:[#allocation2 + $0x133] sm:$0xff]
      %v597 = vld [vmem:[#allocation2 + $0x13b] sm:$0xff]
      %v598 = vld [vmem:[#allocation2 + $0x143] sm:$0xff]
      %v599 = vld [vmem:[#allocation2 + $0x14b] sm:$0xff]
      %v600 = vld [vmem:[#allocation2 + $0x153] sm:$0xf]
      %v601 = vld [vmem:[#allocation2 + $0x14] sm:$0xff]
      %v602 = vld [vmem:[#allocation2 + $0x1c] sm:$0xff]
      %v603 = vld [vmem:[#allocation2 + $0x24] sm:$0xff]
      %v604 = vld [vmem:[#allocation2 + $0x2c] sm:$0xff]
      %v605 = vld [vmem:[#allocation2 + $0x34] sm:$0xff]
      %v606 = vld [vmem:[#allocation2 + $0x3c] sm:$0xff]
      %v607 = vld [vmem:[#allocation2 + $0x44] sm:$0xff]
      %v608 = vld [vmem:[#allocation2 + $0x4c] sm:$0xff]
      %v609 = vld [vmem:[#allocation2 + $0x54] sm:$0xff]
      %v610 = vld [vmem:[#allocation2 + $0x5c] sm:$0xff]
      %v611 = vld [vmem:[#allocation2 + $0x64] sm:$0xff]
      %v612 = vld [vmem:[#allocation2 + $0x6c] sm:$0xff]
      %v613 = vld [vmem:[#allocation2 + $0x74] sm:$0xff]
      %v614 = vld [vmem:[#allocation2 + $0x7c] sm:$0xff]
      %v615 = vld [vmem:[#allocation2 + $0x84] sm:$0xff]
      %v616 = vld [vmem:[#allocation2 + $0x8c] sm:$0xff]
      %v617 = vld [vmem:[#allocation2 + $0x94] sm:$0xff]
      %v618 = vld [vmem:[#allocation2 + $0x9c] sm:$0xff]
      %v619 = vld [vmem:[#allocation2 + $0xa4] sm:$0xff]
      %v620 = vld [vmem:[#allocation2 + $0xac] sm:$0xff]
      %v621 = vld [vmem:[#allocation2 + $0xb4] sm:$0xff]
      %v622 = vld [vmem:[#allocation2 + $0xbc] sm:$0xff]
      %v623 = vld [vmem:[#allocation2 + $0xc4] sm:$0xff]
      %v624 = vld [vmem:[#allocation2 + $0xcc] sm:$0xff]
      %v625 = vld [vmem:[#allocation2 + $0xd4] sm:$0xff]
      %v626 = vld [vmem:[#allocation2 + $0xdc] sm:$0xff]
      %v627 = vld [vmem:[#allocation2 + $0xe4] sm:$0xff]
      %v628 = vld [vmem:[#allocation2 + $0xec] sm:$0xff]
      %v629 = vld [vmem:[#allocation2 + $0xf4] sm:$0xff]
      %v630 = vld [vmem:[#allocation2 + $0xfc] sm:$0xff]
      %v631 = vld [vmem:[#allocation2 + $0x104] sm:$0xff]
      %v632 = vld [vmem:[#allocation2 + $0x10c] sm:$0xff]
      %v633 = vld [vmem:[#allocation2 + $0x114] sm:$0xff]
      %v634 = vld [vmem:[#allocation2 + $0x11c] sm:$0xff]
      %v635 = vld [vmem:[#allocation2 + $0x124] sm:$0xff]
      %v636 = vld [vmem:[#allocation2 + $0x12c] sm:$0xff]
      %v637 = vld [vmem:[#allocation2 + $0x134] sm:$0xff]
      %v638 = vld [vmem:[#allocation2 + $0x13c] sm:$0xff]
      %v639 = vld [vmem:[#allocation2 + $0x144] sm:$0xff]
      %v640 = vld [vmem:[#allocation2 + $0x14c] sm:$0xff]
      %v641 = vld [vmem:[#allocation2 + $0x154] sm:$0xf]
      %v642 = vld [vmem:[#allocation2 + $0x154] sm:$0xff]
      %v643 = vld [vmem:[#allocation2 + $0x15c] sm:$0xff]
      %v644 = vld [vmem:[#allocation2 + $0x164] sm:$0xf]
      %v645 = vld [vmem:[#allocation2 + $0x25] sm:$0xff]
      %v646 = vld [vmem:[#allocation2 + $0x2d] sm:$0xff]
      %v647 = vld [vmem:[#allocation2 + $0x35] sm:$0xff]
      %v648 = vld [vmem:[#allocation2 + $0x3d] sm:$0xff]
      %v649 = vld [vmem:[#allocation2 + $0x45] sm:$0xff]
      %v650 = vld [vmem:[#allocation2 + $0x4d] sm:$0xff]
      %v651 = vld [vmem:[#allocation2 + $0x55] sm:$0xff]
      %v652 = vld [vmem:[#allocation2 + $0x5d] sm:$0xff]
      %v653 = vld [vmem:[#allocation2 + $0x65] sm:$0xff]
      %v654 = vld [vmem:[#allocation2 + $0x6d] sm:$0xff]
      %v655 = vld [vmem:[#allocation2 + $0x75] sm:$0xff]
      %v656 = vld [vmem:[#allocation2 + $0x7d] sm:$0xff]
      %v657 = vld [vmem:[#allocation2 + $0x85] sm:$0xff]
      %v658 = vld [vmem:[#allocation2 + $0x8d] sm:$0xff]
      %v659 = vld [vmem:[#allocation2 + $0x95] sm:$0xff]
      %v660 = vld [vmem:[#allocation2 + $0x9d] sm:$0xff]
      %v661 = vld [vmem:[#allocation2 + $0xa5] sm:$0xff]
      %v662 = vld [vmem:[#allocation2 + $0xad] sm:$0xff]
      %v663 = vld [vmem:[#allocation2 + $0xb5] sm:$0xff]
      %v664 = vld [vmem:[#allocation2 + $0xbd] sm:$0xff]
      %v665 = vld [vmem:[#allocation2 + $0xc5] sm:$0xff]
      %v666 = vld [vmem:[#allocation2 + $0xcd] sm:$0xff]
      %v667 = vld [vmem:[#allocation2 + $0xd5] sm:$0xff]
      %v668 = vld [vmem:[#allocation2 + $0xdd] sm:$0xff]
      %v669 = vld [vmem:[#allocation2 + $0xe5] sm:$0xff]
      %v670 = vld [vmem:[#allocation2 + $0xed] sm:$0xff]
      %v671 = vld [vmem:[#allocation2 + $0xf5] sm:$0xff]
      %v672 = vld [vmem:[#allocation2 + $0xfd] sm:$0xff]
      %v673 = vld [vmem:[#allocation2 + $0x105] sm:$0xff]
      %v674 = vld [vmem:[#allocation2 + $0x10d] sm:$0xff]
      %v675 = vld [vmem:[#allocation2 + $0x115] sm:$0xff]
      %v676 = vld [vmem:[#allocation2 + $0x11d] sm:$0xff]
      %v677 = vld [vmem:[#allocation2 + $0x125] sm:$0xff]
      %v678 = vld [vmem:[#allocation2 + $0x12d] sm:$0xff]
      %v679 = vld [vmem:[#allocation2 + $0x135] sm:$0xff]
      %v680 = vld [vmem:[#allocation2 + $0x13d] sm:$0xff]
      %v681 = vld [vmem:[#allocation2 + $0x145] sm:$0xff]
      %v682 = vld [vmem:[#allocation2 + $0x14d] sm:$0xff]
      %v683 = vld [vmem:[#allocation2 + $0x155] sm:$0xff]
      %v684 = vld [vmem:[#allocation2 + $0x15d] sm:$0xff]
      %v685 = vld [vmem:[#allocation2 + $0x165] sm:$0xf]
      %v686 = vld [vmem:[#allocation2 + $0x26] sm:$0xff]
      %v687 = vld [vmem:[#allocation2 + $0x2e] sm:$0xff]
      %v688 = vld [vmem:[#allocation2 + $0x36] sm:$0xff]
      %v689 = vld [vmem:[#allocation2 + $0x3e] sm:$0xff]
      %v690 = vld [vmem:[#allocation2 + $0x46] sm:$0xff]
      %v691 = vld [vmem:[#allocation2 + $0x4e] sm:$0xff]
      %v692 = vld [vmem:[#allocation2 + $0x56] sm:$0xff]
      %v693 = vld [vmem:[#allocation2 + $0x5e] sm:$0xff]
      %v694 = vld [vmem:[#allocation2 + $0x66] sm:$0xff]
      %v695 = vld [vmem:[#allocation2 + $0x6e] sm:$0xff]
      %v696 = vld [vmem:[#allocation2 + $0x76] sm:$0xff]
      %v697 = vld [vmem:[#allocation2 + $0x7e] sm:$0xff]
      %v698 = vld [vmem:[#allocation2 + $0x86] sm:$0xff]
      %v699 = vld [vmem:[#allocation2 + $0x8e] sm:$0xff]
      %v700 = vld [vmem:[#allocation2 + $0x96] sm:$0xff]
      %v701 = vld [vmem:[#allocation2 + $0x9e] sm:$0xff]
      %v702 = vld [vmem:[#allocation2 + $0xa6] sm:$0xff]
      %v703 = vld [vmem:[#allocation2 + $0xae] sm:$0xff]
      %v704 = vld [vmem:[#allocation2 + $0xb6] sm:$0xff]
      %v705 = vld [vmem:[#allocation2 + $0xbe] sm:$0xff]
      %v706 = vld [vmem:[#allocation2 + $0xc6] sm:$0xff]
      %v707 = vld [vmem:[#allocation2 + $0xce] sm:$0xff]
      %v708 = vld [vmem:[#allocation2 + $0xd6] sm:$0xff]
      %v709 = vld [vmem:[#allocation2 + $0xde] sm:$0xff]
      %v710 = vld [vmem:[#allocation2 + $0xe6] sm:$0xff]
      %v711 = vld [vmem:[#allocation2 + $0xee] sm:$0xff]
      %v712 = vld [vmem:[#allocation2 + $0xf6] sm:$0xff]
      %v713 = vld [vmem:[#allocation2 + $0xfe] sm:$0xff]
      %v714 = vld [vmem:[#allocation2 + $0x106] sm:$0xff]
      %v715 = vld [vmem:[#allocation2 + $0x10e] sm:$0xff]
      %v716 = vld [vmem:[#allocation2 + $0x116] sm:$0xff]
      %v717 = vld [vmem:[#allocation2 + $0x11e] sm:$0xff]
      %v718 = vld [vmem:[#allocation2 + $0x126] sm:$0xff]
      %v719 = vld [vmem:[#allocation2 + $0x12e] sm:$0xff]
      %v720 = vld [vmem:[#allocation2 + $0x136] sm:$0xff]
      %v721 = vld [vmem:[#allocation2 + $0x13e] sm:$0xff]
      %v722 = vld [vmem:[#allocation2 + $0x146] sm:$0xff]
      %v723 = vld [vmem:[#allocation2 + $0x14e] sm:$0xff]
      %v724 = vld [vmem:[#allocation2 + $0x156] sm:$0xff]
      %v725 = vld [vmem:[#allocation2 + $0x15e] sm:$0xff]
      %v726 = vld [vmem:[#allocation2 + $0x166] sm:$0xf]
      %768 = vrot.lane.b32.xlu0 %v475, 4
      %v769 = vpop.permute.xlu0 %768
      %770 = vrot.lane.b32.xlu0 %v476, 4
      %v771 = vpop.permute.xlu0 %770
      %772 = vrot.lane.b32.xlu0 %v477, 4
      %v773 = vpop.permute.xlu0 %772
      %774 = vrot.lane.b32.xlu0 %v478, 4
      %v775 = vpop.permute.xlu0 %774
      %776 = vrot.lane.b32.xlu0 %v479, 4
      %v777 = vpop.permute.xlu0 %776
      %778 = vrot.lane.b32.xlu0 %v480, 4
      %v779 = vpop.permute.xlu0 %778
      %780 = vrot.lane.b32.xlu0 %v481, 4
      %v781 = vpop.permute.xlu0 %780
      %782 = vrot.lane.b32.xlu0 %v482, 4
      %v783 = vpop.permute.xlu0 %782
      %784 = vrot.lane.b32.xlu0 %v483, 4
      %v785 = vpop.permute.xlu0 %784
      %786 = vrot.lane.b32.xlu0 %v484, 4
      %v787 = vpop.permute.xlu0 %786
      %788 = vrot.lane.b32.xlu0 %v485, 4
      %v789 = vpop.permute.xlu0 %788
      %790 = vrot.lane.b32.xlu0 %v486, 4
      %v791 = vpop.permute.xlu0 %790
      %792 = vrot.lane.b32.xlu0 %v487, 4
      %v793 = vpop.permute.xlu0 %792
      %794 = vrot.lane.b32.xlu0 %v488, 4
      %v795 = vpop.permute.xlu0 %794
      %796 = vrot.lane.b32.xlu0 %v489, 4
      %v797 = vpop.permute.xlu0 %796
      %798 = vrot.lane.b32.xlu0 %v490, 4
      %v799 = vpop.permute.xlu0 %798
      %800 = vrot.lane.b32.xlu0 %v491, 4
      %v801 = vpop.permute.xlu0 %800
      %802 = vrot.lane.b32.xlu0 %v492, 4
      %v803 = vpop.permute.xlu0 %802
      %804 = vrot.lane.b32.xlu0 %v493, 4
      %v805 = vpop.permute.xlu0 %804
      %806 = vrot.lane.b32.xlu0 %v494, 4
      %v807 = vpop.permute.xlu0 %806
      %808 = vrot.lane.b32.xlu0 %v495, 4
      %v809 = vpop.permute.xlu0 %808
      %810 = vrot.lane.b32.xlu0 %v496, 4
      %v811 = vpop.permute.xlu0 %810
      %812 = vrot.lane.b32.xlu0 %v497, 4
      %v813 = vpop.permute.xlu0 %812
      %814 = vrot.lane.b32.xlu0 %v498, 4
      %v815 = vpop.permute.xlu0 %814
      %816 = vrot.lane.b32.xlu0 %v499, 4
      %v817 = vpop.permute.xlu0 %816
      %818 = vrot.lane.b32.xlu0 %v500, 4
      %v819 = vpop.permute.xlu0 %818
      %820 = vrot.lane.b32.xlu0 %v501, 4
      %v821 = vpop.permute.xlu0 %820
      %822 = vrot.lane.b32.xlu0 %v502, 4
      %v823 = vpop.permute.xlu0 %822
      %824 = vrot.lane.b32.xlu0 %v503, 4
      %v825 = vpop.permute.xlu0 %824
      %826 = vrot.lane.b32.xlu0 %v504, 4
      %v827 = vpop.permute.xlu0 %826
      %828 = vrot.lane.b32.xlu0 %v505, 4
      %v829 = vpop.permute.xlu0 %828
      %830 = vrot.lane.b32.xlu0 %v506, 4
      %v831 = vpop.permute.xlu0 %830
      %832 = vrot.lane.b32.xlu0 %v507, 4
      %v833 = vpop.permute.xlu0 %832
      %834 = vrot.lane.b32.xlu0 %v508, 4
      %v835 = vpop.permute.xlu0 %834
      %836 = vrot.lane.b32.xlu0 %v509, 4
      %v837 = vpop.permute.xlu0 %836
      %838 = vrot.lane.b32.xlu0 %v510, 4
      %v839 = vpop.permute.xlu0 %838
      %840 = vrot.lane.b32.xlu0 %v511, 4
      %v841 = vpop.permute.xlu0 %840
      %842 = vrot.lane.b32.xlu0 %v512, 4
      %v843 = vpop.permute.xlu0 %842
      %844 = vrot.lane.b32.xlu0 %v513, 4
      %v845 = vpop.permute.xlu0 %844
      %846 = vrot.lane.b32.xlu0 %v514, 4
      %v847 = vpop.permute.xlu0 %846
      %848 = vrot.lane.b32.xlu0 %v515, 4
      %v849 = vpop.permute.xlu0 %848
      %932 = vrot.lane.b32.xlu0 %v516, 8
      %v933 = vpop.permute.xlu0 %932
      %934 = vrot.lane.b32.xlu0 %v517, 8
      %v935 = vpop.permute.xlu0 %934
      %936 = vrot.lane.b32.xlu0 %v518, 8
      %v937 = vpop.permute.xlu0 %936
      %938 = vrot.lane.b32.xlu0 %v519, 8
      %v939 = vpop.permute.xlu0 %938
      %940 = vrot.lane.b32.xlu0 %v520, 8
      %v941 = vpop.permute.xlu0 %940
      %942 = vrot.lane.b32.xlu0 %v521, 8
      %v943 = vpop.permute.xlu0 %942
      %944 = vrot.lane.b32.xlu0 %v522, 8
      %v945 = vpop.permute.xlu0 %944
      %946 = vrot.lane.b32.xlu0 %v523, 8
      %v947 = vpop.permute.xlu0 %946
      %948 = vrot.lane.b32.xlu0 %v524, 8
      %v949 = vpop.permute.xlu0 %948
      %950 = vrot.lane.b32.xlu0 %v525, 8
      %v951 = vpop.permute.xlu0 %950
      %952 = vrot.lane.b32.xlu0 %v526, 8
      %v953 = vpop.permute.xlu0 %952
      %954 = vrot.lane.b32.xlu0 %v527, 8
      %v955 = vpop.permute.xlu0 %954
      %956 = vrot.lane.b32.xlu0 %v528, 8
      %v957 = vpop.permute.xlu0 %956
      %958 = vrot.lane.b32.xlu0 %v529, 8
      %v959 = vpop.permute.xlu0 %958
      %960 = vrot.lane.b32.xlu0 %v530, 8
      %v961 = vpop.permute.xlu0 %960
      %962 = vrot.lane.b32.xlu0 %v531, 8
      %v963 = vpop.permute.xlu0 %962
      %964 = vrot.lane.b32.xlu0 %v532, 8
      %v965 = vpop.permute.xlu0 %964
      %966 = vrot.lane.b32.xlu0 %v533, 8
      %v967 = vpop.permute.xlu0 %966
      %968 = vrot.lane.b32.xlu0 %v534, 8
      %v969 = vpop.permute.xlu0 %968
      %970 = vrot.lane.b32.xlu0 %v535, 8
      %v971 = vpop.permute.xlu0 %970
      %972 = vrot.lane.b32.xlu0 %v536, 8
      %v973 = vpop.permute.xlu0 %972
      %974 = vrot.lane.b32.xlu0 %v537, 8
      %v975 = vpop.permute.xlu0 %974
      %976 = vrot.lane.b32.xlu0 %v538, 8
      %v977 = vpop.permute.xlu0 %976
      %978 = vrot.lane.b32.xlu0 %v539, 8
      %v979 = vpop.permute.xlu0 %978
      %980 = vrot.lane.b32.xlu0 %v540, 8
      %v981 = vpop.permute.xlu0 %980
      %982 = vrot.lane.b32.xlu0 %v541, 8
      %v983 = vpop.permute.xlu0 %982
      %984 = vrot.lane.b32.xlu0 %v542, 8
      %v985 = vpop.permute.xlu0 %984
      %986 = vrot.lane.b32.xlu0 %v543, 8
      %v987 = vpop.permute.xlu0 %986
      %988 = vrot.lane.b32.xlu0 %v544, 8
      %v989 = vpop.permute.xlu0 %988
      %990 = vrot.lane.b32.xlu0 %v545, 8
      %v991 = vpop.permute.xlu0 %990
      %992 = vrot.lane.b32.xlu0 %v546, 8
      %v993 = vpop.permute.xlu0 %992
      %994 = vrot.lane.b32.xlu0 %v547, 8
      %v995 = vpop.permute.xlu0 %994
      %996 = vrot.lane.b32.xlu0 %v548, 8
      %v997 = vpop.permute.xlu0 %996
      %998 = vrot.lane.b32.xlu0 %v549, 8
      %v999 = vpop.permute.xlu0 %998
      %1000 = vrot.lane.b32.xlu0 %v550, 8
      %v1001 = vpop.permute.xlu0 %1000
      %1002 = vrot.lane.b32.xlu0 %v551, 8
      %v1003 = vpop.permute.xlu0 %1002
      %1004 = vrot.lane.b32.xlu0 %v552, 8
      %v1005 = vpop.permute.xlu0 %1004
      %1006 = vrot.lane.b32.xlu0 %v553, 8
      %v1007 = vpop.permute.xlu0 %1006
      %1008 = vrot.lane.b32.xlu0 %v554, 8
      %v1009 = vpop.permute.xlu0 %1008
      %1010 = vrot.lane.b32.xlu0 %v555, 8
      %v1011 = vpop.permute.xlu0 %1010
      %1012 = vrot.lane.b32.xlu0 %v556, 8
      %v1013 = vpop.permute.xlu0 %1012
      %1058 = vrot.lane.b32.xlu0 %v518, 12
      %v1059 = vpop.permute.xlu0 %1058
      %1060 = vrot.lane.b32.xlu0 %v519, 12
      %v1061 = vpop.permute.xlu0 %1060
      %1062 = vrot.lane.b32.xlu0 %v520, 12
      %v1063 = vpop.permute.xlu0 %1062
      %1064 = vrot.lane.b32.xlu0 %v521, 12
      %v1065 = vpop.permute.xlu0 %1064
      %1066 = vrot.lane.b32.xlu0 %v522, 12
      %v1067 = vpop.permute.xlu0 %1066
      %1068 = vrot.lane.b32.xlu0 %v523, 12
      %v1069 = vpop.permute.xlu0 %1068
      %1070 = vrot.lane.b32.xlu0 %v524, 12
      %v1071 = vpop.permute.xlu0 %1070
      %1072 = vrot.lane.b32.xlu0 %v525, 12
      %v1073 = vpop.permute.xlu0 %1072
      %1074 = vrot.lane.b32.xlu0 %v526, 12
      %v1075 = vpop.permute.xlu0 %1074
      %1076 = vrot.lane.b32.xlu0 %v527, 12
      %v1077 = vpop.permute.xlu0 %1076
      %1078 = vrot.lane.b32.xlu0 %v528, 12
      %v1079 = vpop.permute.xlu0 %1078
      %1080 = vrot.lane.b32.xlu0 %v529, 12
      %v1081 = vpop.permute.xlu0 %1080
      %1082 = vrot.lane.b32.xlu0 %v530, 12
      %v1083 = vpop.permute.xlu0 %1082
      %1084 = vrot.lane.b32.xlu0 %v531, 12
      %v1085 = vpop.permute.xlu0 %1084
      %1086 = vrot.lane.b32.xlu0 %v532, 12
      %v1087 = vpop.permute.xlu0 %1086
      %1088 = vrot.lane.b32.xlu0 %v533, 12
      %v1089 = vpop.permute.xlu0 %1088
      %1090 = vrot.lane.b32.xlu0 %v534, 12
      %v1091 = vpop.permute.xlu0 %1090
      %1092 = vrot.lane.b32.xlu0 %v535, 12
      %v1093 = vpop.permute.xlu0 %1092
      %1094 = vrot.lane.b32.xlu0 %v536, 12
      %v1095 = vpop.permute.xlu0 %1094
      %1096 = vrot.lane.b32.xlu0 %v537, 12
      %v1097 = vpop.permute.xlu0 %1096
      %1098 = vrot.lane.b32.xlu0 %v538, 12
      %v1099 = vpop.permute.xlu0 %1098
      %1100 = vrot.lane.b32.xlu0 %v539, 12
      %v1101 = vpop.permute.xlu0 %1100
      %1102 = vrot.lane.b32.xlu0 %v540, 12
      %v1103 = vpop.permute.xlu0 %1102
      %1104 = vrot.lane.b32.xlu0 %v541, 12
      %v1105 = vpop.permute.xlu0 %1104
      %1106 = vrot.lane.b32.xlu0 %v542, 12
      %v1107 = vpop.permute.xlu0 %1106
      %1108 = vrot.lane.b32.xlu0 %v543, 12
      %v1109 = vpop.permute.xlu0 %1108
      %1110 = vrot.lane.b32.xlu0 %v544, 12
      %v1111 = vpop.permute.xlu0 %1110
      %1112 = vrot.lane.b32.xlu0 %v545, 12
      %v1113 = vpop.permute.xlu0 %1112
      %1114 = vrot.lane.b32.xlu0 %v546, 12
      %v1115 = vpop.permute.xlu0 %1114
      %1116 = vrot.lane.b32.xlu0 %v547, 12
      %v1117 = vpop.permute.xlu0 %1116
      %1118 = vrot.lane.b32.xlu0 %v548, 12
      %v1119 = vpop.permute.xlu0 %1118
      %1120 = vrot.lane.b32.xlu0 %v549, 12
      %v1121 = vpop.permute.xlu0 %1120
      %1122 = vrot.lane.b32.xlu0 %v550, 12
      %v1123 = vpop.permute.xlu0 %1122
      %1124 = vrot.lane.b32.xlu0 %v551, 12
      %v1125 = vpop.permute.xlu0 %1124
      %1126 = vrot.lane.b32.xlu0 %v552, 12
      %v1127 = vpop.permute.xlu0 %1126
      %1128 = vrot.lane.b32.xlu0 %v553, 12
      %v1129 = vpop.permute.xlu0 %1128
      %1130 = vrot.lane.b32.xlu0 %v554, 12
      %v1131 = vpop.permute.xlu0 %1130
      %1132 = vrot.lane.b32.xlu0 %v555, 12
      %v1133 = vpop.permute.xlu0 %1132
      %1134 = vrot.lane.b32.xlu0 %v557, 12
      %v1135 = vpop.permute.xlu0 %1134
      %1136 = vrot.lane.b32.xlu0 %v558, 12
      %v1137 = vpop.permute.xlu0 %1136
      %1138 = vrot.lane.b32.xlu0 %v559, 12
      %v1139 = vpop.permute.xlu0 %1138
      %1222 = vrot.lane.b32.xlu0 %v560, 16
      %v1223 = vpop.permute.xlu0 %1222
      %1224 = vrot.lane.b32.xlu0 %v561, 16
      %v1225 = vpop.permute.xlu0 %1224
      %1226 = vrot.lane.b32.xlu0 %v562, 16
      %v1227 = vpop.permute.xlu0 %1226
      %1228 = vrot.lane.b32.xlu0 %v563, 16
      %v1229 = vpop.permute.xlu0 %1228
      %1230 = vrot.lane.b32.xlu0 %v564, 16
      %v1231 = vpop.permute.xlu0 %1230
      %1232 = vrot.lane.b32.xlu0 %v565, 16
      %v1233 = vpop.permute.xlu0 %1232
      %1234 = vrot.lane.b32.xlu0 %v566, 16
      %v1235 = vpop.permute.xlu0 %1234
      %1236 = vrot.lane.b32.xlu0 %v567, 16
      %v1237 = vpop.permute.xlu0 %1236
      %1238 = vrot.lane.b32.xlu0 %v568, 16
      %v1239 = vpop.permute.xlu0 %1238
      %1240 = vrot.lane.b32.xlu0 %v569, 16
      %v1241 = vpop.permute.xlu0 %1240
      %1242 = vrot.lane.b32.xlu0 %v570, 16
      %v1243 = vpop.permute.xlu0 %1242
      %1244 = vrot.lane.b32.xlu0 %v571, 16
      %v1245 = vpop.permute.xlu0 %1244
      %1246 = vrot.lane.b32.xlu0 %v572, 16
      %v1247 = vpop.permute.xlu0 %1246
      %1248 = vrot.lane.b32.xlu0 %v573, 16
      %v1249 = vpop.permute.xlu0 %1248
      %1250 = vrot.lane.b32.xlu0 %v574, 16
      %v1251 = vpop.permute.xlu0 %1250
      %1252 = vrot.lane.b32.xlu0 %v575, 16
      %v1253 = vpop.permute.xlu0 %1252
      %1254 = vrot.lane.b32.xlu0 %v576, 16
      %v1255 = vpop.permute.xlu0 %1254
      %1256 = vrot.lane.b32.xlu0 %v577, 16
      %v1257 = vpop.permute.xlu0 %1256
      %1258 = vrot.lane.b32.xlu0 %v578, 16
      %v1259 = vpop.permute.xlu0 %1258
      %1260 = vrot.lane.b32.xlu0 %v579, 16
      %v1261 = vpop.permute.xlu0 %1260
      %1262 = vrot.lane.b32.xlu0 %v580, 16
      %v1263 = vpop.permute.xlu0 %1262
      %1264 = vrot.lane.b32.xlu0 %v581, 16
      %v1265 = vpop.permute.xlu0 %1264
      %1266 = vrot.lane.b32.xlu0 %v582, 16
      %v1267 = vpop.permute.xlu0 %1266
      %1268 = vrot.lane.b32.xlu0 %v583, 16
      %v1269 = vpop.permute.xlu0 %1268
      %1270 = vrot.lane.b32.xlu0 %v584, 16
      %v1271 = vpop.permute.xlu0 %1270
      %1272 = vrot.lane.b32.xlu0 %v585, 16
      %v1273 = vpop.permute.xlu0 %1272
      %1274 = vrot.lane.b32.xlu0 %v586, 16
      %v1275 = vpop.permute.xlu0 %1274
      %1276 = vrot.lane.b32.xlu0 %v587, 16
      %v1277 = vpop.permute.xlu0 %1276
      %1278 = vrot.lane.b32.xlu0 %v588, 16
      %v1279 = vpop.permute.xlu0 %1278
      %1280 = vrot.lane.b32.xlu0 %v589, 16
      %v1281 = vpop.permute.xlu0 %1280
      %1282 = vrot.lane.b32.xlu0 %v590, 16
      %v1283 = vpop.permute.xlu0 %1282
      %1284 = vrot.lane.b32.xlu0 %v591, 16
      %v1285 = vpop.permute.xlu0 %1284
      %1286 = vrot.lane.b32.xlu0 %v592, 16
      %v1287 = vpop.permute.xlu0 %1286
      %1288 = vrot.lane.b32.xlu0 %v593, 16
      %v1289 = vpop.permute.xlu0 %1288
      %1290 = vrot.lane.b32.xlu0 %v594, 16
      %v1291 = vpop.permute.xlu0 %1290
      %1292 = vrot.lane.b32.xlu0 %v595, 16
      %v1293 = vpop.permute.xlu0 %1292
      %1294 = vrot.lane.b32.xlu0 %v596, 16
      %v1295 = vpop.permute.xlu0 %1294
      %1296 = vrot.lane.b32.xlu0 %v597, 16
      %v1297 = vpop.permute.xlu0 %1296
      %1298 = vrot.lane.b32.xlu0 %v598, 16
      %v1299 = vpop.permute.xlu0 %1298
      %1300 = vrot.lane.b32.xlu0 %v599, 16
      %v1301 = vpop.permute.xlu0 %1300
      %1302 = vrot.lane.b32.xlu0 %v600, 16
      %v1303 = vpop.permute.xlu0 %1302
      %1386 = vrot.lane.b32.xlu0 %v601, 20
      %v1387 = vpop.permute.xlu0 %1386
      %1388 = vrot.lane.b32.xlu0 %v602, 20
      %v1389 = vpop.permute.xlu0 %1388
      %1390 = vrot.lane.b32.xlu0 %v603, 20
      %v1391 = vpop.permute.xlu0 %1390
      %1392 = vrot.lane.b32.xlu0 %v604, 20
      %v1393 = vpop.permute.xlu0 %1392
      %1394 = vrot.lane.b32.xlu0 %v605, 20
      %v1395 = vpop.permute.xlu0 %1394
      %1396 = vrot.lane.b32.xlu0 %v606, 20
      %v1397 = vpop.permute.xlu0 %1396
      %1398 = vrot.lane.b32.xlu0 %v607, 20
      %v1399 = vpop.permute.xlu0 %1398
      %1400 = vrot.lane.b32.xlu0 %v608, 20
      %v1401 = vpop.permute.xlu0 %1400
      %1402 = vrot.lane.b32.xlu0 %v609, 20
      %v1403 = vpop.permute.xlu0 %1402
      %1404 = vrot.lane.b32.xlu0 %v610, 20
      %v1405 = vpop.permute.xlu0 %1404
      %1406 = vrot.lane.b32.xlu0 %v611, 20
      %v1407 = vpop.permute.xlu0 %1406
      %1408 = vrot.lane.b32.xlu0 %v612, 20
      %v1409 = vpop.permute.xlu0 %1408
      %1410 = vrot.lane.b32.xlu0 %v613, 20
      %v1411 = vpop.permute.xlu0 %1410
      %1412 = vrot.lane.b32.xlu0 %v614, 20
      %v1413 = vpop.permute.xlu0 %1412
      %1414 = vrot.lane.b32.xlu0 %v615, 20
      %v1415 = vpop.permute.xlu0 %1414
      %1416 = vrot.lane.b32.xlu0 %v616, 20
      %v1417 = vpop.permute.xlu0 %1416
      %1418 = vrot.lane.b32.xlu0 %v617, 20
      %v1419 = vpop.permute.xlu0 %1418
      %1420 = vrot.lane.b32.xlu0 %v618, 20
      %v1421 = vpop.permute.xlu0 %1420
      %1422 = vrot.lane.b32.xlu0 %v619, 20
      %v1423 = vpop.permute.xlu0 %1422
      %1424 = vrot.lane.b32.xlu0 %v620, 20
      %v1425 = vpop.permute.xlu0 %1424
      %1426 = vrot.lane.b32.xlu0 %v621, 20
      %v1427 = vpop.permute.xlu0 %1426
      %1428 = vrot.lane.b32.xlu0 %v622, 20
      %v1429 = vpop.permute.xlu0 %1428
      %1430 = vrot.lane.b32.xlu0 %v623, 20
      %v1431 = vpop.permute.xlu0 %1430
      %1432 = vrot.lane.b32.xlu0 %v624, 20
      %v1433 = vpop.permute.xlu0 %1432
      %1434 = vrot.lane.b32.xlu0 %v625, 20
      %v1435 = vpop.permute.xlu0 %1434
      %1436 = vrot.lane.b32.xlu0 %v626, 20
      %v1437 = vpop.permute.xlu0 %1436
      %1438 = vrot.lane.b32.xlu0 %v627, 20
      %v1439 = vpop.permute.xlu0 %1438
      %1440 = vrot.lane.b32.xlu0 %v628, 20
      %v1441 = vpop.permute.xlu0 %1440
      %1442 = vrot.lane.b32.xlu0 %v629, 20
      %v1443 = vpop.permute.xlu0 %1442
      %1444 = vrot.lane.b32.xlu0 %v630, 20
      %v1445 = vpop.permute.xlu0 %1444
      %1446 = vrot.lane.b32.xlu0 %v631, 20
      %v1447 = vpop.permute.xlu0 %1446
      %1448 = vrot.lane.b32.xlu0 %v632, 20
      %v1449 = vpop.permute.xlu0 %1448
      %1450 = vrot.lane.b32.xlu0 %v633, 20
      %v1451 = vpop.permute.xlu0 %1450
      %1452 = vrot.lane.b32.xlu0 %v634, 20
      %v1453 = vpop.permute.xlu0 %1452
      %1454 = vrot.lane.b32.xlu0 %v635, 20
      %v1455 = vpop.permute.xlu0 %1454
      %1456 = vrot.lane.b32.xlu0 %v636, 20
      %v1457 = vpop.permute.xlu0 %1456
      %1458 = vrot.lane.b32.xlu0 %v637, 20
      %v1459 = vpop.permute.xlu0 %1458
      %1460 = vrot.lane.b32.xlu0 %v638, 20
      %v1461 = vpop.permute.xlu0 %1460
      %1462 = vrot.lane.b32.xlu0 %v639, 20
      %v1463 = vpop.permute.xlu0 %1462
      %1464 = vrot.lane.b32.xlu0 %v640, 20
      %v1465 = vpop.permute.xlu0 %1464
      %1466 = vrot.lane.b32.xlu0 %v641, 20
      %v1467 = vpop.permute.xlu0 %1466
      %1512 = vrot.lane.b32.xlu0 %v603, 24
      %v1513 = vpop.permute.xlu0 %1512
      %1514 = vrot.lane.b32.xlu0 %v604, 24
      %v1515 = vpop.permute.xlu0 %1514
      %1516 = vrot.lane.b32.xlu0 %v605, 24
      %v1517 = vpop.permute.xlu0 %1516
      %1518 = vrot.lane.b32.xlu0 %v606, 24
      %v1519 = vpop.permute.xlu0 %1518
      %1520 = vrot.lane.b32.xlu0 %v607, 24
      %v1521 = vpop.permute.xlu0 %1520
      %1522 = vrot.lane.b32.xlu0 %v608, 24
      %v1523 = vpop.permute.xlu0 %1522
      %1524 = vrot.lane.b32.xlu0 %v609, 24
      %v1525 = vpop.permute.xlu0 %1524
      %1526 = vrot.lane.b32.xlu0 %v610, 24
      %v1527 = vpop.permute.xlu0 %1526
      %1528 = vrot.lane.b32.xlu0 %v611, 24
      %v1529 = vpop.permute.xlu0 %1528
      %1530 = vrot.lane.b32.xlu0 %v612, 24
      %v1531 = vpop.permute.xlu0 %1530
      %1532 = vrot.lane.b32.xlu0 %v613, 24
      %v1533 = vpop.permute.xlu0 %1532
      %1534 = vrot.lane.b32.xlu0 %v614, 24
      %v1535 = vpop.permute.xlu0 %1534
      %1536 = vrot.lane.b32.xlu0 %v615, 24
      %v1537 = vpop.permute.xlu0 %1536
      %1538 = vrot.lane.b32.xlu0 %v616, 24
      %v1539 = vpop.permute.xlu0 %1538
      %1540 = vrot.lane.b32.xlu0 %v617, 24
      %v1541 = vpop.permute.xlu0 %1540
      %1542 = vrot.lane.b32.xlu0 %v618, 24
      %v1543 = vpop.permute.xlu0 %1542
      %1544 = vrot.lane.b32.xlu0 %v619, 24
      %v1545 = vpop.permute.xlu0 %1544
      %1546 = vrot.lane.b32.xlu0 %v620, 24
      %v1547 = vpop.permute.xlu0 %1546
      %1548 = vrot.lane.b32.xlu0 %v621, 24
      %v1549 = vpop.permute.xlu0 %1548
      %1550 = vrot.lane.b32.xlu0 %v622, 24
      %v1551 = vpop.permute.xlu0 %1550
      %1552 = vrot.lane.b32.xlu0 %v623, 24
      %v1553 = vpop.permute.xlu0 %1552
      %1554 = vrot.lane.b32.xlu0 %v624, 24
      %v1555 = vpop.permute.xlu0 %1554
      %1556 = vrot.lane.b32.xlu0 %v625, 24
      %v1557 = vpop.permute.xlu0 %1556
      %1558 = vrot.lane.b32.xlu0 %v626, 24
      %v1559 = vpop.permute.xlu0 %1558
      %1560 = vrot.lane.b32.xlu0 %v627, 24
      %v1561 = vpop.permute.xlu0 %1560
      %1562 = vrot.lane.b32.xlu0 %v628, 24
      %v1563 = vpop.permute.xlu0 %1562
      %1564 = vrot.lane.b32.xlu0 %v629, 24
      %v1565 = vpop.permute.xlu0 %1564
      %1566 = vrot.lane.b32.xlu0 %v630, 24
      %v1567 = vpop.permute.xlu0 %1566
      %1568 = vrot.lane.b32.xlu0 %v631, 24
      %v1569 = vpop.permute.xlu0 %1568
      %1570 = vrot.lane.b32.xlu0 %v632, 24
      %v1571 = vpop.permute.xlu0 %1570
      %1572 = vrot.lane.b32.xlu0 %v633, 24
      %v1573 = vpop.permute.xlu0 %1572
      %1574 = vrot.lane.b32.xlu0 %v634, 24
      %v1575 = vpop.permute.xlu0 %1574
      %1576 = vrot.lane.b32.xlu0 %v635, 24
      %v1577 = vpop.permute.xlu0 %1576
      %1578 = vrot.lane.b32.xlu0 %v636, 24
      %v1579 = vpop.permute.xlu0 %1578
      %1580 = vrot.lane.b32.xlu0 %v637, 24
      %v1581 = vpop.permute.xlu0 %1580
      %1582 = vrot.lane.b32.xlu0 %v638, 24
      %v1583 = vpop.permute.xlu0 %1582
      %1584 = vrot.lane.b32.xlu0 %v639, 24
      %v1585 = vpop.permute.xlu0 %1584
      %1586 = vrot.lane.b32.xlu0 %v640, 24
      %v1587 = vpop.permute.xlu0 %1586
      %1588 = vrot.lane.b32.xlu0 %v642, 24
      %v1589 = vpop.permute.xlu0 %1588
      %1590 = vrot.lane.b32.xlu0 %v643, 24
      %v1591 = vpop.permute.xlu0 %1590
      %1592 = vrot.lane.b32.xlu0 %v644, 24
      %v1593 = vpop.permute.xlu0 %1592
      %1676 = vrot.lane.b32.xlu0 %v645, 28
      %v1677 = vpop.permute.xlu0 %1676
      %1678 = vrot.lane.b32.xlu0 %v646, 28
      %v1679 = vpop.permute.xlu0 %1678
      %1680 = vrot.lane.b32.xlu0 %v647, 28
      %v1681 = vpop.permute.xlu0 %1680
      %1682 = vrot.lane.b32.xlu0 %v648, 28
      %v1683 = vpop.permute.xlu0 %1682
      %1684 = vrot.lane.b32.xlu0 %v649, 28
      %v1685 = vpop.permute.xlu0 %1684
      %1686 = vrot.lane.b32.xlu0 %v650, 28
      %v1687 = vpop.permute.xlu0 %1686
      %1688 = vrot.lane.b32.xlu0 %v651, 28
      %v1689 = vpop.permute.xlu0 %1688
      %1690 = vrot.lane.b32.xlu0 %v652, 28
      %v1691 = vpop.permute.xlu0 %1690
      %1692 = vrot.lane.b32.xlu0 %v653, 28
      %v1693 = vpop.permute.xlu0 %1692
      %1694 = vrot.lane.b32.xlu0 %v654, 28
      %v1695 = vpop.permute.xlu0 %1694
      %1696 = vrot.lane.b32.xlu0 %v655, 28
      %v1697 = vpop.permute.xlu0 %1696
      %1698 = vrot.lane.b32.xlu0 %v656, 28
      %v1699 = vpop.permute.xlu0 %1698
      %1700 = vrot.lane.b32.xlu0 %v657, 28
      %v1701 = vpop.permute.xlu0 %1700
      %1702 = vrot.lane.b32.xlu0 %v658, 28
      %v1703 = vpop.permute.xlu0 %1702
      %1704 = vrot.lane.b32.xlu0 %v659, 28
      %v1705 = vpop.permute.xlu0 %1704
      %1706 = vrot.lane.b32.xlu0 %v660, 28
      %v1707 = vpop.permute.xlu0 %1706
      %1708 = vrot.lane.b32.xlu0 %v661, 28
      %v1709 = vpop.permute.xlu0 %1708
      %1710 = vrot.lane.b32.xlu0 %v662, 28
      %v1711 = vpop.permute.xlu0 %1710
      %1712 = vrot.lane.b32.xlu0 %v663, 28
      %v1713 = vpop.permute.xlu0 %1712
      %1714 = vrot.lane.b32.xlu0 %v664, 28
      %v1715 = vpop.permute.xlu0 %1714
      %1716 = vrot.lane.b32.xlu0 %v665, 28
      %v1717 = vpop.permute.xlu0 %1716
      %1718 = vrot.lane.b32.xlu0 %v666, 28
      %v1719 = vpop.permute.xlu0 %1718
      %1720 = vrot.lane.b32.xlu0 %v667, 28
      %v1721 = vpop.permute.xlu0 %1720
      %1722 = vrot.lane.b32.xlu0 %v668, 28
      %v1723 = vpop.permute.xlu0 %1722
      %1724 = vrot.lane.b32.xlu0 %v669, 28
      %v1725 = vpop.permute.xlu0 %1724
      %1726 = vrot.lane.b32.xlu0 %v670, 28
      %v1727 = vpop.permute.xlu0 %1726
      %1728 = vrot.lane.b32.xlu0 %v671, 28
      %v1729 = vpop.permute.xlu0 %1728
      %1730 = vrot.lane.b32.xlu0 %v672, 28
      %v1731 = vpop.permute.xlu0 %1730
      %1732 = vrot.lane.b32.xlu0 %v673, 28
      %v1733 = vpop.permute.xlu0 %1732
      %1734 = vrot.lane.b32.xlu0 %v674, 28
      %v1735 = vpop.permute.xlu0 %1734
      %1736 = vrot.lane.b32.xlu0 %v675, 28
      %v1737 = vpop.permute.xlu0 %1736
      %1738 = vrot.lane.b32.xlu0 %v676, 28
      %v1739 = vpop.permute.xlu0 %1738
      %1740 = vrot.lane.b32.xlu0 %v677, 28
      %v1741 = vpop.permute.xlu0 %1740
      %1742 = vrot.lane.b32.xlu0 %v678, 28
      %v1743 = vpop.permute.xlu0 %1742
      %1744 = vrot.lane.b32.xlu0 %v679, 28
      %v1745 = vpop.permute.xlu0 %1744
      %1746 = vrot.lane.b32.xlu0 %v680, 28
      %v1747 = vpop.permute.xlu0 %1746
      %1748 = vrot.lane.b32.xlu0 %v681, 28
      %v1749 = vpop.permute.xlu0 %1748
      %1750 = vrot.lane.b32.xlu0 %v682, 28
      %v1751 = vpop.permute.xlu0 %1750
      %1752 = vrot.lane.b32.xlu0 %v683, 28
      %v1753 = vpop.permute.xlu0 %1752
      %1754 = vrot.lane.b32.xlu0 %v684, 28
      %v1755 = vpop.permute.xlu0 %1754
      %1756 = vrot.lane.b32.xlu0 %v685, 28
      %v1757 = vpop.permute.xlu0 %1756
      %1840 = vrot.lane.b32.xlu0 %v686, 32
      %v1841 = vpop.permute.xlu0 %1840
      %1842 = vrot.lane.b32.xlu0 %v687, 32
      %v1843 = vpop.permute.xlu0 %1842
      %1844 = vrot.lane.b32.xlu0 %v688, 32
      %v1845 = vpop.permute.xlu0 %1844
      %1846 = vrot.lane.b32.xlu0 %v689, 32
      %v1847 = vpop.permute.xlu0 %1846
      %1848 = vrot.lane.b32.xlu0 %v690, 32
      %v1849 = vpop.permute.xlu0 %1848
      %1850 = vrot.lane.b32.xlu0 %v691, 32
      %v1851 = vpop.permute.xlu0 %1850
      %1852 = vrot.lane.b32.xlu0 %v692, 32
      %v1853 = vpop.permute.xlu0 %1852
      %1854 = vrot.lane.b32.xlu0 %v693, 32
      %v1855 = vpop.permute.xlu0 %1854
      %1856 = vrot.lane.b32.xlu0 %v694, 32
      %v1857 = vpop.permute.xlu0 %1856
      %1858 = vrot.lane.b32.xlu0 %v695, 32
      %v1859 = vpop.permute.xlu0 %1858
      %1860 = vrot.lane.b32.xlu0 %v696, 32
      %v1861 = vpop.permute.xlu0 %1860
      %1862 = vrot.lane.b32.xlu0 %v697, 32
      %v1863 = vpop.permute.xlu0 %1862
      %1864 = vrot.lane.b32.xlu0 %v698, 32
      %v1865 = vpop.permute.xlu0 %1864
      %1866 = vrot.lane.b32.xlu0 %v699, 32
      %v1867 = vpop.permute.xlu0 %1866
      %1868 = vrot.lane.b32.xlu0 %v700, 32
      %v1869 = vpop.permute.xlu0 %1868
      %1870 = vrot.lane.b32.xlu0 %v701, 32
      %v1871 = vpop.permute.xlu0 %1870
      %1872 = vrot.lane.b32.xlu0 %v702, 32
      %v1873 = vpop.permute.xlu0 %1872
      %1874 = vrot.lane.b32.xlu0 %v703, 32
      %v1875 = vpop.permute.xlu0 %1874
      %1876 = vrot.lane.b32.xlu0 %v704, 32
      %v1877 = vpop.permute.xlu0 %1876
      %1878 = vrot.lane.b32.xlu0 %v705, 32
      %v1879 = vpop.permute.xlu0 %1878
      %1880 = vrot.lane.b32.xlu0 %v706, 32
      %v1881 = vpop.permute.xlu0 %1880
      %1882 = vrot.lane.b32.xlu0 %v707, 32
      %v1883 = vpop.permute.xlu0 %1882
      %1884 = vrot.lane.b32.xlu0 %v708, 32
      %v1885 = vpop.permute.xlu0 %1884
      %1886 = vrot.lane.b32.xlu0 %v709, 32
      %v1887 = vpop.permute.xlu0 %1886
      %1888 = vrot.lane.b32.xlu0 %v710, 32
      %v1889 = vpop.permute.xlu0 %1888
      %1890 = vrot.lane.b32.xlu0 %v711, 32
      %v1891 = vpop.permute.xlu0 %1890
      %1892 = vrot.lane.b32.xlu0 %v712, 32
      %v1893 = vpop.permute.xlu0 %1892
      %1894 = vrot.lane.b32.xlu0 %v713, 32
      %v1895 = vpop.permute.xlu0 %1894
      %1896 = vrot.lane.b32.xlu0 %v714, 32
      %v1897 = vpop.permute.xlu0 %1896
      %1898 = vrot.lane.b32.xlu0 %v715, 32
      %v1899 = vpop.permute.xlu0 %1898
      %1900 = vrot.lane.b32.xlu0 %v716, 32
      %v1901 = vpop.permute.xlu0 %1900
      %1902 = vrot.lane.b32.xlu0 %v717, 32
      %v1903 = vpop.permute.xlu0 %1902
      %1904 = vrot.lane.b32.xlu0 %v718, 32
      %v1905 = vpop.permute.xlu0 %1904
      %1906 = vrot.lane.b32.xlu0 %v719, 32
      %v1907 = vpop.permute.xlu0 %1906
      %1908 = vrot.lane.b32.xlu0 %v720, 32
      %v1909 = vpop.permute.xlu0 %1908
      %1910 = vrot.lane.b32.xlu0 %v721, 32
      %v1911 = vpop.permute.xlu0 %1910
      %1912 = vrot.lane.b32.xlu0 %v722, 32
      %v1913 = vpop.permute.xlu0 %1912
      %1914 = vrot.lane.b32.xlu0 %v723, 32
      %v1915 = vpop.permute.xlu0 %1914
      %1916 = vrot.lane.b32.xlu0 %v724, 32
      %v1917 = vpop.permute.xlu0 %1916
      %1918 = vrot.lane.b32.xlu0 %v725, 32
      %v1919 = vpop.permute.xlu0 %1918
      %1920 = vrot.lane.b32.xlu0 %v726, 32
      %v1921 = vpop.permute.xlu0 %1920
      %v1963 = vsel %vm307, %v434, %v769
      %v1964 = vsel %vm307, %v435, %v771
      %v1965 = vsel %vm307, %v436, %v773
      %v1966 = vsel %vm307, %v437, %v775
      %v1967 = vsel %vm307, %v438, %v777
      %v1968 = vsel %vm307, %v439, %v779
      %v1969 = vsel %vm307, %v440, %v781
      %v1970 = vsel %vm307, %v441, %v783
      %v1971 = vsel %vm307, %v442, %v785
      %v1972 = vsel %vm307, %v443, %v787
      %v1973 = vsel %vm307, %v444, %v789
      %v1974 = vsel %vm307, %v445, %v791
      %v1975 = vsel %vm307, %v446, %v793
      %v1976 = vsel %vm307, %v447, %v795
      %v1977 = vsel %vm307, %v448, %v797
      %v1978 = vsel %vm307, %v449, %v799
      %v1979 = vsel %vm307, %v450, %v801
      %v1980 = vsel %vm307, %v451, %v803
      %v1981 = vsel %vm307, %v452, %v805
      %v1982 = vsel %vm307, %v453, %v807
      %v1983 = vsel %vm307, %v454, %v809
      %v1984 = vsel %vm307, %v455, %v811
      %v1985 = vsel %vm307, %v456, %v813
      %v1986 = vsel %vm307, %v457, %v815
      %v1987 = vsel %vm307, %v458, %v817
      %v1988 = vsel %vm307, %v459, %v819
      %v1989 = vsel %vm307, %v460, %v821
      %v1990 = vsel %vm307, %v461, %v823
      %v1991 = vsel %vm307, %v462, %v825
      %v1992 = vsel %vm307, %v463, %v827
      %v1993 = vsel %vm307, %v464, %v829
      %v1994 = vsel %vm307, %v465, %v831
      %v1995 = vsel %vm307, %v466, %v833
      %v1996 = vsel %vm307, %v467, %v835
      %v1997 = vsel %vm307, %v468, %v837
      %v1998 = vsel %vm307, %v469, %v839
      %v1999 = vsel %vm307, %v470, %v841
      %v2000 = vsel %vm307, %v471, %v843
      %v2001 = vsel %vm307, %v472, %v845
      %v2002 = vsel %vm307, %v473, %v847
      %v2003 = vsel %vm307, %v474, %v849
      %vm2004 = vcmask 64512
      %v2005 = vsel %vm2004, %v1963, %v933
      %v2006 = vsel %vm2004, %v1964, %v935
      %v2007 = vsel %vm2004, %v1965, %v937
      %v2008 = vsel %vm2004, %v1966, %v939
      %v2009 = vsel %vm2004, %v1967, %v941
      %v2010 = vsel %vm2004, %v1968, %v943
      %v2011 = vsel %vm2004, %v1969, %v945
      %v2012 = vsel %vm2004, %v1970, %v947
      %v2013 = vsel %vm2004, %v1971, %v949
      %v2014 = vsel %vm2004, %v1972, %v951
      %v2015 = vsel %vm2004, %v1973, %v953
      %v2016 = vsel %vm2004, %v1974, %v955
      %v2017 = vsel %vm2004, %v1975, %v957
      %v2018 = vsel %vm2004, %v1976, %v959
      %v2019 = vsel %vm2004, %v1977, %v961
      %v2020 = vsel %vm2004, %v1978, %v963
      %v2021 = vsel %vm2004, %v1979, %v965
      %v2022 = vsel %vm2004, %v1980, %v967
      %v2023 = vsel %vm2004, %v1981, %v969
      %v2024 = vsel %vm2004, %v1982, %v971
      %v2025 = vsel %vm2004, %v1983, %v973
      %v2026 = vsel %vm2004, %v1984, %v975
      %v2027 = vsel %vm2004, %v1985, %v977
      %v2028 = vsel %vm2004, %v1986, %v979
      %v2029 = vsel %vm2004, %v1987, %v981
      %v2030 = vsel %vm2004, %v1988, %v983
      %v2031 = vsel %vm2004, %v1989, %v985
      %v2032 = vsel %vm2004, %v1990, %v987
      %v2033 = vsel %vm2004, %v1991, %v989
      %v2034 = vsel %vm2004, %v1992, %v991
      %v2035 = vsel %vm2004, %v1993, %v993
      %v2036 = vsel %vm2004, %v1994, %v995
      %v2037 = vsel %vm2004, %v1995, %v997
      %v2038 = vsel %vm2004, %v1996, %v999
      %v2039 = vsel %vm2004, %v1997, %v1001
      %v2040 = vsel %vm2004, %v1998, %v1003
      %v2041 = vsel %vm2004, %v1999, %v1005
      %v2042 = vsel %vm2004, %v2000, %v1007
      %v2043 = vsel %vm2004, %v2001, %v1009
      %v2044 = vsel %vm2004, %v2002, %v1011
      %v2045 = vsel %vm2004, %v2003, %v1013
      %vm2046 = vcmask 97280
      %v2047 = vsel %vm2046, %v2005, %v1059
      %v2048 = vsel %vm2046, %v2006, %v1061
      %v2049 = vsel %vm2046, %v2007, %v1063
      %v2050 = vsel %vm2046, %v2008, %v1065
      %v2051 = vsel %vm2046, %v2009, %v1067
      %v2052 = vsel %vm2046, %v2010, %v1069
      %v2053 = vsel %vm2046, %v2011, %v1071
      %v2054 = vsel %vm2046, %v2012, %v1073
      %v2055 = vsel %vm2046, %v2013, %v1075
      %v2056 = vsel %vm2046, %v2014, %v1077
      %v2057 = vsel %vm2046, %v2015, %v1079
      %v2058 = vsel %vm2046, %v2016, %v1081
      %v2059 = vsel %vm2046, %v2017, %v1083
      %v2060 = vsel %vm2046, %v2018, %v1085
      %v2061 = vsel %vm2046, %v2019, %v1087
      %v2062 = vsel %vm2046, %v2020, %v1089
      %v2063 = vsel %vm2046, %v2021, %v1091
      %v2064 = vsel %vm2046, %v2022, %v1093
      %v2065 = vsel %vm2046, %v2023, %v1095
      %v2066 = vsel %vm2046, %v2024, %v1097
      %v2067 = vsel %vm2046, %v2025, %v1099
      %v2068 = vsel %vm2046, %v2026, %v1101
      %v2069 = vsel %vm2046, %v2027, %v1103
      %v2070 = vsel %vm2046, %v2028, %v1105
      %v2071 = vsel %vm2046, %v2029, %v1107
      %v2072 = vsel %vm2046, %v2030, %v1109
      %v2073 = vsel %vm2046, %v2031, %v1111
      %v2074 = vsel %vm2046, %v2032, %v1113
      %v2075 = vsel %vm2046, %v2033, %v1115
      %v2076 = vsel %vm2046, %v2034, %v1117
      %v2077 = vsel %vm2046, %v2035, %v1119
      %v2078 = vsel %vm2046, %v2036, %v1121
      %v2079 = vsel %vm2046, %v2037, %v1123
      %v2080 = vsel %vm2046, %v2038, %v1125
      %v2081 = vsel %vm2046, %v2039, %v1127
      %v2082 = vsel %vm2046, %v2040, %v1129
      %v2083 = vsel %vm2046, %v2041, %v1131
      %v2084 = vsel %vm2046, %v2042, %v1133
      %v2085 = vsel %vm2046, %v2043, %v1135
      %v2086 = vsel %vm2046, %v2044, %v1137
      %v2087 = vsel %vm2046, %v2045, %v1139
      %vm2088 = vcmask 130048
      %v2089 = vsel %vm2088, %v2047, %v1223
      %v2090 = vsel %vm2088, %v2048, %v1225
      %v2091 = vsel %vm2088, %v2049, %v1227
      %v2092 = vsel %vm2088, %v2050, %v1229
      %v2093 = vsel %vm2088, %v2051, %v1231
      %v2094 = vsel %vm2088, %v2052, %v1233
      %v2095 = vsel %vm2088, %v2053, %v1235
      %v2096 = vsel %vm2088, %v2054, %v1237
      %v2097 = vsel %vm2088, %v2055, %v1239
      %v2098 = vsel %vm2088, %v2056, %v1241
      %v2099 = vsel %vm2088, %v2057, %v1243
      %v2100 = vsel %vm2088, %v2058, %v1245
      %v2101 = vsel %vm2088, %v2059, %v1247
      %v2102 = vsel %vm2088, %v2060, %v1249
      %v2103 = vsel %vm2088, %v2061, %v1251
      %v2104 = vsel %vm2088, %v2062, %v1253
      %v2105 = vsel %vm2088, %v2063, %v1255
      %v2106 = vsel %vm2088, %v2064, %v1257
      %v2107 = vsel %vm2088, %v2065, %v1259
      %v2108 = vsel %vm2088, %v2066, %v1261
      %v2109 = vsel %vm2088, %v2067, %v1263
      %v2110 = vsel %vm2088, %v2068, %v1265
      %v2111 = vsel %vm2088, %v2069, %v1267
      %v2112 = vsel %vm2088, %v2070, %v1269
      %v2113 = vsel %vm2088, %v2071, %v1271
      %v2114 = vsel %vm2088, %v2072, %v1273
      %v2115 = vsel %vm2088, %v2073, %v1275
      %v2116 = vsel %vm2088, %v2074, %v1277
      %v2117 = vsel %vm2088, %v2075, %v1279
      %v2118 = vsel %vm2088, %v2076, %v1281
      %v2119 = vsel %vm2088, %v2077, %v1283
      %v2120 = vsel %vm2088, %v2078, %v1285
      %v2121 = vsel %vm2088, %v2079, %v1287
      %v2122 = vsel %vm2088, %v2080, %v1289
      %v2123 = vsel %vm2088, %v2081, %v1291
      %v2124 = vsel %vm2088, %v2082, %v1293
      %v2125 = vsel %vm2088, %v2083, %v1295
      %v2126 = vsel %vm2088, %v2084, %v1297
      %v2127 = vsel %vm2088, %v2085, %v1299
      %v2128 = vsel %vm2088, %v2086, %v1301
      %v2129 = vsel %vm2088, %v2087, %v1303
      %vm2130 = vcmask 162816
      %v2131 = vsel %vm2130, %v2089, %v1387
      %v2132 = vsel %vm2130, %v2090, %v1389
      %v2133 = vsel %vm2130, %v2091, %v1391
      %v2134 = vsel %vm2130, %v2092, %v1393
      %v2135 = vsel %vm2130, %v2093, %v1395
      %v2136 = vsel %vm2130, %v2094, %v1397
      %v2137 = vsel %vm2130, %v2095, %v1399
      %v2138 = vsel %vm2130, %v2096, %v1401
      %v2139 = vsel %vm2130, %v2097, %v1403
      %v2140 = vsel %vm2130, %v2098, %v1405
      %v2141 = vsel %vm2130, %v2099, %v1407
      %v2142 = vsel %vm2130, %v2100, %v1409
      %v2143 = vsel %vm2130, %v2101, %v1411
      %v2144 = vsel %vm2130, %v2102, %v1413
      %v2145 = vsel %vm2130, %v2103, %v1415
      %v2146 = vsel %vm2130, %v2104, %v1417
      %v2147 = vsel %vm2130, %v2105, %v1419
      %v2148 = vsel %vm2130, %v2106, %v1421
      %v2149 = vsel %vm2130, %v2107, %v1423
      %v2150 = vsel %vm2130, %v2108, %v1425
      %v2151 = vsel %vm2130, %v2109, %v1427
      %v2152 = vsel %vm2130, %v2110, %v1429
      %v2153 = vsel %vm2130, %v2111, %v1431
      %v2154 = vsel %vm2130, %v2112, %v1433
      %v2155 = vsel %vm2130, %v2113, %v1435
      %v2156 = vsel %vm2130, %v2114, %v1437
      %v2157 = vsel %vm2130, %v2115, %v1439
      %v2158 = vsel %vm2130, %v2116, %v1441
      %v2159 = vsel %vm2130, %v2117, %v1443
      %v2160 = vsel %vm2130, %v2118, %v1445
      %v2161 = vsel %vm2130, %v2119, %v1447
      %v2162 = vsel %vm2130, %v2120, %v1449
      %v2163 = vsel %vm2130, %v2121, %v1451
      %v2164 = vsel %vm2130, %v2122, %v1453
      %v2165 = vsel %vm2130, %v2123, %v1455
      %v2166 = vsel %vm2130, %v2124, %v1457
      %v2167 = vsel %vm2130, %v2125, %v1459
      %v2168 = vsel %vm2130, %v2126, %v1461
      %v2169 = vsel %vm2130, %v2127, %v1463
      %v2170 = vsel %vm2130, %v2128, %v1465
      %v2171 = vsel %vm2130, %v2129, %v1467
      %vm2172 = vcmask 195584
      %v2173 = vsel %vm2172, %v2131, %v1513
      %v2174 = vsel %vm2172, %v2132, %v1515
      %v2175 = vsel %vm2172, %v2133, %v1517
      %v2176 = vsel %vm2172, %v2134, %v1519
      %v2177 = vsel %vm2172, %v2135, %v1521
      %v2178 = vsel %vm2172, %v2136, %v1523
      %v2179 = vsel %vm2172, %v2137, %v1525
      %v2180 = vsel %vm2172, %v2138, %v1527
      %v2181 = vsel %vm2172, %v2139, %v1529
      %v2182 = vsel %vm2172, %v2140, %v1531
      %v2183 = vsel %vm2172, %v2141, %v1533
      %v2184 = vsel %vm2172, %v2142, %v1535
      %v2185 = vsel %vm2172, %v2143, %v1537
      %v2186 = vsel %vm2172, %v2144, %v1539
      %v2187 = vsel %vm2172, %v2145, %v1541
      %v2188 = vsel %vm2172, %v2146, %v1543
      %v2189 = vsel %vm2172, %v2147, %v1545
      %v2190 = vsel %vm2172, %v2148, %v1547
      %v2191 = vsel %vm2172, %v2149, %v1549
      %v2192 = vsel %vm2172, %v2150, %v1551
      %v2193 = vsel %vm2172, %v2151, %v1553
      %v2194 = vsel %vm2172, %v2152, %v1555
      %v2195 = vsel %vm2172, %v2153, %v1557
      %v2196 = vsel %vm2172, %v2154, %v1559
      %v2197 = vsel %vm2172, %v2155, %v1561
      %v2198 = vsel %vm2172, %v2156, %v1563
      %v2199 = vsel %vm2172, %v2157, %v1565
      %v2200 = vsel %vm2172, %v2158, %v1567
      %v2201 = vsel %vm2172, %v2159, %v1569
      %v2202 = vsel %vm2172, %v2160, %v1571
      %v2203 = vsel %vm2172, %v2161, %v1573
      %v2204 = vsel %vm2172, %v2162, %v1575
      %v2205 = vsel %vm2172, %v2163, %v1577
      %v2206 = vsel %vm2172, %v2164, %v1579
      %v2207 = vsel %vm2172, %v2165, %v1581
      %v2208 = vsel %vm2172, %v2166, %v1583
      %v2209 = vsel %vm2172, %v2167, %v1585
      %v2210 = vsel %vm2172, %v2168, %v1587
      %v2211 = vsel %vm2172, %v2169, %v1589
      %v2212 = vsel %vm2172, %v2170, %v1591
      %v2213 = vsel %vm2172, %v2171, %v1593
      %vm2214 = vcmask 228352
      %v2215 = vsel %vm2214, %v2173, %v1677
      %v2216 = vsel %vm2214, %v2174, %v1679
      %v2217 = vsel %vm2214, %v2175, %v1681
      %v2218 = vsel %vm2214, %v2176, %v1683
      %v2219 = vsel %vm2214, %v2177, %v1685
      %v2220 = vsel %vm2214, %v2178, %v1687
      %v2221 = vsel %vm2214, %v2179, %v1689
      %v2222 = vsel %vm2214, %v2180, %v1691
      %v2223 = vsel %vm2214, %v2181, %v1693
      %v2224 = vsel %vm2214, %v2182, %v1695
      %v2225 = vsel %vm2214, %v2183, %v1697
      %v2226 = vsel %vm2214, %v2184, %v1699
      %v2227 = vsel %vm2214, %v2185, %v1701
      %v2228 = vsel %vm2214, %v2186, %v1703
      %v2229 = vsel %vm2214, %v2187, %v1705
      %v2230 = vsel %vm2214, %v2188, %v1707
      %v2231 = vsel %vm2214, %v2189, %v1709
      %v2232 = vsel %vm2214, %v2190, %v1711
      %v2233 = vsel %vm2214, %v2191, %v1713
      %v2234 = vsel %vm2214, %v2192, %v1715
      %v2235 = vsel %vm2214, %v2193, %v1717
      %v2236 = vsel %vm2214, %v2194, %v1719
      %v2237 = vsel %vm2214, %v2195, %v1721
      %v2238 = vsel %vm2214, %v2196, %v1723
      %v2239 = vsel %vm2214, %v2197, %v1725
      %v2240 = vsel %vm2214, %v2198, %v1727
      %v2241 = vsel %vm2214, %v2199, %v1729
      %v2242 = vsel %vm2214, %v2200, %v1731
      %v2243 = vsel %vm2214, %v2201, %v1733
      %v2244 = vsel %vm2214, %v2202, %v1735
      %v2245 = vsel %vm2214, %v2203, %v1737
      %v2246 = vsel %vm2214, %v2204, %v1739
      %v2247 = vsel %vm2214, %v2205, %v1741
      %v2248 = vsel %vm2214, %v2206, %v1743
      %v2249 = vsel %vm2214, %v2207, %v1745
      %v2250 = vsel %vm2214, %v2208, %v1747
      %v2251 = vsel %vm2214, %v2209, %v1749
      %v2252 = vsel %vm2214, %v2210, %v1751
      %v2253 = vsel %vm2214, %v2211, %v1753
      %v2254 = vsel %vm2214, %v2212, %v1755
      %v2255 = vsel %vm2214, %v2213, %v1757
      %vm2256 = vcmask 261120
      %v2257 = vsel %vm2256, %v2215, %v1841
      %v2258 = vsel %vm2256, %v2216, %v1843
      %v2259 = vsel %vm2256, %v2217, %v1845
      %v2260 = vsel %vm2256, %v2218, %v1847
      %v2261 = vsel %vm2256, %v2219, %v1849
      %v2262 = vsel %vm2256, %v2220, %v1851
      %v2263 = vsel %vm2256, %v2221, %v1853
      %v2264 = vsel %vm2256, %v2222, %v1855
      %v2265 = vsel %vm2256, %v2223, %v1857
      %v2266 = vsel %vm2256, %v2224, %v1859
      %v2267 = vsel %vm2256, %v2225, %v1861
      %v2268 = vsel %vm2256, %v2226, %v1863
      %v2269 = vsel %vm2256, %v2227, %v1865
      %v2270 = vsel %vm2256, %v2228, %v1867
      %v2271 = vsel %vm2256, %v2229, %v1869
      %v2272 = vsel %vm2256, %v2230, %v1871
      %v2273 = vsel %vm2256, %v2231, %v1873
      %v2274 = vsel %vm2256, %v2232, %v1875
      %v2275 = vsel %vm2256, %v2233, %v1877
      %v2276 = vsel %vm2256, %v2234, %v1879
      %v2277 = vsel %vm2256, %v2235, %v1881
      %v2278 = vsel %vm2256, %v2236, %v1883
      %v2279 = vsel %vm2256, %v2237, %v1885
      %v2280 = vsel %vm2256, %v2238, %v1887
      %v2281 = vsel %vm2256, %v2239, %v1889
      %v2282 = vsel %vm2256, %v2240, %v1891
      %v2283 = vsel %vm2256, %v2241, %v1893
      %v2284 = vsel %vm2256, %v2242, %v1895
      %v2285 = vsel %vm2256, %v2243, %v1897
      %v2286 = vsel %vm2256, %v2244, %v1899
      %v2287 = vsel %vm2256, %v2245, %v1901
      %v2288 = vsel %vm2256, %v2246, %v1903
      %v2289 = vsel %vm2256, %v2247, %v1905
      %v2290 = vsel %vm2256, %v2248, %v1907
      %v2291 = vsel %vm2256, %v2249, %v1909
      %v2292 = vsel %vm2256, %v2250, %v1911
      %v2293 = vsel %vm2256, %v2251, %v1913
      %v2294 = vsel %vm2256, %v2252, %v1915
      %v2295 = vsel %vm2256, %v2253, %v1917
      %v2296 = vsel %vm2256, %v2254, %v1919
      %v2297 = vsel %vm2256, %v2255, %v1921
      %v2298 = vpack.c.bf16 %v2258, %v2257
      %v2299 = vpack.c.bf16 %v2260, %v2259
      %v2300 = vpack.c.bf16 %v2262, %v2261
      %v2301 = vpack.c.bf16 %v2264, %v2263
      %v2302 = vpack.c.bf16 %v2266, %v2265
      %v2303 = vpack.c.bf16 %v2268, %v2267
      %v2304 = vpack.c.bf16 %v2270, %v2269
      %v2305 = vpack.c.bf16 %v2272, %v2271
      %v2306 = vpack.c.bf16 %v2274, %v2273
      %v2307 = vpack.c.bf16 %v2276, %v2275
      %v2308 = vpack.c.bf16 %v2278, %v2277
      %v2309 = vpack.c.bf16 %v2280, %v2279
      %v2310 = vpack.c.bf16 %v2282, %v2281
      %v2311 = vpack.c.bf16 %v2284, %v2283
      %v2312 = vpack.c.bf16 %v2286, %v2285
      %v2313 = vpack.c.bf16 %v2288, %v2287
      %v2314 = vpack.c.bf16 %v2290, %v2289
      %v2315 = vpack.c.bf16 %v2292, %v2291
      %v2316 = vpack.c.bf16 %v2294, %v2293
      %v2317 = vpack.c.bf16 %v2296, %v2295
      %v2318 = vpack.c.bf16 %v2297, %v2297
      %v2319 = vld [vmem:[%s2] sm:$0xf]
      %v2320 = vld [vmem:[%s2 + $0x4] sm:$0xf]
      %v2321 = vld [vmem:[%s2 + $0x8] sm:$0xf]
      %v2322 = vld [vmem:[%s2 + $0xc] sm:$0xf]
      %v2323 = vld [vmem:[%s2 + $0x10] sm:$0x3]
      %v2324 = vld [vmem:[%s3] sm:$0x1]
      %v2326 = vperm.slane %v2324, 0
      %v2333 = vunpack.c.l.b16 %v2319
      %v2334 = vunpack.c.l.b16 %v2320
      %v2335 = vunpack.c.l.b16 %v2321
      %v2336 = vunpack.c.l.b16 %v2322
      %v2337 = vunpack.c.l.b16 %v2323
      %v2338 = vpack.c.b16 %v2334, %v2333
      %v2339 = vpack.c.b16 %v2336, %v2335
      %v2340 = vpack.c.b16 %v2337, %v2337
      %vm2343 = vcmask 293888
      %v2345 = vsel %vm2343, %v2298, 0
      %v2348 = vsel %vm2343, %v2299, 0
      %v2351 = vsel %vm2343, %v2300, 0
      %v2354 = vsel %vm2343, %v2301, 0
      %v2357 = vsel %vm2343, %v2302, 0
      %v2360 = vsel %vm2343, %v2303, 0
      %v2363 = vsel %vm2343, %v2304, 0
      %v2366 = vsel %vm2343, %v2305, 0
      %v2369 = vsel %vm2343, %v2306, 0
      %v2372 = vsel %vm2343, %v2307, 0
      %v2375 = vsel %vm2343, %v2308, 0
      %v2378 = vsel %vm2343, %v2309, 0
      %v2381 = vsel %vm2343, %v2310, 0
      %v2384 = vsel %vm2343, %v2311, 0
      %v2387 = vsel %vm2343, %v2312, 0
      %v2390 = vsel %vm2343, %v2313, 0
      %v2393 = vsel %vm2343, %v2314, 0
      %v2396 = vsel %vm2343, %v2315, 0
      %v2399 = vsel %vm2343, %v2316, 0
      %v2402 = vsel %vm2343, %v2317, 0
      %v2405 = vsel %vm2343, %v2318, 0
      %vm2407 = vcmask 1041408
      %v2409 = vsel %vm2407, %v2340, 0
      %2411 = vmatpush.bf16.msra.mxu0 0
      %2412 = vmatpush.bf16.msra.mxu0 0
      %2413 = vmatpush.bf16.msra.mxu0 0
      %2414 = vmatpush.bf16.msra.mxu0 0
      %2415 = vmatpush.bf16.msra.mxu0 0
      %2416 = vmatpush.bf16.msra.mxu0 %v2409
      %2417 = vmatpush.bf16.msra.mxu0 %v2339
      %2418 = vmatpush.bf16.msra.mxu0 %v2338
      %2419 = vmatmul.bf16.gmra.mxu0 %v2345
      %v2420 = vpop.f32.mrf.mxu0
      %v2421 = vadd.f32 %v2326, %v2420
      %v2422 = vpop.f32.mrf.mxu0
      %v2423 = vadd.f32 %v2326, %v2422
      %2424 = vmatmul.bf16.gmra.mxu0 %v2348
      %v2425 = vpop.f32.mrf.mxu0
      %v2426 = vadd.f32 %v2326, %v2425
      %v2427 = vpop.f32.mrf.mxu0
      %v2428 = vadd.f32 %v2326, %v2427
      %2429 = vmatmul.bf16.gmra.mxu0 %v2351
      %v2430 = vpop.f32.mrf.mxu0
      %v2431 = vadd.f32 %v2326, %v2430
      %v2432 = vpop.f32.mrf.mxu0
      %v2433 = vadd.f32 %v2326, %v2432
      %2434 = vmatmul.bf16.gmra.mxu0 %v2354
      %v2435 = vpop.f32.mrf.mxu0
      %v2436 = vadd.f32 %v2326, %v2435
      %v2437 = vpop.f32.mrf.mxu0
      %v2438 = vadd.f32 %v2326, %v2437
      %2439 = vmatmul.bf16.gmra.mxu0 %v2357
      %v2440 = vpop.f32.mrf.mxu0
      %v2441 = vadd.f32 %v2326, %v2440
      %v2442 = vpop.f32.mrf.mxu0
      %v2443 = vadd.f32 %v2326, %v2442
      %2444 = vmatmul.bf16.gmra.mxu0 %v2360
      %v2445 = vpop.f32.mrf.mxu0
      %v2446 = vadd.f32 %v2326, %v2445
      %v2447 = vpop.f32.mrf.mxu0
      %v2448 = vadd.f32 %v2326, %v2447
      %2449 = vmatmul.bf16.gmra.mxu0 %v2363
      %v2450 = vpop.f32.mrf.mxu0
      %v2451 = vadd.f32 %v2326, %v2450
      %v2452 = vpop.f32.mrf.mxu0
      %v2453 = vadd.f32 %v2326, %v2452
      %2454 = vmatmul.bf16.gmra.mxu0 %v2366
      %v2455 = vpop.f32.mrf.mxu0
      %v2456 = vadd.f32 %v2326, %v2455
      %v2457 = vpop.f32.mrf.mxu0
      %v2458 = vadd.f32 %v2326, %v2457
      %2459 = vmatmul.bf16.gmra.mxu0 %v2369
      %v2460 = vpop.f32.mrf.mxu0
      %v2461 = vadd.f32 %v2326, %v2460
      %v2462 = vpop.f32.mrf.mxu0
      %v2463 = vadd.f32 %v2326, %v2462
      %2464 = vmatmul.bf16.gmra.mxu0 %v2372
      %v2465 = vpop.f32.mrf.mxu0
      %v2466 = vadd.f32 %v2326, %v2465
      %v2467 = vpop.f32.mrf.mxu0
      %v2468 = vadd.f32 %v2326, %v2467
      %2469 = vmatmul.bf16.gmra.mxu0 %v2375
      %v2470 = vpop.f32.mrf.mxu0
      %v2471 = vadd.f32 %v2326, %v2470
      %v2472 = vpop.f32.mrf.mxu0
      %v2473 = vadd.f32 %v2326, %v2472
      %2474 = vmatmul.bf16.gmra.mxu0 %v2378
      %v2475 = vpop.f32.mrf.mxu0
      %v2476 = vadd.f32 %v2326, %v2475
      %v2477 = vpop.f32.mrf.mxu0
      %v2478 = vadd.f32 %v2326, %v2477
      %2479 = vmatmul.bf16.gmra.mxu0 %v2381
      %v2480 = vpop.f32.mrf.mxu0
      %v2481 = vadd.f32 %v2326, %v2480
      %v2482 = vpop.f32.mrf.mxu0
      %v2483 = vadd.f32 %v2326, %v2482
      %2484 = vmatmul.bf16.gmra.mxu0 %v2384
      %v2485 = vpop.f32.mrf.mxu0
      %v2486 = vadd.f32 %v2326, %v2485
      %v2487 = vpop.f32.mrf.mxu0
      %v2488 = vadd.f32 %v2326, %v2487
      %2489 = vmatmul.bf16.gmra.mxu0 %v2387
      %v2490 = vpop.f32.mrf.mxu0
      %v2491 = vadd.f32 %v2326, %v2490
      %v2492 = vpop.f32.mrf.mxu0
      %v2493 = vadd.f32 %v2326, %v2492
      %2494 = vmatmul.bf16.gmra.mxu0 %v2390
      %v2495 = vpop.f32.mrf.mxu0
      %v2496 = vadd.f32 %v2326, %v2495
      %v2497 = vpop.f32.mrf.mxu0
      %v2498 = vadd.f32 %v2326, %v2497
      %2499 = vmatmul.bf16.gmra.mxu0 %v2393
      %v2500 = vpop.f32.mrf.mxu0
      %v2501 = vadd.f32 %v2326, %v2500
      %v2502 = vpop.f32.mrf.mxu0
      %v2503 = vadd.f32 %v2326, %v2502
      %2504 = vmatmul.bf16.gmra.mxu0 %v2396
      %v2505 = vpop.f32.mrf.mxu0
      %v2506 = vadd.f32 %v2326, %v2505
      %v2507 = vpop.f32.mrf.mxu0
      %v2508 = vadd.f32 %v2326, %v2507
      %2509 = vmatmul.bf16.gmra.mxu0 %v2399
      %v2510 = vpop.f32.mrf.mxu0
      %v2511 = vadd.f32 %v2326, %v2510
      %v2512 = vpop.f32.mrf.mxu0
      %v2513 = vadd.f32 %v2326, %v2512
      %2514 = vmatmul.bf16.gmra.mxu0 %v2402
      %v2515 = vpop.f32.mrf.mxu0
      %v2516 = vadd.f32 %v2326, %v2515
      %v2517 = vpop.f32.mrf.mxu0
      %v2518 = vadd.f32 %v2326, %v2517
      %2519 = vmatmul.bf16.gmra.mxu0 %v2405
      %v2520 = vpop.f32.mrf.mxu0
      %v2521 = vadd.f32 %v2326, %v2520
      %v2522 = vpop.f32.mrf.mxu0
      %2523 = vdwg.mxu0
      %v2524 = vmax.f32 %v2421, 0.0
      %v2525 = vmax.f32 %v2423, 0.0
      %v2526 = vmax.f32 %v2426, 0.0
      %v2527 = vmax.f32 %v2428, 0.0
      %v2528 = vmax.f32 %v2431, 0.0
      %v2529 = vmax.f32 %v2433, 0.0
      %v2530 = vmax.f32 %v2436, 0.0
      %v2531 = vmax.f32 %v2438, 0.0
      %v2532 = vmax.f32 %v2441, 0.0
      %v2533 = vmax.f32 %v2443, 0.0
      %v2534 = vmax.f32 %v2446, 0.0
      %v2535 = vmax.f32 %v2448, 0.0
      %v2536 = vmax.f32 %v2451, 0.0
      %v2537 = vmax.f32 %v2453, 0.0
      %v2538 = vmax.f32 %v2456, 0.0
      %v2539 = vmax.f32 %v2458, 0.0
      %v2540 = vmax.f32 %v2461, 0.0
      %v2541 = vmax.f32 %v2463, 0.0
      %v2542 = vmax.f32 %v2466, 0.0
      %v2543 = vmax.f32 %v2468, 0.0
      %v2544 = vmax.f32 %v2471, 0.0
      %v2545 = vmax.f32 %v2473, 0.0
      %v2546 = vmax.f32 %v2476, 0.0
      %v2547 = vmax.f32 %v2478, 0.0
      %v2548 = vmax.f32 %v2481, 0.0
      %v2549 = vmax.f32 %v2483, 0.0
      %v2550 = vmax.f32 %v2486, 0.0
      %v2551 = vmax.f32 %v2488, 0.0
      %v2552 = vmax.f32 %v2491, 0.0
      %v2553 = vmax.f32 %v2493, 0.0
      %v2554 = vmax.f32 %v2496, 0.0
      %v2555 = vmax.f32 %v2498, 0.0
      %v2556 = vmax.f32 %v2501, 0.0
      %v2557 = vmax.f32 %v2503, 0.0
      %v2558 = vmax.f32 %v2506, 0.0
      %v2559 = vmax.f32 %v2508, 0.0
      %v2560 = vmax.f32 %v2511, 0.0
      %v2561 = vmax.f32 %v2513, 0.0
      %v2562 = vmax.f32 %v2516, 0.0
      %v2563 = vmax.f32 %v2518, 0.0
      %v2564 = vmax.f32 %v2521, 0.0
      %v2565 = vpack.c.bf16 %v561, %v560
      %v2566 = vpack.c.bf16 %v563, %v562
      %v2567 = vpack.c.bf16 %v565, %v564
      %v2568 = vpack.c.bf16 %v567, %v566
      %v2569 = vpack.c.bf16 %v569, %v568
      %v2570 = vpack.c.bf16 %v571, %v570
      %v2571 = vpack.c.bf16 %v573, %v572
      %v2572 = vpack.c.bf16 %v575, %v574
      %v2573 = vpack.c.bf16 %v577, %v576
      %v2574 = vpack.c.bf16 %v579, %v578
      %v2575 = vpack.c.bf16 %v581, %v580
      %v2576 = vpack.c.bf16 %v583, %v582
      %v2577 = vpack.c.bf16 %v585, %v584
      %v2578 = vpack.c.bf16 %v587, %v586
      %v2579 = vpack.c.bf16 %v589, %v588
      %v2580 = vpack.c.bf16 %v591, %v590
      %v2581 = vpack.c.bf16 %v593, %v592
      %v2582 = vpack.c.bf16 %v595, %v594
      %v2583 = vpack.c.bf16 %v597, %v596
      %v2584 = vpack.c.bf16 %v599, %v598
      %v2585 = vpack.c.bf16 %v600, %v600
      %v2586 = vld [vmem:[%s6] sm:$0x3]
      %v2587 = vld [vmem:[%s7] sm:$0x1]
      %v2589 = vperm.slane %v2587, 0
      %v2592 = vsel %vm307, %v2565, 0
      %v2595 = vsel %vm307, %v2566, 0
      %v2598 = vsel %vm307, %v2567, 0
      %v2601 = vsel %vm307, %v2568, 0
      %v2604 = vsel %vm307, %v2569, 0
      %v2607 = vsel %vm307, %v2570, 0
      %v2610 = vsel %vm307, %v2571, 0
      %v2613 = vsel %vm307, %v2572, 0
      %v2616 = vsel %vm307, %v2573, 0
      %v2619 = vsel %vm307, %v2574, 0
      %v2622 = vsel %vm307, %v2575, 0
      %v2625 = vsel %vm307, %v2576, 0
      %v2628 = vsel %vm307, %v2577, 0
      %v2631 = vsel %vm307, %v2578, 0
      %v2634 = vsel %vm307, %v2579, 0
      %v2637 = vsel %vm307, %v2580, 0
      %v2640 = vsel %vm307, %v2581, 0
      %v2643 = vsel %vm307, %v2582, 0
      %v2646 = vsel %vm307, %v2583, 0
      %v2649 = vsel %vm307, %v2584, 0
      %v2652 = vsel %vm307, %v2585, 0
      %v2655 = vsel %vm2407, %v2586, 0
      %2657 = vmatpush.bf16.msra.mxu0 0
      %2658 = vmatpush.bf16.msra.mxu0 0
      %2659 = vmatpush.bf16.msra.mxu0 0
      %2660 = vmatpush.bf16.msra.mxu0 0
      %2661 = vmatpush.bf16.msra.mxu0 0
      %2662 = vmatpush.bf16.msra.mxu0 0
      %2663 = vmatpush.bf16.msra.mxu0 0
      %2664 = vmatpush.bf16.msra.mxu0 %v2655
      %2665 = vmatmul.bf16.gmra.mxu0 %v2592
      %v2666 = vpop.f32.mrf.mxu0
      %v2667 = vadd.f32 %v2589, %v2666
      %v2668 = vpop.f32.mrf.mxu0
      %v2669 = vadd.f32 %v2589, %v2668
      %2670 = vmatmul.bf16.gmra.mxu0 %v2595
      %v2671 = vpop.f32.mrf.mxu0
      %v2672 = vadd.f32 %v2589, %v2671
      %v2673 = vpop.f32.mrf.mxu0
      %v2674 = vadd.f32 %v2589, %v2673
      %2675 = vmatmul.bf16.gmra.mxu0 %v2598
      %v2676 = vpop.f32.mrf.mxu0
      %v2677 = vadd.f32 %v2589, %v2676
      %v2678 = vpop.f32.mrf.mxu0
      %v2679 = vadd.f32 %v2589, %v2678
      %2680 = vmatmul.bf16.gmra.mxu0 %v2601
      %v2681 = vpop.f32.mrf.mxu0
      %v2682 = vadd.f32 %v2589, %v2681
      %v2683 = vpop.f32.mrf.mxu0
      %v2684 = vadd.f32 %v2589, %v2683
      %2685 = vmatmul.bf16.gmra.mxu0 %v2604
      %v2686 = vpop.f32.mrf.mxu0
      %v2687 = vadd.f32 %v2589, %v2686
      %v2688 = vpop.f32.mrf.mxu0
      %v2689 = vadd.f32 %v2589, %v2688
      %2690 = vmatmul.bf16.gmra.mxu0 %v2607
      %v2691 = vpop.f32.mrf.mxu0
      %v2692 = vadd.f32 %v2589, %v2691
      %v2693 = vpop.f32.mrf.mxu0
      %v2694 = vadd.f32 %v2589, %v2693
      %2695 = vmatmul.bf16.gmra.mxu0 %v2610
      %v2696 = vpop.f32.mrf.mxu0
      %v2697 = vadd.f32 %v2589, %v2696
      %v2698 = vpop.f32.mrf.mxu0
      %v2699 = vadd.f32 %v2589, %v2698
      %2700 = vmatmul.bf16.gmra.mxu0 %v2613
      %v2701 = vpop.f32.mrf.mxu0
      %v2702 = vadd.f32 %v2589, %v2701
      %v2703 = vpop.f32.mrf.mxu0
      %v2704 = vadd.f32 %v2589, %v2703
      %2705 = vmatmul.bf16.gmra.mxu0 %v2616
      %v2706 = vpop.f32.mrf.mxu0
      %v2707 = vadd.f32 %v2589, %v2706
      %v2708 = vpop.f32.mrf.mxu0
      %v2709 = vadd.f32 %v2589, %v2708
      %2710 = vmatmul.bf16.gmra.mxu0 %v2619
      %v2711 = vpop.f32.mrf.mxu0
      %v2712 = vadd.f32 %v2589, %v2711
      %v2713 = vpop.f32.mrf.mxu0
      %v2714 = vadd.f32 %v2589, %v2713
      %2715 = vmatmul.bf16.gmra.mxu0 %v2622
      %v2716 = vpop.f32.mrf.mxu0
      %v2717 = vadd.f32 %v2589, %v2716
      %v2718 = vpop.f32.mrf.mxu0
      %v2719 = vadd.f32 %v2589, %v2718
      %2720 = vmatmul.bf16.gmra.mxu0 %v2625
      %v2721 = vpop.f32.mrf.mxu0
      %v2722 = vadd.f32 %v2589, %v2721
      %v2723 = vpop.f32.mrf.mxu0
      %v2724 = vadd.f32 %v2589, %v2723
      %2725 = vmatmul.bf16.gmra.mxu0 %v2628
      %v2726 = vpop.f32.mrf.mxu0
      %v2727 = vadd.f32 %v2589, %v2726
      %v2728 = vpop.f32.mrf.mxu0
      %v2729 = vadd.f32 %v2589, %v2728
      %2730 = vmatmul.bf16.gmra.mxu0 %v2631
      %v2731 = vpop.f32.mrf.mxu0
      %v2732 = vadd.f32 %v2589, %v2731
      %v2733 = vpop.f32.mrf.mxu0
      %v2734 = vadd.f32 %v2589, %v2733
      %2735 = vmatmul.bf16.gmra.mxu0 %v2634
      %v2736 = vpop.f32.mrf.mxu0
      %v2737 = vadd.f32 %v2589, %v2736
      %v2738 = vpop.f32.mrf.mxu0
      %v2739 = vadd.f32 %v2589, %v2738
      %2740 = vmatmul.bf16.gmra.mxu0 %v2637
      %v2741 = vpop.f32.mrf.mxu0
      %v2742 = vadd.f32 %v2589, %v2741
      %v2743 = vpop.f32.mrf.mxu0
      %v2744 = vadd.f32 %v2589, %v2743
      %2745 = vmatmul.bf16.gmra.mxu0 %v2640
      %v2746 = vpop.f32.mrf.mxu0
      %v2747 = vadd.f32 %v2589, %v2746
      %v2748 = vpop.f32.mrf.mxu0
      %v2749 = vadd.f32 %v2589, %v2748
      %2750 = vmatmul.bf16.gmra.mxu0 %v2643
      %v2751 = vpop.f32.mrf.mxu0
      %v2752 = vadd.f32 %v2589, %v2751
      %v2753 = vpop.f32.mrf.mxu0
      %v2754 = vadd.f32 %v2589, %v2753
      %2755 = vmatmul.bf16.gmra.mxu0 %v2646
      %v2756 = vpop.f32.mrf.mxu0
      %v2757 = vpop.f32.mrf.mxu0
      %2758 = vmatmul.bf16.gmra.mxu0 %v2649
      %v2759 = vpop.f32.mrf.mxu0
      %v2760 = vpop.f32.mrf.mxu0
      %2761 = vmatmul.bf16.gmra.mxu0 %v2652
      %v2762 = vpop.f32.mrf.mxu0
      %v2763 = vpop.f32.mrf.mxu0
      %2764 = vdwg.mxu0
      %2765 = vst.msk [vmem:[#allocation3] sm:$0xff] %vm2004, 0.0
      %2766 = vst.msk [vmem:[#allocation3 + $0x8] sm:$0xff] %vm2004, 0.0
      %2767 = vst.msk [vmem:[#allocation3 + $0x10] sm:$0xff] %vm2004, 0.0
      %2768 = vst.msk [vmem:[#allocation3 + $0x18] sm:$0xff] %vm2004, 0.0
      %2769 = vst.msk [vmem:[#allocation3 + $0x20] sm:$0xff] %vm2004, 0.0
      %2770 = vst.msk [vmem:[#allocation3 + $0x28] sm:$0xff] %vm2004, 0.0
      %2771 = vst.msk [vmem:[#allocation3 + $0x30] sm:$0xff] %vm2004, 0.0
      %2772 = vst.msk [vmem:[#allocation3 + $0x38] sm:$0xff] %vm2004, 0.0
      %2773 = vst.msk [vmem:[#allocation3 + $0x40] sm:$0xff] %vm2004, 0.0
      %2774 = vst.msk [vmem:[#allocation3 + $0x48] sm:$0xff] %vm2004, 0.0
      %2775 = vst.msk [vmem:[#allocation3 + $0x50] sm:$0xff] %vm2004, 0.0
      %2776 = vst.msk [vmem:[#allocation3 + $0x58] sm:$0xff] %vm2004, 0.0
      %2777 = vst.msk [vmem:[#allocation3 + $0x60] sm:$0xff] %vm2004, 0.0
      %2778 = vst.msk [vmem:[#allocation3 + $0x68] sm:$0xff] %vm2004, 0.0
      %2779 = vst.msk [vmem:[#allocation3 + $0x70] sm:$0xff] %vm2004, 0.0
      %2780 = vst.msk [vmem:[#allocation3 + $0x78] sm:$0xff] %vm2004, 0.0
      %2781 = vst.msk [vmem:[#allocation3 + $0x80] sm:$0xff] %vm2004, 0.0
      %2782 = vst.msk [vmem:[#allocation3 + $0x88] sm:$0xff] %vm2004, 0.0
      %2783 = vst.msk [vmem:[#allocation3 + $0x90] sm:$0xff] %vm2004, 0.0
      %2784 = vst.msk [vmem:[#allocation3 + $0x98] sm:$0xff] %vm2004, 0.0
      %2785 = vst.msk [vmem:[#allocation3 + $0xa0] sm:$0xff] %vm2004, 0.0
      %2786 = vst.msk [vmem:[#allocation3 + $0xa8] sm:$0xff] %vm2004, 0.0
      %2787 = vst.msk [vmem:[#allocation3 + $0xb0] sm:$0xff] %vm2004, 0.0
      %2788 = vst.msk [vmem:[#allocation3 + $0xb8] sm:$0xff] %vm2004, 0.0
      %2789 = vst.msk [vmem:[#allocation3 + $0xc0] sm:$0xff] %vm2004, 0.0
      %2790 = vst.msk [vmem:[#allocation3 + $0xc8] sm:$0xff] %vm2004, 0.0
      %2791 = vst.msk [vmem:[#allocation3 + $0xd0] sm:$0xff] %vm2004, 0.0
      %2792 = vst.msk [vmem:[#allocation3 + $0xd8] sm:$0xff] %vm2004, 0.0
      %2793 = vst.msk [vmem:[#allocation3 + $0xe0] sm:$0xff] %vm2004, 0.0
      %2794 = vst.msk [vmem:[#allocation3 + $0xe8] sm:$0xff] %vm2004, 0.0
      %2795 = vst.msk [vmem:[#allocation3 + $0xf0] sm:$0xff] %vm2004, 0.0
      %2796 = vst.msk [vmem:[#allocation3 + $0xf8] sm:$0xff] %vm2004, 0.0
      %2797 = vst.msk [vmem:[#allocation3 + $0x100] sm:$0xff] %vm2004, 0.0
      %2798 = vst.msk [vmem:[#allocation3 + $0x108] sm:$0xff] %vm2004, 0.0
      %2799 = vst.msk [vmem:[#allocation3 + $0x110] sm:$0xff] %vm2004, 0.0
      %2800 = vst.msk [vmem:[#allocation3 + $0x118] sm:$0xff] %vm2004, 0.0
      %2801 = vst.msk [vmem:[#allocation3 + $0x120] sm:$0xff] %vm2004, 0.0
      %2802 = vst.msk [vmem:[#allocation3 + $0x128] sm:$0xff] %vm2004, 0.0
      %2803 = vst.msk [vmem:[#allocation3 + $0x130] sm:$0xff] %vm2004, 0.0
      %2804 = vst.msk [vmem:[#allocation3 + $0x138] sm:$0xff] %vm2004, 0.0
      %2805 = vst.msk [vmem:[#allocation3 + $0x140] sm:$0xff] %vm2004, 0.0
      %2806 = vst.msk [vmem:[#allocation3 + $0x148] sm:$0xff] %vm2004, 0.0
      %2807 = vst.msk [vmem:[#allocation3 + $0x150] sm:$0xff] %vm2004, 0.0
      %2808 = vst.msk [vmem:[#allocation3 + $0x158] sm:$0xff] %vm2004, 0.0
      %2809 = vst.msk [vmem:[#allocation3 + $0x160] sm:$0xff] %vm2004, 0.0
      %vm2810 = vcmask 58368
      %2811 = vst.msk [vmem:[#allocation3 + $0x168] sm:$0x3] %vm2810, 0.0
      %v2812 = vld [vmem:[%s1] sm:$0xff]
      %v2813 = vld [vmem:[%s1 + $0x8] sm:$0xff]
      %v2814 = vld [vmem:[%s1 + $0x10] sm:$0xff]
      %v2815 = vld [vmem:[%s1 + $0x18] sm:$0xff]
      %v2816 = vld [vmem:[%s1 + $0x20] sm:$0xff]
      %v2817 = vld [vmem:[%s1 + $0x28] sm:$0xff]
      %v2818 = vld [vmem:[%s1 + $0x30] sm:$0xff]
      %v2819 = vld [vmem:[%s1 + $0x38] sm:$0xff]
      %v2820 = vld [vmem:[%s1 + $0x40] sm:$0xff]
      %v2821 = vld [vmem:[%s1 + $0x48] sm:$0xff]
      %v2822 = vld [vmem:[%s1 + $0x50] sm:$0xff]
      %v2823 = vld [vmem:[%s1 + $0x58] sm:$0xff]
      %v2824 = vld [vmem:[%s1 + $0x60] sm:$0xff]
      %v2825 = vld [vmem:[%s1 + $0x68] sm:$0xff]
      %v2826 = vld [vmem:[%s1 + $0x70] sm:$0xff]
      %v2827 = vld [vmem:[%s1 + $0x78] sm:$0xff]
      %v2828 = vld [vmem:[%s1 + $0x80] sm:$0xff]
      %v2829 = vld [vmem:[%s1 + $0x88] sm:$0xff]
      %v2830 = vld [vmem:[%s1 + $0x90] sm:$0xff]
      %v2831 = vld [vmem:[%s1 + $0x98] sm:$0xff]
      %v2832 = vld [vmem:[%s1 + $0xa0] sm:$0xff]
      %v2833 = vld [vmem:[%s1 + $0xa8] sm:$0xff]
      %v2834 = vld [vmem:[%s1 + $0xb0] sm:$0xff]
      %v2835 = vld [vmem:[%s1 + $0xb8] sm:$0xff]
      %v2836 = vld [vmem:[%s1 + $0xc0] sm:$0xff]
      %v2837 = vld [vmem:[%s1 + $0xc8] sm:$0xff]
      %v2838 = vld [vmem:[%s1 + $0xd0] sm:$0xff]
      %v2839 = vld [vmem:[%s1 + $0xd8] sm:$0xff]
      %v2840 = vld [vmem:[%s1 + $0xe0] sm:$0xff]
      %v2841 = vld [vmem:[%s1 + $0xe8] sm:$0xff]
      %v2842 = vld [vmem:[%s1 + $0xf0] sm:$0xff]
      %v2843 = vld [vmem:[%s1 + $0xf8] sm:$0xff]
      %v2844 = vld [vmem:[%s1 + $0x100] sm:$0xff]
      %v2845 = vld [vmem:[%s1 + $0x108] sm:$0xff]
      %v2846 = vld [vmem:[%s1 + $0x110] sm:$0xff]
      %v2847 = vld [vmem:[%s1 + $0x118] sm:$0xff]
      %v2848 = vld [vmem:[%s1 + $0x120] sm:$0xff]
      %v2849 = vld [vmem:[%s1 + $0x128] sm:$0xff]
      %v2850 = vld [vmem:[%s1 + $0x130] sm:$0xff]
      %v2851 = vld [vmem:[%s1 + $0x138] sm:$0xff]
      %v2852 = vld [vmem:[%s1 + $0x140] sm:$0xf]
      %2854 = vset.pattern.permute.xlu0 0
      %2855 = vperm.xlu0 %2854, %v2812
      %v2856 = vpop.permute.xlu0 %2855
      %2859 = vset.pattern.permute.xlu0 0
      %2860 = vperm.xlu0 %2859, %v2813
      %v2861 = vpop.permute.xlu0 %2860
      %2864 = vset.pattern.permute.xlu0 0
      %2865 = vperm.xlu0 %2864, %v2814
      %v2866 = vpop.permute.xlu0 %2865
      %2869 = vset.pattern.permute.xlu0 0
      %2870 = vperm.xlu0 %2869, %v2815
      %v2871 = vpop.permute.xlu0 %2870
      %2874 = vset.pattern.permute.xlu0 0
      %2875 = vperm.xlu0 %2874, %v2816
      %v2876 = vpop.permute.xlu0 %2875
      %2879 = vset.pattern.permute.xlu0 0
      %2880 = vperm.xlu0 %2879, %v2817
      %v2881 = vpop.permute.xlu0 %2880
      %2884 = vset.pattern.permute.xlu0 0
      %2885 = vperm.xlu0 %2884, %v2818
      %v2886 = vpop.permute.xlu0 %2885
      %2889 = vset.pattern.permute.xlu0 0
      %2890 = vperm.xlu0 %2889, %v2819
      %v2891 = vpop.permute.xlu0 %2890
      %2894 = vset.pattern.permute.xlu0 0
      %2895 = vperm.xlu0 %2894, %v2820
      %v2896 = vpop.permute.xlu0 %2895
      %2899 = vset.pattern.permute.xlu0 0
      %2900 = vperm.xlu0 %2899, %v2821
      %v2901 = vpop.permute.xlu0 %2900
      %2904 = vset.pattern.permute.xlu0 0
      %2905 = vperm.xlu0 %2904, %v2822
      %v2906 = vpop.permute.xlu0 %2905
      %2909 = vset.pattern.permute.xlu0 0
      %2910 = vperm.xlu0 %2909, %v2823
      %v2911 = vpop.permute.xlu0 %2910
      %2914 = vset.pattern.permute.xlu0 0
      %2915 = vperm.xlu0 %2914, %v2824
      %v2916 = vpop.permute.xlu0 %2915
      %2919 = vset.pattern.permute.xlu0 0
      %2920 = vperm.xlu0 %2919, %v2825
      %v2921 = vpop.permute.xlu0 %2920
      %2924 = vset.pattern.permute.xlu0 0
      %2925 = vperm.xlu0 %2924, %v2826
      %v2926 = vpop.permute.xlu0 %2925
      %2929 = vset.pattern.permute.xlu0 0
      %2930 = vperm.xlu0 %2929, %v2827
      %v2931 = vpop.permute.xlu0 %2930
      %2934 = vset.pattern.permute.xlu0 0
      %2935 = vperm.xlu0 %2934, %v2828
      %v2936 = vpop.permute.xlu0 %2935
      %2939 = vset.pattern.permute.xlu0 0
      %2940 = vperm.xlu0 %2939, %v2829
      %v2941 = vpop.permute.xlu0 %2940
      %2944 = vset.pattern.permute.xlu0 0
      %2945 = vperm.xlu0 %2944, %v2830
      %v2946 = vpop.permute.xlu0 %2945
      %2949 = vset.pattern.permute.xlu0 0
      %2950 = vperm.xlu0 %2949, %v2831
      %v2951 = vpop.permute.xlu0 %2950
      %2954 = vset.pattern.permute.xlu0 0
      %2955 = vperm.xlu0 %2954, %v2832
      %v2956 = vpop.permute.xlu0 %2955
      %2959 = vset.pattern.permute.xlu0 0
      %2960 = vperm.xlu0 %2959, %v2833
      %v2961 = vpop.permute.xlu0 %2960
      %2964 = vset.pattern.permute.xlu0 0
      %2965 = vperm.xlu0 %2964, %v2834
      %v2966 = vpop.permute.xlu0 %2965
      %2969 = vset.pattern.permute.xlu0 0
      %2970 = vperm.xlu0 %2969, %v2835
      %v2971 = vpop.permute.xlu0 %2970
      %2974 = vset.pattern.permute.xlu0 0
      %2975 = vperm.xlu0 %2974, %v2836
      %v2976 = vpop.permute.xlu0 %2975
      %2979 = vset.pattern.permute.xlu0 0
      %2980 = vperm.xlu0 %2979, %v2837
      %v2981 = vpop.permute.xlu0 %2980
      %2984 = vset.pattern.permute.xlu0 0
      %2985 = vperm.xlu0 %2984, %v2838
      %v2986 = vpop.permute.xlu0 %2985
      %2989 = vset.pattern.permute.xlu0 0
      %2990 = vperm.xlu0 %2989, %v2839
      %v2991 = vpop.permute.xlu0 %2990
      %2994 = vset.pattern.permute.xlu0 0
      %2995 = vperm.xlu0 %2994, %v2840
      %v2996 = vpop.permute.xlu0 %2995
      %2999 = vset.pattern.permute.xlu0 0
      %3000 = vperm.xlu0 %2999, %v2841
      %v3001 = vpop.permute.xlu0 %3000
      %3004 = vset.pattern.permute.xlu0 0
      %3005 = vperm.xlu0 %3004, %v2842
      %v3006 = vpop.permute.xlu0 %3005
      %3009 = vset.pattern.permute.xlu0 0
      %3010 = vperm.xlu0 %3009, %v2843
      %v3011 = vpop.permute.xlu0 %3010
      %3014 = vset.pattern.permute.xlu0 0
      %3015 = vperm.xlu0 %3014, %v2844
      %v3016 = vpop.permute.xlu0 %3015
      %3019 = vset.pattern.permute.xlu0 0
      %3020 = vperm.xlu0 %3019, %v2845
      %v3021 = vpop.permute.xlu0 %3020
      %3024 = vset.pattern.permute.xlu0 0
      %3025 = vperm.xlu0 %3024, %v2846
      %v3026 = vpop.permute.xlu0 %3025
      %3029 = vset.pattern.permute.xlu0 0
      %3030 = vperm.xlu0 %3029, %v2847
      %v3031 = vpop.permute.xlu0 %3030
      %3034 = vset.pattern.permute.xlu0 0
      %3035 = vperm.xlu0 %3034, %v2848
      %v3036 = vpop.permute.xlu0 %3035
      %3039 = vset.pattern.permute.xlu0 0
      %3040 = vperm.xlu0 %3039, %v2849
      %v3041 = vpop.permute.xlu0 %3040
      %3044 = vset.pattern.permute.xlu0 0
      %3045 = vperm.xlu0 %3044, %v2850
      %v3046 = vpop.permute.xlu0 %3045
      %3049 = vset.pattern.permute.xlu0 0
      %3050 = vperm.xlu0 %3049, %v2851
      %v3051 = vpop.permute.xlu0 %3050
      %3054 = vset.pattern.permute.xlu0 0
      %3055 = vperm.xlu0 %3054, %v2852
      %v3056 = vpop.permute.xlu0 %3055
      %v3058 = vmul.f32 %v2524, %v2856
      %v3059 = vmul.f32 %v2525, %v2861
      %v3060 = vmul.f32 %v2526, %v2866
      %v3061 = vmul.f32 %v2527, %v2871
      %v3062 = vmul.f32 %v2528, %v2876
      %v3063 = vmul.f32 %v2529, %v2881
      %v3064 = vmul.f32 %v2530, %v2886
      %v3065 = vmul.f32 %v2531, %v2891
      %v3066 = vmul.f32 %v2532, %v2896
      %v3067 = vmul.f32 %v2533, %v2901
      %v3068 = vmul.f32 %v2534, %v2906
      %v3069 = vmul.f32 %v2535, %v2911
      %v3070 = vmul.f32 %v2536, %v2916
      %v3071 = vmul.f32 %v2537, %v2921
      %v3072 = vmul.f32 %v2538, %v2926
      %v3073 = vmul.f32 %v2539, %v2931
      %v3074 = vmul.f32 %v2540, %v2936
      %v3075 = vmul.f32 %v2541, %v2941
      %v3076 = vmul.f32 %v2542, %v2946
      %v3077 = vmul.f32 %v2543, %v2951
      %v3078 = vmul.f32 %v2544, %v2956
      %v3079 = vmul.f32 %v2545, %v2961
      %v3080 = vmul.f32 %v2546, %v2966
      %v3081 = vmul.f32 %v2547, %v2971
      %v3082 = vmul.f32 %v2548, %v2976
      %v3083 = vmul.f32 %v2549, %v2981
      %v3084 = vmul.f32 %v2550, %v2986
      %v3085 = vmul.f32 %v2551, %v2991
      %v3086 = vmul.f32 %v2552, %v2996
      %v3087 = vmul.f32 %v2553, %v3001
      %v3088 = vmul.f32 %v2554, %v3006
      %v3089 = vmul.f32 %v2555, %v3011
      %v3090 = vmul.f32 %v2556, %v3016
      %v3091 = vmul.f32 %v2557, %v3021
      %v3092 = vmul.f32 %v2558, %v3026
      %v3093 = vmul.f32 %v2559, %v3031
      %v3094 = vmul.f32 %v2560, %v3036
      %v3095 = vmul.f32 %v2561, %v3041
      %v3096 = vmul.f32 %v2562, %v3046
      %v3097 = vmul.f32 %v2563, %v3051
      %v3098 = vmul.f32 %v2564, %v3056
      %3099 = vst.msk [vmem:[#allocation3 + $0x13] sm:$0xff] %vm2004, %v3058
      %3100 = vst.msk [vmem:[#allocation3 + $0x1b] sm:$0xff] %vm2004, %v3059
      %3101 = vst.msk [vmem:[#allocation3 + $0x23] sm:$0xff] %vm2004, %v3060
      %3102 = vst.msk [vmem:[#allocation3 + $0x2b] sm:$0xff] %vm2004, %v3061
      %3103 = vst.msk [vmem:[#allocation3 + $0x33] sm:$0xff] %vm2004, %v3062
      %3104 = vst.msk [vmem:[#allocation3 + $0x3b] sm:$0xff] %vm2004, %v3063
      %3105 = vst.msk [vmem:[#allocation3 + $0x43] sm:$0xff] %vm2004, %v3064
      %3106 = vst.msk [vmem:[#allocation3 + $0x4b] sm:$0xff] %vm2004, %v3065
      %3107 = vst.msk [vmem:[#allocation3 + $0x53] sm:$0xff] %vm2004, %v3066
      %3108 = vst.msk [vmem:[#allocation3 + $0x5b] sm:$0xff] %vm2004, %v3067
      %3109 = vst.msk [vmem:[#allocation3 + $0x63] sm:$0xff] %vm2004, %v3068
      %3110 = vst.msk [vmem:[#allocation3 + $0x6b] sm:$0xff] %vm2004, %v3069
      %3111 = vst.msk [vmem:[#allocation3 + $0x73] sm:$0xff] %vm2004, %v3070
      %3112 = vst.msk [vmem:[#allocation3 + $0x7b] sm:$0xff] %vm2004, %v3071
      %3113 = vst.msk [vmem:[#allocation3 + $0x83] sm:$0xff] %vm2004, %v3072
      %3114 = vst.msk [vmem:[#allocation3 + $0x8b] sm:$0xff] %vm2004, %v3073
      %3115 = vst.msk [vmem:[#allocation3 + $0x93] sm:$0xff] %vm2004, %v3074
      %3116 = vst.msk [vmem:[#allocation3 + $0x9b] sm:$0xff] %vm2004, %v3075
      %3117 = vst.msk [vmem:[#allocation3 + $0xa3] sm:$0xff] %vm2004, %v3076
      %3118 = vst.msk [vmem:[#allocation3 + $0xab] sm:$0xff] %vm2004, %v3077
      %3119 = vst.msk [vmem:[#allocation3 + $0xb3] sm:$0xff] %vm2004, %v3078
      %3120 = vst.msk [vmem:[#allocation3 + $0xbb] sm:$0xff] %vm2004, %v3079
      %3121 = vst.msk [vmem:[#allocation3 + $0xc3] sm:$0xff] %vm2004, %v3080
      %3122 = vst.msk [vmem:[#allocation3 + $0xcb] sm:$0xff] %vm2004, %v3081
      %3123 = vst.msk [vmem:[#allocation3 + $0xd3] sm:$0xff] %vm2004, %v3082
      %3124 = vst.msk [vmem:[#allocation3 + $0xdb] sm:$0xff] %vm2004, %v3083
      %3125 = vst.msk [vmem:[#allocation3 + $0xe3] sm:$0xff] %vm2004, %v3084
      %3126 = vst.msk [vmem:[#allocation3 + $0xeb] sm:$0xff] %vm2004, %v3085
      %3127 = vst.msk [vmem:[#allocation3 + $0xf3] sm:$0xff] %vm2004, %v3086
      %3128 = vst.msk [vmem:[#allocation3 + $0xfb] sm:$0xff] %vm2004, %v3087
      %3129 = vst.msk [vmem:[#allocation3 + $0x103] sm:$0xff] %vm2004, %v3088
      %3130 = vst.msk [vmem:[#allocation3 + $0x10b] sm:$0xff] %vm2004, %v3089
      %3131 = vst.msk [vmem:[#allocation3 + $0x113] sm:$0xff] %vm2004, %v3090
      %3132 = vst.msk [vmem:[#allocation3 + $0x11b] sm:$0xff] %vm2004, %v3091
      %3133 = vst.msk [vmem:[#allocation3 + $0x123] sm:$0xff] %vm2004, %v3092
      %3134 = vst.msk [vmem:[#allocation3 + $0x12b] sm:$0xff] %vm2004, %v3093
      %3135 = vst.msk [vmem:[#allocation3 + $0x133] sm:$0xff] %vm2004, %v3094
      %3136 = vst.msk [vmem:[#allocation3 + $0x13b] sm:$0xff] %vm2004, %v3095
      %3137 = vst.msk [vmem:[#allocation3 + $0x143] sm:$0xff] %vm2004, %v3096
      %3138 = vst.msk [vmem:[#allocation3 + $0x14b] sm:$0xff] %vm2004, %v3097
      %vm3139 = vcmask 60416
      %3140 = vst.msk [vmem:[#allocation3 + $0x153] sm:$0xf] %vm3139, %v3098
      %v3141 = vld [vmem:[#allocation3] sm:$0xff]
      %v3142 = vld [vmem:[#allocation3 + $0x8] sm:$0xff]
      %v3143 = vld [vmem:[#allocation3 + $0x10] sm:$0xff]
      %v3144 = vld [vmem:[#allocation3 + $0x18] sm:$0xff]
      %v3145 = vld [vmem:[#allocation3 + $0x20] sm:$0xff]
      %v3146 = vld [vmem:[#allocation3 + $0x28] sm:$0xff]
      %v3147 = vld [vmem:[#allocation3 + $0x30] sm:$0xff]
      %v3148 = vld [vmem:[#allocation3 + $0x38] sm:$0xff]
      %v3149 = vld [vmem:[#allocation3 + $0x40] sm:$0xff]
      %v3150 = vld [vmem:[#allocation3 + $0x48] sm:$0xff]
      %v3151 = vld [vmem:[#allocation3 + $0x50] sm:$0xff]
      %v3152 = vld [vmem:[#allocation3 + $0x58] sm:$0xff]
      %v3153 = vld [vmem:[#allocation3 + $0x60] sm:$0xff]
      %v3154 = vld [vmem:[#allocation3 + $0x68] sm:$0xff]
      %v3155 = vld [vmem:[#allocation3 + $0x70] sm:$0xff]
      %v3156 = vld [vmem:[#allocation3 + $0x78] sm:$0xff]
      %v3157 = vld [vmem:[#allocation3 + $0x80] sm:$0xff]
      %v3158 = vld [vmem:[#allocation3 + $0x88] sm:$0xff]
      %v3159 = vld [vmem:[#allocation3 + $0x90] sm:$0xff]
      %v3160 = vld [vmem:[#allocation3 + $0x98] sm:$0xff]
      %v3161 = vld [vmem:[#allocation3 + $0xa0] sm:$0xff]
      %v3162 = vld [vmem:[#allocation3 + $0xa8] sm:$0xff]
      %v3163 = vld [vmem:[#allocation3 + $0xb0] sm:$0xff]
      %v3164 = vld [vmem:[#allocation3 + $0xb8] sm:$0xff]
      %v3165 = vld [vmem:[#allocation3 + $0xc0] sm:$0xff]
      %v3166 = vld [vmem:[#allocation3 + $0xc8] sm:$0xff]
      %v3167 = vld [vmem:[#allocation3 + $0xd0] sm:$0xff]
      %v3168 = vld [vmem:[#allocation3 + $0xd8] sm:$0xff]
      %v3169 = vld [vmem:[#allocation3 + $0xe0] sm:$0xff]
      %v3170 = vld [vmem:[#allocation3 + $0xe8] sm:$0xff]
      %v3171 = vld [vmem:[#allocation3 + $0xf0] sm:$0xff]
      %v3172 = vld [vmem:[#allocation3 + $0xf8] sm:$0xff]
      %v3173 = vld [vmem:[#allocation3 + $0x100] sm:$0xff]
      %v3174 = vld [vmem:[#allocation3 + $0x108] sm:$0xff]
      %v3175 = vld [vmem:[#allocation3 + $0x110] sm:$0xff]
      %v3176 = vld [vmem:[#allocation3 + $0x118] sm:$0xff]
      %v3177 = vld [vmem:[#allocation3 + $0x120] sm:$0xff]
      %v3178 = vld [vmem:[#allocation3 + $0x128] sm:$0xff]
      %v3179 = vld [vmem:[#allocation3 + $0x130] sm:$0xff]
      %v3180 = vld [vmem:[#allocation3 + $0x138] sm:$0xff]
      %v3181 = vld [vmem:[#allocation3 + $0x140] sm:$0xf]
      %v3182 = vld [vmem:[#allocation3 + $0x1] sm:$0xff]
      %v3183 = vld [vmem:[#allocation3 + $0x9] sm:$0xff]
      %v3184 = vld [vmem:[#allocation3 + $0x11] sm:$0xff]
      %v3185 = vld [vmem:[#allocation3 + $0x19] sm:$0xff]
      %v3186 = vld [vmem:[#allocation3 + $0x21] sm:$0xff]
      %v3187 = vld [vmem:[#allocation3 + $0x29] sm:$0xff]
      %v3188 = vld [vmem:[#allocation3 + $0x31] sm:$0xff]
      %v3189 = vld [vmem:[#allocation3 + $0x39] sm:$0xff]
      %v3190 = vld [vmem:[#allocation3 + $0x41] sm:$0xff]
      %v3191 = vld [vmem:[#allocation3 + $0x49] sm:$0xff]
      %v3192 = vld [vmem:[#allocation3 + $0x51] sm:$0xff]
      %v3193 = vld [vmem:[#allocation3 + $0x59] sm:$0xff]
      %v3194 = vld [vmem:[#allocation3 + $0x61] sm:$0xff]
      %v3195 = vld [vmem:[#allocation3 + $0x69] sm:$0xff]
      %v3196 = vld [vmem:[#allocation3 + $0x71] sm:$0xff]
      %v3197 = vld [vmem:[#allocation3 + $0x79] sm:$0xff]
      %v3198 = vld [vmem:[#allocation3 + $0x81] sm:$0xff]
      %v3199 = vld [vmem:[#allocation3 + $0x89] sm:$0xff]
      %v3200 = vld [vmem:[#allocation3 + $0x91] sm:$0xff]
      %v3201 = vld [vmem:[#allocation3 + $0x99] sm:$0xff]
      %v3202 = vld [vmem:[#allocation3 + $0xa1] sm:$0xff]
      %v3203 = vld [vmem:[#allocation3 + $0xa9] sm:$0xff]
      %v3204 = vld [vmem:[#allocation3 + $0xb1] sm:$0xff]
      %v3205 = vld [vmem:[#allocation3 + $0xb9] sm:$0xff]
      %v3206 = vld [vmem:[#allocation3 + $0xc1] sm:$0xff]
      %v3207 = vld [vmem:[#allocation3 + $0xc9] sm:$0xff]
      %v3208 = vld [vmem:[#allocation3 + $0xd1] sm:$0xff]
      %v3209 = vld [vmem:[#allocation3 + $0xd9] sm:$0xff]
      %v3210 = vld [vmem:[#allocation3 + $0xe1] sm:$0xff]
      %v3211 = vld [vmem:[#allocation3 + $0xe9] sm:$0xff]
      %v3212 = vld [vmem:[#allocation3 + $0xf1] sm:$0xff]
      %v3213 = vld [vmem:[#allocation3 + $0xf9] sm:$0xff]
      %v3214 = vld [vmem:[#allocation3 + $0x101] sm:$0xff]
      %v3215 = vld [vmem:[#allocation3 + $0x109] sm:$0xff]
      %v3216 = vld [vmem:[#allocation3 + $0x111] sm:$0xff]
      %v3217 = vld [vmem:[#allocation3 + $0x119] sm:$0xff]
      %v3218 = vld [vmem:[#allocation3 + $0x121] sm:$0xff]
      %v3219 = vld [vmem:[#allocation3 + $0x129] sm:$0xff]
      %v3220 = vld [vmem:[#allocation3 + $0x131] sm:$0xff]
      %v3221 = vld [vmem:[#allocation3 + $0x139] sm:$0xff]
      %v3222 = vld [vmem:[#allocation3 + $0x141] sm:$0xf]
      %v3223 = vld [vmem:[#allocation3 + $0x2] sm:$0xff]
      %v3224 = vld [vmem:[#allocation3 + $0xa] sm:$0xff]
      %v3225 = vld [vmem:[#allocation3 + $0x12] sm:$0xff]
      %v3226 = vld [vmem:[#allocation3 + $0x1a] sm:$0xff]
      %v3227 = vld [vmem:[#allocation3 + $0x22] sm:$0xff]
      %v3228 = vld [vmem:[#allocation3 + $0x2a] sm:$0xff]
      %v3229 = vld [vmem:[#allocation3 + $0x32] sm:$0xff]
      %v3230 = vld [vmem:[#allocation3 + $0x3a] sm:$0xff]
      %v3231 = vld [vmem:[#allocation3 + $0x42] sm:$0xff]
      %v3232 = vld [vmem:[#allocation3 + $0x4a] sm:$0xff]
      %v3233 = vld [vmem:[#allocation3 + $0x52] sm:$0xff]
      %v3234 = vld [vmem:[#allocation3 + $0x5a] sm:$0xff]
      %v3235 = vld [vmem:[#allocation3 + $0x62] sm:$0xff]
      %v3236 = vld [vmem:[#allocation3 + $0x6a] sm:$0xff]
      %v3237 = vld [vmem:[#allocation3 + $0x72] sm:$0xff]
      %v3238 = vld [vmem:[#allocation3 + $0x7a] sm:$0xff]
      %v3239 = vld [vmem:[#allocation3 + $0x82] sm:$0xff]
      %v3240 = vld [vmem:[#allocation3 + $0x8a] sm:$0xff]
      %v3241 = vld [vmem:[#allocation3 + $0x92] sm:$0xff]
      %v3242 = vld [vmem:[#allocation3 + $0x9a] sm:$0xff]
      %v3243 = vld [vmem:[#allocation3 + $0xa2] sm:$0xff]
      %v3244 = vld [vmem:[#allocation3 + $0xaa] sm:$0xff]
      %v3245 = vld [vmem:[#allocation3 + $0xb2] sm:$0xff]
      %v3246 = vld [vmem:[#allocation3 + $0xba] sm:$0xff]
      %v3247 = vld [vmem:[#allocation3 + $0xc2] sm:$0xff]
      %v3248 = vld [vmem:[#allocation3 + $0xca] sm:$0xff]
      %v3249 = vld [vmem:[#allocation3 + $0xd2] sm:$0xff]
      %v3250 = vld [vmem:[#allocation3 + $0xda] sm:$0xff]
      %v3251 = vld [vmem:[#allocation3 + $0xe2] sm:$0xff]
      %v3252 = vld [vmem:[#allocation3 + $0xea] sm:$0xff]
      %v3253 = vld [vmem:[#allocation3 + $0xf2] sm:$0xff]
      %v3254 = vld [vmem:[#allocation3 + $0xfa] sm:$0xff]
      %v3255 = vld [vmem:[#allocation3 + $0x102] sm:$0xff]
      %v3256 = vld [vmem:[#allocation3 + $0x10a] sm:$0xff]
      %v3257 = vld [vmem:[#allocation3 + $0x112] sm:$0xff]
      %v3258 = vld [vmem:[#allocation3 + $0x11a] sm:$0xff]
      %v3259 = vld [vmem:[#allocation3 + $0x122] sm:$0xff]
      %v3260 = vld [vmem:[#allocation3 + $0x12a] sm:$0xff]
      %v3261 = vld [vmem:[#allocation3 + $0x132] sm:$0xff]
      %v3262 = vld [vmem:[#allocation3 + $0x13a] sm:$0xff]
      %v3263 = vld [vmem:[#allocation3 + $0x142] sm:$0xf]
      %v3264 = vld [vmem:[#allocation3 + $0x142] sm:$0xff]
      %v3265 = vld [vmem:[#allocation3 + $0x14a] sm:$0xff]
      %v3266 = vld [vmem:[#allocation3 + $0x152] sm:$0xf]
      %v3267 = vld [vmem:[#allocation3 + $0x13] sm:$0xff]
      %v3268 = vld [vmem:[#allocation3 + $0x1b] sm:$0xff]
      %v3269 = vld [vmem:[#allocation3 + $0x23] sm:$0xff]
      %v3270 = vld [vmem:[#allocation3 + $0x2b] sm:$0xff]
      %v3271 = vld [vmem:[#allocation3 + $0x33] sm:$0xff]
      %v3272 = vld [vmem:[#allocation3 + $0x3b] sm:$0xff]
      %v3273 = vld [vmem:[#allocation3 + $0x43] sm:$0xff]
      %v3274 = vld [vmem:[#allocation3 + $0x4b] sm:$0xff]
      %v3275 = vld [vmem:[#allocation3 + $0x53] sm:$0xff]
      %v3276 = vld [vmem:[#allocation3 + $0x5b] sm:$0xff]
      %v3277 = vld [vmem:[#allocation3 + $0x63] sm:$0xff]
      %v3278 = vld [vmem:[#allocation3 + $0x6b] sm:$0xff]
      %v3279 = vld [vmem:[#allocation3 + $0x73] sm:$0xff]
      %v3280 = vld [vmem:[#allocation3 + $0x7b] sm:$0xff]
      %v3281 = vld [vmem:[#allocation3 + $0x83] sm:$0xff]
      %v3282 = vld [vmem:[#allocation3 + $0x8b] sm:$0xff]
      %v3283 = vld [vmem:[#allocation3 + $0x93] sm:$0xff]
      %v3284 = vld [vmem:[#allocation3 + $0x9b] sm:$0xff]
      %v3285 = vld [vmem:[#allocation3 + $0xa3] sm:$0xff]
      %v3286 = vld [vmem:[#allocation3 + $0xab] sm:$0xff]
      %v3287 = vld [vmem:[#allocation3 + $0xb3] sm:$0xff]
      %v3288 = vld [vmem:[#allocation3 + $0xbb] sm:$0xff]
      %v3289 = vld [vmem:[#allocation3 + $0xc3] sm:$0xff]
      %v3290 = vld [vmem:[#allocation3 + $0xcb] sm:$0xff]
      %v3291 = vld [vmem:[#allocation3 + $0xd3] sm:$0xff]
      %v3292 = vld [vmem:[#allocation3 + $0xdb] sm:$0xff]
      %v3293 = vld [vmem:[#allocation3 + $0xe3] sm:$0xff]
      %v3294 = vld [vmem:[#allocation3 + $0xeb] sm:$0xff]
      %v3295 = vld [vmem:[#allocation3 + $0xf3] sm:$0xff]
      %v3296 = vld [vmem:[#allocation3 + $0xfb] sm:$0xff]
      %v3297 = vld [vmem:[#allocation3 + $0x103] sm:$0xff]
      %v3298 = vld [vmem:[#allocation3 + $0x10b] sm:$0xff]
      %v3299 = vld [vmem:[#allocation3 + $0x113] sm:$0xff]
      %v3300 = vld [vmem:[#allocation3 + $0x11b] sm:$0xff]
      %v3301 = vld [vmem:[#allocation3 + $0x123] sm:$0xff]
      %v3302 = vld [vmem:[#allocation3 + $0x12b] sm:$0xff]
      %v3303 = vld [vmem:[#allocation3 + $0x133] sm:$0xff]
      %v3304 = vld [vmem:[#allocation3 + $0x13b] sm:$0xff]
      %v3305 = vld [vmem:[#allocation3 + $0x143] sm:$0xff]
      %v3306 = vld [vmem:[#allocation3 + $0x14b] sm:$0xff]
      %v3307 = vld [vmem:[#allocation3 + $0x153] sm:$0xf]
      %v3308 = vld [vmem:[#allocation3 + $0x14] sm:$0xff]
      %v3309 = vld [vmem:[#allocation3 + $0x1c] sm:$0xff]
      %v3310 = vld [vmem:[#allocation3 + $0x24] sm:$0xff]
      %v3311 = vld [vmem:[#allocation3 + $0x2c] sm:$0xff]
      %v3312 = vld [vmem:[#allocation3 + $0x34] sm:$0xff]
      %v3313 = vld [vmem:[#allocation3 + $0x3c] sm:$0xff]
      %v3314 = vld [vmem:[#allocation3 + $0x44] sm:$0xff]
      %v3315 = vld [vmem:[#allocation3 + $0x4c] sm:$0xff]
      %v3316 = vld [vmem:[#allocation3 + $0x54] sm:$0xff]
      %v3317 = vld [vmem:[#allocation3 + $0x5c] sm:$0xff]
      %v3318 = vld [vmem:[#allocation3 + $0x64] sm:$0xff]
      %v3319 = vld [vmem:[#allocation3 + $0x6c] sm:$0xff]
      %v3320 = vld [vmem:[#allocation3 + $0x74] sm:$0xff]
      %v3321 = vld [vmem:[#allocation3 + $0x7c] sm:$0xff]
      %v3322 = vld [vmem:[#allocation3 + $0x84] sm:$0xff]
      %v3323 = vld [vmem:[#allocation3 + $0x8c] sm:$0xff]
      %v3324 = vld [vmem:[#allocation3 + $0x94] sm:$0xff]
      %v3325 = vld [vmem:[#allocation3 + $0x9c] sm:$0xff]
      %v3326 = vld [vmem:[#allocation3 + $0xa4] sm:$0xff]
      %v3327 = vld [vmem:[#allocation3 + $0xac] sm:$0xff]
      %v3328 = vld [vmem:[#allocation3 + $0xb4] sm:$0xff]
      %v3329 = vld [vmem:[#allocation3 + $0xbc] sm:$0xff]
      %v3330 = vld [vmem:[#allocation3 + $0xc4] sm:$0xff]
      %v3331 = vld [vmem:[#allocation3 + $0xcc] sm:$0xff]
      %v3332 = vld [vmem:[#allocation3 + $0xd4] sm:$0xff]
      %v3333 = vld [vmem:[#allocation3 + $0xdc] sm:$0xff]
      %v3334 = vld [vmem:[#allocation3 + $0xe4] sm:$0xff]
      %v3335 = vld [vmem:[#allocation3 + $0xec] sm:$0xff]
      %v3336 = vld [vmem:[#allocation3 + $0xf4] sm:$0xff]
      %v3337 = vld [vmem:[#allocation3 + $0xfc] sm:$0xff]
      %v3338 = vld [vmem:[#allocation3 + $0x104] sm:$0xff]
      %v3339 = vld [vmem:[#allocation3 + $0x10c] sm:$0xff]
      %v3340 = vld [vmem:[#allocation3 + $0x114] sm:$0xff]
      %v3341 = vld [vmem:[#allocation3 + $0x11c] sm:$0xff]
      %v3342 = vld [vmem:[#allocation3 + $0x124] sm:$0xff]
      %v3343 = vld [vmem:[#allocation3 + $0x12c] sm:$0xff]
      %v3344 = vld [vmem:[#allocation3 + $0x134] sm:$0xff]
      %v3345 = vld [vmem:[#allocation3 + $0x13c] sm:$0xff]
      %v3346 = vld [vmem:[#allocation3 + $0x144] sm:$0xff]
      %v3347 = vld [vmem:[#allocation3 + $0x14c] sm:$0xff]
      %v3348 = vld [vmem:[#allocation3 + $0x154] sm:$0xf]
      %v3349 = vld [vmem:[#allocation3 + $0x154] sm:$0xff]
      %v3350 = vld [vmem:[#allocation3 + $0x15c] sm:$0xff]
      %v3351 = vld [vmem:[#allocation3 + $0x164] sm:$0xf]
      %v3352 = vld [vmem:[#allocation3 + $0x25] sm:$0xff]
      %v3353 = vld [vmem:[#allocation3 + $0x2d] sm:$0xff]
      %v3354 = vld [vmem:[#allocation3 + $0x35] sm:$0xff]
      %v3355 = vld [vmem:[#allocation3 + $0x3d] sm:$0xff]
      %v3356 = vld [vmem:[#allocation3 + $0x45] sm:$0xff]
      %v3357 = vld [vmem:[#allocation3 + $0x4d] sm:$0xff]
      %v3358 = vld [vmem:[#allocation3 + $0x55] sm:$0xff]
      %v3359 = vld [vmem:[#allocation3 + $0x5d] sm:$0xff]
      %v3360 = vld [vmem:[#allocation3 + $0x65] sm:$0xff]
      %v3361 = vld [vmem:[#allocation3 + $0x6d] sm:$0xff]
      %v3362 = vld [vmem:[#allocation3 + $0x75] sm:$0xff]
      %v3363 = vld [vmem:[#allocation3 + $0x7d] sm:$0xff]
      %v3364 = vld [vmem:[#allocation3 + $0x85] sm:$0xff]
      %v3365 = vld [vmem:[#allocation3 + $0x8d] sm:$0xff]
      %v3366 = vld [vmem:[#allocation3 + $0x95] sm:$0xff]
      %v3367 = vld [vmem:[#allocation3 + $0x9d] sm:$0xff]
      %v3368 = vld [vmem:[#allocation3 + $0xa5] sm:$0xff]
      %v3369 = vld [vmem:[#allocation3 + $0xad] sm:$0xff]
      %v3370 = vld [vmem:[#allocation3 + $0xb5] sm:$0xff]
      %v3371 = vld [vmem:[#allocation3 + $0xbd] sm:$0xff]
      %v3372 = vld [vmem:[#allocation3 + $0xc5] sm:$0xff]
      %v3373 = vld [vmem:[#allocation3 + $0xcd] sm:$0xff]
      %v3374 = vld [vmem:[#allocation3 + $0xd5] sm:$0xff]
      %v3375 = vld [vmem:[#allocation3 + $0xdd] sm:$0xff]
      %v3376 = vld [vmem:[#allocation3 + $0xe5] sm:$0xff]
      %v3377 = vld [vmem:[#allocation3 + $0xed] sm:$0xff]
      %v3378 = vld [vmem:[#allocation3 + $0xf5] sm:$0xff]
      %v3379 = vld [vmem:[#allocation3 + $0xfd] sm:$0xff]
      %v3380 = vld [vmem:[#allocation3 + $0x105] sm:$0xff]
      %v3381 = vld [vmem:[#allocation3 + $0x10d] sm:$0xff]
      %v3382 = vld [vmem:[#allocation3 + $0x115] sm:$0xff]
      %v3383 = vld [vmem:[#allocation3 + $0x11d] sm:$0xff]
      %v3384 = vld [vmem:[#allocation3 + $0x125] sm:$0xff]
      %v3385 = vld [vmem:[#allocation3 + $0x12d] sm:$0xff]
      %v3386 = vld [vmem:[#allocation3 + $0x135] sm:$0xff]
      %v3387 = vld [vmem:[#allocation3 + $0x13d] sm:$0xff]
      %v3388 = vld [vmem:[#allocation3 + $0x145] sm:$0xff]
      %v3389 = vld [vmem:[#allocation3 + $0x14d] sm:$0xff]
      %v3390 = vld [vmem:[#allocation3 + $0x155] sm:$0xff]
      %v3391 = vld [vmem:[#allocation3 + $0x15d] sm:$0xff]
      %v3392 = vld [vmem:[#allocation3 + $0x165] sm:$0xf]
      %v3393 = vld [vmem:[#allocation3 + $0x26] sm:$0xff]
      %v3394 = vld [vmem:[#allocation3 + $0x2e] sm:$0xff]
      %v3395 = vld [vmem:[#allocation3 + $0x36] sm:$0xff]
      %v3396 = vld [vmem:[#allocation3 + $0x3e] sm:$0xff]
      %v3397 = vld [vmem:[#allocation3 + $0x46] sm:$0xff]
      %v3398 = vld [vmem:[#allocation3 + $0x4e] sm:$0xff]
      %v3399 = vld [vmem:[#allocation3 + $0x56] sm:$0xff]
      %v3400 = vld [vmem:[#allocation3 + $0x5e] sm:$0xff]
      %v3401 = vld [vmem:[#allocation3 + $0x66] sm:$0xff]
      %v3402 = vld [vmem:[#allocation3 + $0x6e] sm:$0xff]
      %v3403 = vld [vmem:[#allocation3 + $0x76] sm:$0xff]
      %v3404 = vld [vmem:[#allocation3 + $0x7e] sm:$0xff]
      %v3405 = vld [vmem:[#allocation3 + $0x86] sm:$0xff]
      %v3406 = vld [vmem:[#allocation3 + $0x8e] sm:$0xff]
      %v3407 = vld [vmem:[#allocation3 + $0x96] sm:$0xff]
      %v3408 = vld [vmem:[#allocation3 + $0x9e] sm:$0xff]
      %v3409 = vld [vmem:[#allocation3 + $0xa6] sm:$0xff]
      %v3410 = vld [vmem:[#allocation3 + $0xae] sm:$0xff]
      %v3411 = vld [vmem:[#allocation3 + $0xb6] sm:$0xff]
      %v3412 = vld [vmem:[#allocation3 + $0xbe] sm:$0xff]
      %v3413 = vld [vmem:[#allocation3 + $0xc6] sm:$0xff]
      %v3414 = vld [vmem:[#allocation3 + $0xce] sm:$0xff]
      %v3415 = vld [vmem:[#allocation3 + $0xd6] sm:$0xff]
      %v3416 = vld [vmem:[#allocation3 + $0xde] sm:$0xff]
      %v3417 = vld [vmem:[#allocation3 + $0xe6] sm:$0xff]
      %v3418 = vld [vmem:[#allocation3 + $0xee] sm:$0xff]
      %v3419 = vld [vmem:[#allocation3 + $0xf6] sm:$0xff]
      %v3420 = vld [vmem:[#allocation3 + $0xfe] sm:$0xff]
      %v3421 = vld [vmem:[#allocation3 + $0x106] sm:$0xff]
      %v3422 = vld [vmem:[#allocation3 + $0x10e] sm:$0xff]
      %v3423 = vld [vmem:[#allocation3 + $0x116] sm:$0xff]
      %v3424 = vld [vmem:[#allocation3 + $0x11e] sm:$0xff]
      %v3425 = vld [vmem:[#allocation3 + $0x126] sm:$0xff]
      %v3426 = vld [vmem:[#allocation3 + $0x12e] sm:$0xff]
      %v3427 = vld [vmem:[#allocation3 + $0x136] sm:$0xff]
      %v3428 = vld [vmem:[#allocation3 + $0x13e] sm:$0xff]
      %v3429 = vld [vmem:[#allocation3 + $0x146] sm:$0xff]
      %v3430 = vld [vmem:[#allocation3 + $0x14e] sm:$0xff]
      %v3431 = vld [vmem:[#allocation3 + $0x156] sm:$0xff]
      %v3432 = vld [vmem:[#allocation3 + $0x15e] sm:$0xff]
      %v3433 = vld [vmem:[#allocation3 + $0x166] sm:$0xf]
      %3475 = vrot.lane.b32.xlu0 %v3182, 8
      %v3476 = vpop.permute.xlu0 %3475
      %3477 = vrot.lane.b32.xlu0 %v3183, 8
      %v3478 = vpop.permute.xlu0 %3477
      %3479 = vrot.lane.b32.xlu0 %v3184, 8
      %v3480 = vpop.permute.xlu0 %3479
      %3481 = vrot.lane.b32.xlu0 %v3185, 8
      %v3482 = vpop.permute.xlu0 %3481
      %3483 = vrot.lane.b32.xlu0 %v3186, 8
      %v3484 = vpop.permute.xlu0 %3483
      %3485 = vrot.lane.b32.xlu0 %v3187, 8
      %v3486 = vpop.permute.xlu0 %3485
      %3487 = vrot.lane.b32.xlu0 %v3188, 8
      %v3488 = vpop.permute.xlu0 %3487
      %3489 = vrot.lane.b32.xlu0 %v3189, 8
      %v3490 = vpop.permute.xlu0 %3489
      %3491 = vrot.lane.b32.xlu0 %v3190, 8
      %v3492 = vpop.permute.xlu0 %3491
      %3493 = vrot.lane.b32.xlu0 %v3191, 8
      %v3494 = vpop.permute.xlu0 %3493
      %3495 = vrot.lane.b32.xlu0 %v3192, 8
      %v3496 = vpop.permute.xlu0 %3495
      %3497 = vrot.lane.b32.xlu0 %v3193, 8
      %v3498 = vpop.permute.xlu0 %3497
      %3499 = vrot.lane.b32.xlu0 %v3194, 8
      %v3500 = vpop.permute.xlu0 %3499
      %3501 = vrot.lane.b32.xlu0 %v3195, 8
      %v3502 = vpop.permute.xlu0 %3501
      %3503 = vrot.lane.b32.xlu0 %v3196, 8
      %v3504 = vpop.permute.xlu0 %3503
      %3505 = vrot.lane.b32.xlu0 %v3197, 8
      %v3506 = vpop.permute.xlu0 %3505
      %3507 = vrot.lane.b32.xlu0 %v3198, 8
      %v3508 = vpop.permute.xlu0 %3507
      %3509 = vrot.lane.b32.xlu0 %v3199, 8
      %v3510 = vpop.permute.xlu0 %3509
      %3511 = vrot.lane.b32.xlu0 %v3200, 8
      %v3512 = vpop.permute.xlu0 %3511
      %3513 = vrot.lane.b32.xlu0 %v3201, 8
      %v3514 = vpop.permute.xlu0 %3513
      %3515 = vrot.lane.b32.xlu0 %v3202, 8
      %v3516 = vpop.permute.xlu0 %3515
      %3517 = vrot.lane.b32.xlu0 %v3203, 8
      %v3518 = vpop.permute.xlu0 %3517
      %3519 = vrot.lane.b32.xlu0 %v3204, 8
      %v3520 = vpop.permute.xlu0 %3519
      %3521 = vrot.lane.b32.xlu0 %v3205, 8
      %v3522 = vpop.permute.xlu0 %3521
      %3523 = vrot.lane.b32.xlu0 %v3206, 8
      %v3524 = vpop.permute.xlu0 %3523
      %3525 = vrot.lane.b32.xlu0 %v3207, 8
      %v3526 = vpop.permute.xlu0 %3525
      %3527 = vrot.lane.b32.xlu0 %v3208, 8
      %v3528 = vpop.permute.xlu0 %3527
      %3529 = vrot.lane.b32.xlu0 %v3209, 8
      %v3530 = vpop.permute.xlu0 %3529
      %3531 = vrot.lane.b32.xlu0 %v3210, 8
      %v3532 = vpop.permute.xlu0 %3531
      %3533 = vrot.lane.b32.xlu0 %v3211, 8
      %v3534 = vpop.permute.xlu0 %3533
      %3535 = vrot.lane.b32.xlu0 %v3212, 8
      %v3536 = vpop.permute.xlu0 %3535
      %3537 = vrot.lane.b32.xlu0 %v3213, 8
      %v3538 = vpop.permute.xlu0 %3537
      %3539 = vrot.lane.b32.xlu0 %v3214, 8
      %v3540 = vpop.permute.xlu0 %3539
      %3541 = vrot.lane.b32.xlu0 %v3215, 8
      %v3542 = vpop.permute.xlu0 %3541
      %3543 = vrot.lane.b32.xlu0 %v3216, 8
      %v3544 = vpop.permute.xlu0 %3543
      %3545 = vrot.lane.b32.xlu0 %v3217, 8
      %v3546 = vpop.permute.xlu0 %3545
      %3547 = vrot.lane.b32.xlu0 %v3218, 8
      %v3548 = vpop.permute.xlu0 %3547
      %3549 = vrot.lane.b32.xlu0 %v3219, 8
      %v3550 = vpop.permute.xlu0 %3549
      %3551 = vrot.lane.b32.xlu0 %v3220, 8
      %v3552 = vpop.permute.xlu0 %3551
      %3553 = vrot.lane.b32.xlu0 %v3221, 8
      %v3554 = vpop.permute.xlu0 %3553
      %3555 = vrot.lane.b32.xlu0 %v3222, 8
      %v3556 = vpop.permute.xlu0 %3555
      %3639 = vrot.lane.b32.xlu0 %v3223, 16
      %v3640 = vpop.permute.xlu0 %3639
      %3641 = vrot.lane.b32.xlu0 %v3224, 16
      %v3642 = vpop.permute.xlu0 %3641
      %3643 = vrot.lane.b32.xlu0 %v3225, 16
      %v3644 = vpop.permute.xlu0 %3643
      %3645 = vrot.lane.b32.xlu0 %v3226, 16
      %v3646 = vpop.permute.xlu0 %3645
      %3647 = vrot.lane.b32.xlu0 %v3227, 16
      %v3648 = vpop.permute.xlu0 %3647
      %3649 = vrot.lane.b32.xlu0 %v3228, 16
      %v3650 = vpop.permute.xlu0 %3649
      %3651 = vrot.lane.b32.xlu0 %v3229, 16
      %v3652 = vpop.permute.xlu0 %3651
      %3653 = vrot.lane.b32.xlu0 %v3230, 16
      %v3654 = vpop.permute.xlu0 %3653
      %3655 = vrot.lane.b32.xlu0 %v3231, 16
      %v3656 = vpop.permute.xlu0 %3655
      %3657 = vrot.lane.b32.xlu0 %v3232, 16
      %v3658 = vpop.permute.xlu0 %3657
      %3659 = vrot.lane.b32.xlu0 %v3233, 16
      %v3660 = vpop.permute.xlu0 %3659
      %3661 = vrot.lane.b32.xlu0 %v3234, 16
      %v3662 = vpop.permute.xlu0 %3661
      %3663 = vrot.lane.b32.xlu0 %v3235, 16
      %v3664 = vpop.permute.xlu0 %3663
      %3665 = vrot.lane.b32.xlu0 %v3236, 16
      %v3666 = vpop.permute.xlu0 %3665
      %3667 = vrot.lane.b32.xlu0 %v3237, 16
      %v3668 = vpop.permute.xlu0 %3667
      %3669 = vrot.lane.b32.xlu0 %v3238, 16
      %v3670 = vpop.permute.xlu0 %3669
      %3671 = vrot.lane.b32.xlu0 %v3239, 16
      %v3672 = vpop.permute.xlu0 %3671
      %3673 = vrot.lane.b32.xlu0 %v3240, 16
      %v3674 = vpop.permute.xlu0 %3673
      %3675 = vrot.lane.b32.xlu0 %v3241, 16
      %v3676 = vpop.permute.xlu0 %3675
      %3677 = vrot.lane.b32.xlu0 %v3242, 16
      %v3678 = vpop.permute.xlu0 %3677
      %3679 = vrot.lane.b32.xlu0 %v3243, 16
      %v3680 = vpop.permute.xlu0 %3679
      %3681 = vrot.lane.b32.xlu0 %v3244, 16
      %v3682 = vpop.permute.xlu0 %3681
      %3683 = vrot.lane.b32.xlu0 %v3245, 16
      %v3684 = vpop.permute.xlu0 %3683
      %3685 = vrot.lane.b32.xlu0 %v3246, 16
      %v3686 = vpop.permute.xlu0 %3685
      %3687 = vrot.lane.b32.xlu0 %v3247, 16
      %v3688 = vpop.permute.xlu0 %3687
      %3689 = vrot.lane.b32.xlu0 %v3248, 16
      %v3690 = vpop.permute.xlu0 %3689
      %3691 = vrot.lane.b32.xlu0 %v3249, 16
      %v3692 = vpop.permute.xlu0 %3691
      %3693 = vrot.lane.b32.xlu0 %v3250, 16
      %v3694 = vpop.permute.xlu0 %3693
      %3695 = vrot.lane.b32.xlu0 %v3251, 16
      %v3696 = vpop.permute.xlu0 %3695
      %3697 = vrot.lane.b32.xlu0 %v3252, 16
      %v3698 = vpop.permute.xlu0 %3697
      %3699 = vrot.lane.b32.xlu0 %v3253, 16
      %v3700 = vpop.permute.xlu0 %3699
      %3701 = vrot.lane.b32.xlu0 %v3254, 16
      %v3702 = vpop.permute.xlu0 %3701
      %3703 = vrot.lane.b32.xlu0 %v3255, 16
      %v3704 = vpop.permute.xlu0 %3703
      %3705 = vrot.lane.b32.xlu0 %v3256, 16
      %v3706 = vpop.permute.xlu0 %3705
      %3707 = vrot.lane.b32.xlu0 %v3257, 16
      %v3708 = vpop.permute.xlu0 %3707
      %3709 = vrot.lane.b32.xlu0 %v3258, 16
      %v3710 = vpop.permute.xlu0 %3709
      %3711 = vrot.lane.b32.xlu0 %v3259, 16
      %v3712 = vpop.permute.xlu0 %3711
      %3713 = vrot.lane.b32.xlu0 %v3260, 16
      %v3714 = vpop.permute.xlu0 %3713
      %3715 = vrot.lane.b32.xlu0 %v3261, 16
      %v3716 = vpop.permute.xlu0 %3715
      %3717 = vrot.lane.b32.xlu0 %v3262, 16
      %v3718 = vpop.permute.xlu0 %3717
      %3719 = vrot.lane.b32.xlu0 %v3263, 16
      %v3720 = vpop.permute.xlu0 %3719
      %3765 = vrot.lane.b32.xlu0 %v3225, 24
      %v3766 = vpop.permute.xlu0 %3765
      %3767 = vrot.lane.b32.xlu0 %v3226, 24
      %v3768 = vpop.permute.xlu0 %3767
      %3769 = vrot.lane.b32.xlu0 %v3227, 24
      %v3770 = vpop.permute.xlu0 %3769
      %3771 = vrot.lane.b32.xlu0 %v3228, 24
      %v3772 = vpop.permute.xlu0 %3771
      %3773 = vrot.lane.b32.xlu0 %v3229, 24
      %v3774 = vpop.permute.xlu0 %3773
      %3775 = vrot.lane.b32.xlu0 %v3230, 24
      %v3776 = vpop.permute.xlu0 %3775
      %3777 = vrot.lane.b32.xlu0 %v3231, 24
      %v3778 = vpop.permute.xlu0 %3777
      %3779 = vrot.lane.b32.xlu0 %v3232, 24
      %v3780 = vpop.permute.xlu0 %3779
      %3781 = vrot.lane.b32.xlu0 %v3233, 24
      %v3782 = vpop.permute.xlu0 %3781
      %3783 = vrot.lane.b32.xlu0 %v3234, 24
      %v3784 = vpop.permute.xlu0 %3783
      %3785 = vrot.lane.b32.xlu0 %v3235, 24
      %v3786 = vpop.permute.xlu0 %3785
      %3787 = vrot.lane.b32.xlu0 %v3236, 24
      %v3788 = vpop.permute.xlu0 %3787
      %3789 = vrot.lane.b32.xlu0 %v3237, 24
      %v3790 = vpop.permute.xlu0 %3789
      %3791 = vrot.lane.b32.xlu0 %v3238, 24
      %v3792 = vpop.permute.xlu0 %3791
      %3793 = vrot.lane.b32.xlu0 %v3239, 24
      %v3794 = vpop.permute.xlu0 %3793
      %3795 = vrot.lane.b32.xlu0 %v3240, 24
      %v3796 = vpop.permute.xlu0 %3795
      %3797 = vrot.lane.b32.xlu0 %v3241, 24
      %v3798 = vpop.permute.xlu0 %3797
      %3799 = vrot.lane.b32.xlu0 %v3242, 24
      %v3800 = vpop.permute.xlu0 %3799
      %3801 = vrot.lane.b32.xlu0 %v3243, 24
      %v3802 = vpop.permute.xlu0 %3801
      %3803 = vrot.lane.b32.xlu0 %v3244, 24
      %v3804 = vpop.permute.xlu0 %3803
      %3805 = vrot.lane.b32.xlu0 %v3245, 24
      %v3806 = vpop.permute.xlu0 %3805
      %3807 = vrot.lane.b32.xlu0 %v3246, 24
      %v3808 = vpop.permute.xlu0 %3807
      %3809 = vrot.lane.b32.xlu0 %v3247, 24
      %v3810 = vpop.permute.xlu0 %3809
      %3811 = vrot.lane.b32.xlu0 %v3248, 24
      %v3812 = vpop.permute.xlu0 %3811
      %3813 = vrot.lane.b32.xlu0 %v3249, 24
      %v3814 = vpop.permute.xlu0 %3813
      %3815 = vrot.lane.b32.xlu0 %v3250, 24
      %v3816 = vpop.permute.xlu0 %3815
      %3817 = vrot.lane.b32.xlu0 %v3251, 24
      %v3818 = vpop.permute.xlu0 %3817
      %3819 = vrot.lane.b32.xlu0 %v3252, 24
      %v3820 = vpop.permute.xlu0 %3819
      %3821 = vrot.lane.b32.xlu0 %v3253, 24
      %v3822 = vpop.permute.xlu0 %3821
      %3823 = vrot.lane.b32.xlu0 %v3254, 24
      %v3824 = vpop.permute.xlu0 %3823
      %3825 = vrot.lane.b32.xlu0 %v3255, 24
      %v3826 = vpop.permute.xlu0 %3825
      %3827 = vrot.lane.b32.xlu0 %v3256, 24
      %v3828 = vpop.permute.xlu0 %3827
      %3829 = vrot.lane.b32.xlu0 %v3257, 24
      %v3830 = vpop.permute.xlu0 %3829
      %3831 = vrot.lane.b32.xlu0 %v3258, 24
      %v3832 = vpop.permute.xlu0 %3831
      %3833 = vrot.lane.b32.xlu0 %v3259, 24
      %v3834 = vpop.permute.xlu0 %3833
      %3835 = vrot.lane.b32.xlu0 %v3260, 24
      %v3836 = vpop.permute.xlu0 %3835
      %3837 = vrot.lane.b32.xlu0 %v3261, 24
      %v3838 = vpop.permute.xlu0 %3837
      %3839 = vrot.lane.b32.xlu0 %v3262, 24
      %v3840 = vpop.permute.xlu0 %3839
      %3841 = vrot.lane.b32.xlu0 %v3264, 24
      %v3842 = vpop.permute.xlu0 %3841
      %3843 = vrot.lane.b32.xlu0 %v3265, 24
      %v3844 = vpop.permute.xlu0 %3843
      %3845 = vrot.lane.b32.xlu0 %v3266, 24
      %v3846 = vpop.permute.xlu0 %3845
      %3929 = vrot.lane.b32.xlu0 %v3267, 32
      %v3930 = vpop.permute.xlu0 %3929
      %3931 = vrot.lane.b32.xlu0 %v3268, 32
      %v3932 = vpop.permute.xlu0 %3931
      %3933 = vrot.lane.b32.xlu0 %v3269, 32
      %v3934 = vpop.permute.xlu0 %3933
      %3935 = vrot.lane.b32.xlu0 %v3270, 32
      %v3936 = vpop.permute.xlu0 %3935
      %3937 = vrot.lane.b32.xlu0 %v3271, 32
      %v3938 = vpop.permute.xlu0 %3937
      %3939 = vrot.lane.b32.xlu0 %v3272, 32
      %v3940 = vpop.permute.xlu0 %3939
      %3941 = vrot.lane.b32.xlu0 %v3273, 32
      %v3942 = vpop.permute.xlu0 %3941
      %3943 = vrot.lane.b32.xlu0 %v3274, 32
      %v3944 = vpop.permute.xlu0 %3943
      %3945 = vrot.lane.b32.xlu0 %v3275, 32
      %v3946 = vpop.permute.xlu0 %3945
      %3947 = vrot.lane.b32.xlu0 %v3276, 32
      %v3948 = vpop.permute.xlu0 %3947
      %3949 = vrot.lane.b32.xlu0 %v3277, 32
      %v3950 = vpop.permute.xlu0 %3949
      %3951 = vrot.lane.b32.xlu0 %v3278, 32
      %v3952 = vpop.permute.xlu0 %3951
      %3953 = vrot.lane.b32.xlu0 %v3279, 32
      %v3954 = vpop.permute.xlu0 %3953
      %3955 = vrot.lane.b32.xlu0 %v3280, 32
      %v3956 = vpop.permute.xlu0 %3955
      %3957 = vrot.lane.b32.xlu0 %v3281, 32
      %v3958 = vpop.permute.xlu0 %3957
      %3959 = vrot.lane.b32.xlu0 %v3282, 32
      %v3960 = vpop.permute.xlu0 %3959
      %3961 = vrot.lane.b32.xlu0 %v3283, 32
      %v3962 = vpop.permute.xlu0 %3961
      %3963 = vrot.lane.b32.xlu0 %v3284, 32
      %v3964 = vpop.permute.xlu0 %3963
      %3965 = vrot.lane.b32.xlu0 %v3285, 32
      %v3966 = vpop.permute.xlu0 %3965
      %3967 = vrot.lane.b32.xlu0 %v3286, 32
      %v3968 = vpop.permute.xlu0 %3967
      %3969 = vrot.lane.b32.xlu0 %v3287, 32
      %v3970 = vpop.permute.xlu0 %3969
      %3971 = vrot.lane.b32.xlu0 %v3288, 32
      %v3972 = vpop.permute.xlu0 %3971
      %3973 = vrot.lane.b32.xlu0 %v3289, 32
      %v3974 = vpop.permute.xlu0 %3973
      %3975 = vrot.lane.b32.xlu0 %v3290, 32
      %v3976 = vpop.permute.xlu0 %3975
      %3977 = vrot.lane.b32.xlu0 %v3291, 32
      %v3978 = vpop.permute.xlu0 %3977
      %3979 = vrot.lane.b32.xlu0 %v3292, 32
      %v3980 = vpop.permute.xlu0 %3979
      %3981 = vrot.lane.b32.xlu0 %v3293, 32
      %v3982 = vpop.permute.xlu0 %3981
      %3983 = vrot.lane.b32.xlu0 %v3294, 32
      %v3984 = vpop.permute.xlu0 %3983
      %3985 = vrot.lane.b32.xlu0 %v3295, 32
      %v3986 = vpop.permute.xlu0 %3985
      %3987 = vrot.lane.b32.xlu0 %v3296, 32
      %v3988 = vpop.permute.xlu0 %3987
      %3989 = vrot.lane.b32.xlu0 %v3297, 32
      %v3990 = vpop.permute.xlu0 %3989
      %3991 = vrot.lane.b32.xlu0 %v3298, 32
      %v3992 = vpop.permute.xlu0 %3991
      %3993 = vrot.lane.b32.xlu0 %v3299, 32
      %v3994 = vpop.permute.xlu0 %3993
      %3995 = vrot.lane.b32.xlu0 %v3300, 32
      %v3996 = vpop.permute.xlu0 %3995
      %3997 = vrot.lane.b32.xlu0 %v3301, 32
      %v3998 = vpop.permute.xlu0 %3997
      %3999 = vrot.lane.b32.xlu0 %v3302, 32
      %v4000 = vpop.permute.xlu0 %3999
      %4001 = vrot.lane.b32.xlu0 %v3303, 32
      %v4002 = vpop.permute.xlu0 %4001
      %4003 = vrot.lane.b32.xlu0 %v3304, 32
      %v4004 = vpop.permute.xlu0 %4003
      %4005 = vrot.lane.b32.xlu0 %v3305, 32
      %v4006 = vpop.permute.xlu0 %4005
      %4007 = vrot.lane.b32.xlu0 %v3306, 32
      %v4008 = vpop.permute.xlu0 %4007
      %4009 = vrot.lane.b32.xlu0 %v3307, 32
      %v4010 = vpop.permute.xlu0 %4009
      %4093 = vrot.lane.b32.xlu0 %v3308, 40
      %v4094 = vpop.permute.xlu0 %4093
      %4095 = vrot.lane.b32.xlu0 %v3309, 40
      %v4096 = vpop.permute.xlu0 %4095
      %4097 = vrot.lane.b32.xlu0 %v3310, 40
      %v4098 = vpop.permute.xlu0 %4097
      %4099 = vrot.lane.b32.xlu0 %v3311, 40
      %v4100 = vpop.permute.xlu0 %4099
      %4101 = vrot.lane.b32.xlu0 %v3312, 40
      %v4102 = vpop.permute.xlu0 %4101
      %4103 = vrot.lane.b32.xlu0 %v3313, 40
      %v4104 = vpop.permute.xlu0 %4103
      %4105 = vrot.lane.b32.xlu0 %v3314, 40
      %v4106 = vpop.permute.xlu0 %4105
      %4107 = vrot.lane.b32.xlu0 %v3315, 40
      %v4108 = vpop.permute.xlu0 %4107
      %4109 = vrot.lane.b32.xlu0 %v3316, 40
      %v4110 = vpop.permute.xlu0 %4109
      %4111 = vrot.lane.b32.xlu0 %v3317, 40
      %v4112 = vpop.permute.xlu0 %4111
      %4113 = vrot.lane.b32.xlu0 %v3318, 40
      %v4114 = vpop.permute.xlu0 %4113
      %4115 = vrot.lane.b32.xlu0 %v3319, 40
      %v4116 = vpop.permute.xlu0 %4115
      %4117 = vrot.lane.b32.xlu0 %v3320, 40
      %v4118 = vpop.permute.xlu0 %4117
      %4119 = vrot.lane.b32.xlu0 %v3321, 40
      %v4120 = vpop.permute.xlu0 %4119
      %4121 = vrot.lane.b32.xlu0 %v3322, 40
      %v4122 = vpop.permute.xlu0 %4121
      %4123 = vrot.lane.b32.xlu0 %v3323, 40
      %v4124 = vpop.permute.xlu0 %4123
      %4125 = vrot.lane.b32.xlu0 %v3324, 40
      %v4126 = vpop.permute.xlu0 %4125
      %4127 = vrot.lane.b32.xlu0 %v3325, 40
      %v4128 = vpop.permute.xlu0 %4127
      %4129 = vrot.lane.b32.xlu0 %v3326, 40
      %v4130 = vpop.permute.xlu0 %4129
      %4131 = vrot.lane.b32.xlu0 %v3327, 40
      %v4132 = vpop.permute.xlu0 %4131
      %4133 = vrot.lane.b32.xlu0 %v3328, 40
      %v4134 = vpop.permute.xlu0 %4133
      %4135 = vrot.lane.b32.xlu0 %v3329, 40
      %v4136 = vpop.permute.xlu0 %4135
      %4137 = vrot.lane.b32.xlu0 %v3330, 40
      %v4138 = vpop.permute.xlu0 %4137
      %4139 = vrot.lane.b32.xlu0 %v3331, 40
      %v4140 = vpop.permute.xlu0 %4139
      %4141 = vrot.lane.b32.xlu0 %v3332, 40
      %v4142 = vpop.permute.xlu0 %4141
      %4143 = vrot.lane.b32.xlu0 %v3333, 40
      %v4144 = vpop.permute.xlu0 %4143
      %4145 = vrot.lane.b32.xlu0 %v3334, 40
      %v4146 = vpop.permute.xlu0 %4145
      %4147 = vrot.lane.b32.xlu0 %v3335, 40
      %v4148 = vpop.permute.xlu0 %4147
      %4149 = vrot.lane.b32.xlu0 %v3336, 40
      %v4150 = vpop.permute.xlu0 %4149
      %4151 = vrot.lane.b32.xlu0 %v3337, 40
      %v4152 = vpop.permute.xlu0 %4151
      %4153 = vrot.lane.b32.xlu0 %v3338, 40
      %v4154 = vpop.permute.xlu0 %4153
      %4155 = vrot.lane.b32.xlu0 %v3339, 40
      %v4156 = vpop.permute.xlu0 %4155
      %4157 = vrot.lane.b32.xlu0 %v3340, 40
      %v4158 = vpop.permute.xlu0 %4157
      %4159 = vrot.lane.b32.xlu0 %v3341, 40
      %v4160 = vpop.permute.xlu0 %4159
      %4161 = vrot.lane.b32.xlu0 %v3342, 40
      %v4162 = vpop.permute.xlu0 %4161
      %4163 = vrot.lane.b32.xlu0 %v3343, 40
      %v4164 = vpop.permute.xlu0 %4163
      %4165 = vrot.lane.b32.xlu0 %v3344, 40
      %v4166 = vpop.permute.xlu0 %4165
      %4167 = vrot.lane.b32.xlu0 %v3345, 40
      %v4168 = vpop.permute.xlu0 %4167
      %4169 = vrot.lane.b32.xlu0 %v3346, 40
      %v4170 = vpop.permute.xlu0 %4169
      %4171 = vrot.lane.b32.xlu0 %v3347, 40
      %v4172 = vpop.permute.xlu0 %4171
      %4173 = vrot.lane.b32.xlu0 %v3348, 40
      %v4174 = vpop.permute.xlu0 %4173
      %4219 = vrot.lane.b32.xlu0 %v3310, 48
      %v4220 = vpop.permute.xlu0 %4219
      %4221 = vrot.lane.b32.xlu0 %v3311, 48
      %v4222 = vpop.permute.xlu0 %4221
      %4223 = vrot.lane.b32.xlu0 %v3312, 48
      %v4224 = vpop.permute.xlu0 %4223
      %4225 = vrot.lane.b32.xlu0 %v3313, 48
      %v4226 = vpop.permute.xlu0 %4225
      %4227 = vrot.lane.b32.xlu0 %v3314, 48
      %v4228 = vpop.permute.xlu0 %4227
      %4229 = vrot.lane.b32.xlu0 %v3315, 48
      %v4230 = vpop.permute.xlu0 %4229
      %4231 = vrot.lane.b32.xlu0 %v3316, 48
      %v4232 = vpop.permute.xlu0 %4231
      %4233 = vrot.lane.b32.xlu0 %v3317, 48
      %v4234 = vpop.permute.xlu0 %4233
      %4235 = vrot.lane.b32.xlu0 %v3318, 48
      %v4236 = vpop.permute.xlu0 %4235
      %4237 = vrot.lane.b32.xlu0 %v3319, 48
      %v4238 = vpop.permute.xlu0 %4237
      %4239 = vrot.lane.b32.xlu0 %v3320, 48
      %v4240 = vpop.permute.xlu0 %4239
      %4241 = vrot.lane.b32.xlu0 %v3321, 48
      %v4242 = vpop.permute.xlu0 %4241
      %4243 = vrot.lane.b32.xlu0 %v3322, 48
      %v4244 = vpop.permute.xlu0 %4243
      %4245 = vrot.lane.b32.xlu0 %v3323, 48
      %v4246 = vpop.permute.xlu0 %4245
      %4247 = vrot.lane.b32.xlu0 %v3324, 48
      %v4248 = vpop.permute.xlu0 %4247
      %4249 = vrot.lane.b32.xlu0 %v3325, 48
      %v4250 = vpop.permute.xlu0 %4249
      %4251 = vrot.lane.b32.xlu0 %v3326, 48
      %v4252 = vpop.permute.xlu0 %4251
      %4253 = vrot.lane.b32.xlu0 %v3327, 48
      %v4254 = vpop.permute.xlu0 %4253
      %4255 = vrot.lane.b32.xlu0 %v3328, 48
      %v4256 = vpop.permute.xlu0 %4255
      %4257 = vrot.lane.b32.xlu0 %v3329, 48
      %v4258 = vpop.permute.xlu0 %4257
      %4259 = vrot.lane.b32.xlu0 %v3330, 48
      %v4260 = vpop.permute.xlu0 %4259
      %4261 = vrot.lane.b32.xlu0 %v3331, 48
      %v4262 = vpop.permute.xlu0 %4261
      %4263 = vrot.lane.b32.xlu0 %v3332, 48
      %v4264 = vpop.permute.xlu0 %4263
      %4265 = vrot.lane.b32.xlu0 %v3333, 48
      %v4266 = vpop.permute.xlu0 %4265
      %4267 = vrot.lane.b32.xlu0 %v3334, 48
      %v4268 = vpop.permute.xlu0 %4267
      %4269 = vrot.lane.b32.xlu0 %v3335, 48
      %v4270 = vpop.permute.xlu0 %4269
      %4271 = vrot.lane.b32.xlu0 %v3336, 48
      %v4272 = vpop.permute.xlu0 %4271
      %4273 = vrot.lane.b32.xlu0 %v3337, 48
      %v4274 = vpop.permute.xlu0 %4273
      %4275 = vrot.lane.b32.xlu0 %v3338, 48
      %v4276 = vpop.permute.xlu0 %4275
      %4277 = vrot.lane.b32.xlu0 %v3339, 48
      %v4278 = vpop.permute.xlu0 %4277
      %4279 = vrot.lane.b32.xlu0 %v3340, 48
      %v4280 = vpop.permute.xlu0 %4279
      %4281 = vrot.lane.b32.xlu0 %v3341, 48
      %v4282 = vpop.permute.xlu0 %4281
      %4283 = vrot.lane.b32.xlu0 %v3342, 48
      %v4284 = vpop.permute.xlu0 %4283
      %4285 = vrot.lane.b32.xlu0 %v3343, 48
      %v4286 = vpop.permute.xlu0 %4285
      %4287 = vrot.lane.b32.xlu0 %v3344, 48
      %v4288 = vpop.permute.xlu0 %4287
      %4289 = vrot.lane.b32.xlu0 %v3345, 48
      %v4290 = vpop.permute.xlu0 %4289
      %4291 = vrot.lane.b32.xlu0 %v3346, 48
      %v4292 = vpop.permute.xlu0 %4291
      %4293 = vrot.lane.b32.xlu0 %v3347, 48
      %v4294 = vpop.permute.xlu0 %4293
      %4295 = vrot.lane.b32.xlu0 %v3349, 48
      %v4296 = vpop.permute.xlu0 %4295
      %4297 = vrot.lane.b32.xlu0 %v3350, 48
      %v4298 = vpop.permute.xlu0 %4297
      %4299 = vrot.lane.b32.xlu0 %v3351, 48
      %v4300 = vpop.permute.xlu0 %4299
      %4383 = vrot.lane.b32.xlu0 %v3352, 56
      %v4384 = vpop.permute.xlu0 %4383
      %4385 = vrot.lane.b32.xlu0 %v3353, 56
      %v4386 = vpop.permute.xlu0 %4385
      %4387 = vrot.lane.b32.xlu0 %v3354, 56
      %v4388 = vpop.permute.xlu0 %4387
      %4389 = vrot.lane.b32.xlu0 %v3355, 56
      %v4390 = vpop.permute.xlu0 %4389
      %4391 = vrot.lane.b32.xlu0 %v3356, 56
      %v4392 = vpop.permute.xlu0 %4391
      %4393 = vrot.lane.b32.xlu0 %v3357, 56
      %v4394 = vpop.permute.xlu0 %4393
      %4395 = vrot.lane.b32.xlu0 %v3358, 56
      %v4396 = vpop.permute.xlu0 %4395
      %4397 = vrot.lane.b32.xlu0 %v3359, 56
      %v4398 = vpop.permute.xlu0 %4397
      %4399 = vrot.lane.b32.xlu0 %v3360, 56
      %v4400 = vpop.permute.xlu0 %4399
      %4401 = vrot.lane.b32.xlu0 %v3361, 56
      %v4402 = vpop.permute.xlu0 %4401
      %4403 = vrot.lane.b32.xlu0 %v3362, 56
      %v4404 = vpop.permute.xlu0 %4403
      %4405 = vrot.lane.b32.xlu0 %v3363, 56
      %v4406 = vpop.permute.xlu0 %4405
      %4407 = vrot.lane.b32.xlu0 %v3364, 56
      %v4408 = vpop.permute.xlu0 %4407
      %4409 = vrot.lane.b32.xlu0 %v3365, 56
      %v4410 = vpop.permute.xlu0 %4409
      %4411 = vrot.lane.b32.xlu0 %v3366, 56
      %v4412 = vpop.permute.xlu0 %4411
      %4413 = vrot.lane.b32.xlu0 %v3367, 56
      %v4414 = vpop.permute.xlu0 %4413
      %4415 = vrot.lane.b32.xlu0 %v3368, 56
      %v4416 = vpop.permute.xlu0 %4415
      %4417 = vrot.lane.b32.xlu0 %v3369, 56
      %v4418 = vpop.permute.xlu0 %4417
      %4419 = vrot.lane.b32.xlu0 %v3370, 56
      %v4420 = vpop.permute.xlu0 %4419
      %4421 = vrot.lane.b32.xlu0 %v3371, 56
      %v4422 = vpop.permute.xlu0 %4421
      %4423 = vrot.lane.b32.xlu0 %v3372, 56
      %v4424 = vpop.permute.xlu0 %4423
      %4425 = vrot.lane.b32.xlu0 %v3373, 56
      %v4426 = vpop.permute.xlu0 %4425
      %4427 = vrot.lane.b32.xlu0 %v3374, 56
      %v4428 = vpop.permute.xlu0 %4427
      %4429 = vrot.lane.b32.xlu0 %v3375, 56
      %v4430 = vpop.permute.xlu0 %4429
      %4431 = vrot.lane.b32.xlu0 %v3376, 56
      %v4432 = vpop.permute.xlu0 %4431
      %4433 = vrot.lane.b32.xlu0 %v3377, 56
      %v4434 = vpop.permute.xlu0 %4433
      %4435 = vrot.lane.b32.xlu0 %v3378, 56
      %v4436 = vpop.permute.xlu0 %4435
      %4437 = vrot.lane.b32.xlu0 %v3379, 56
      %v4438 = vpop.permute.xlu0 %4437
      %4439 = vrot.lane.b32.xlu0 %v3380, 56
      %v4440 = vpop.permute.xlu0 %4439
      %4441 = vrot.lane.b32.xlu0 %v3381, 56
      %v4442 = vpop.permute.xlu0 %4441
      %4443 = vrot.lane.b32.xlu0 %v3382, 56
      %v4444 = vpop.permute.xlu0 %4443
      %4445 = vrot.lane.b32.xlu0 %v3383, 56
      %v4446 = vpop.permute.xlu0 %4445
      %4447 = vrot.lane.b32.xlu0 %v3384, 56
      %v4448 = vpop.permute.xlu0 %4447
      %4449 = vrot.lane.b32.xlu0 %v3385, 56
      %v4450 = vpop.permute.xlu0 %4449
      %4451 = vrot.lane.b32.xlu0 %v3386, 56
      %v4452 = vpop.permute.xlu0 %4451
      %4453 = vrot.lane.b32.xlu0 %v3387, 56
      %v4454 = vpop.permute.xlu0 %4453
      %4455 = vrot.lane.b32.xlu0 %v3388, 56
      %v4456 = vpop.permute.xlu0 %4455
      %4457 = vrot.lane.b32.xlu0 %v3389, 56
      %v4458 = vpop.permute.xlu0 %4457
      %4459 = vrot.lane.b32.xlu0 %v3390, 56
      %v4460 = vpop.permute.xlu0 %4459
      %4461 = vrot.lane.b32.xlu0 %v3391, 56
      %v4462 = vpop.permute.xlu0 %4461
      %4463 = vrot.lane.b32.xlu0 %v3392, 56
      %v4464 = vpop.permute.xlu0 %4463
      %4547 = vrot.lane.b32.xlu0 %v3393, 64
      %v4548 = vpop.permute.xlu0 %4547
      %4549 = vrot.lane.b32.xlu0 %v3394, 64
      %v4550 = vpop.permute.xlu0 %4549
      %4551 = vrot.lane.b32.xlu0 %v3395, 64
      %v4552 = vpop.permute.xlu0 %4551
      %4553 = vrot.lane.b32.xlu0 %v3396, 64
      %v4554 = vpop.permute.xlu0 %4553
      %4555 = vrot.lane.b32.xlu0 %v3397, 64
      %v4556 = vpop.permute.xlu0 %4555
      %4557 = vrot.lane.b32.xlu0 %v3398, 64
      %v4558 = vpop.permute.xlu0 %4557
      %4559 = vrot.lane.b32.xlu0 %v3399, 64
      %v4560 = vpop.permute.xlu0 %4559
      %4561 = vrot.lane.b32.xlu0 %v3400, 64
      %v4562 = vpop.permute.xlu0 %4561
      %4563 = vrot.lane.b32.xlu0 %v3401, 64
      %v4564 = vpop.permute.xlu0 %4563
      %4565 = vrot.lane.b32.xlu0 %v3402, 64
      %v4566 = vpop.permute.xlu0 %4565
      %4567 = vrot.lane.b32.xlu0 %v3403, 64
      %v4568 = vpop.permute.xlu0 %4567
      %4569 = vrot.lane.b32.xlu0 %v3404, 64
      %v4570 = vpop.permute.xlu0 %4569
      %4571 = vrot.lane.b32.xlu0 %v3405, 64
      %v4572 = vpop.permute.xlu0 %4571
      %4573 = vrot.lane.b32.xlu0 %v3406, 64
      %v4574 = vpop.permute.xlu0 %4573
      %4575 = vrot.lane.b32.xlu0 %v3407, 64
      %v4576 = vpop.permute.xlu0 %4575
      %4577 = vrot.lane.b32.xlu0 %v3408, 64
      %v4578 = vpop.permute.xlu0 %4577
      %4579 = vrot.lane.b32.xlu0 %v3409, 64
      %v4580 = vpop.permute.xlu0 %4579
      %4581 = vrot.lane.b32.xlu0 %v3410, 64
      %v4582 = vpop.permute.xlu0 %4581
      %4583 = vrot.lane.b32.xlu0 %v3411, 64
      %v4584 = vpop.permute.xlu0 %4583
      %4585 = vrot.lane.b32.xlu0 %v3412, 64
      %v4586 = vpop.permute.xlu0 %4585
      %4587 = vrot.lane.b32.xlu0 %v3413, 64
      %v4588 = vpop.permute.xlu0 %4587
      %4589 = vrot.lane.b32.xlu0 %v3414, 64
      %v4590 = vpop.permute.xlu0 %4589
      %4591 = vrot.lane.b32.xlu0 %v3415, 64
      %v4592 = vpop.permute.xlu0 %4591
      %4593 = vrot.lane.b32.xlu0 %v3416, 64
      %v4594 = vpop.permute.xlu0 %4593
      %4595 = vrot.lane.b32.xlu0 %v3417, 64
      %v4596 = vpop.permute.xlu0 %4595
      %4597 = vrot.lane.b32.xlu0 %v3418, 64
      %v4598 = vpop.permute.xlu0 %4597
      %4599 = vrot.lane.b32.xlu0 %v3419, 64
      %v4600 = vpop.permute.xlu0 %4599
      %4601 = vrot.lane.b32.xlu0 %v3420, 64
      %v4602 = vpop.permute.xlu0 %4601
      %4603 = vrot.lane.b32.xlu0 %v3421, 64
      %v4604 = vpop.permute.xlu0 %4603
      %4605 = vrot.lane.b32.xlu0 %v3422, 64
      %v4606 = vpop.permute.xlu0 %4605
      %4607 = vrot.lane.b32.xlu0 %v3423, 64
      %v4608 = vpop.permute.xlu0 %4607
      %4609 = vrot.lane.b32.xlu0 %v3424, 64
      %v4610 = vpop.permute.xlu0 %4609
      %4611 = vrot.lane.b32.xlu0 %v3425, 64
      %v4612 = vpop.permute.xlu0 %4611
      %4613 = vrot.lane.b32.xlu0 %v3426, 64
      %v4614 = vpop.permute.xlu0 %4613
      %4615 = vrot.lane.b32.xlu0 %v3427, 64
      %v4616 = vpop.permute.xlu0 %4615
      %4617 = vrot.lane.b32.xlu0 %v3428, 64
      %v4618 = vpop.permute.xlu0 %4617
      %4619 = vrot.lane.b32.xlu0 %v3429, 64
      %v4620 = vpop.permute.xlu0 %4619
      %4621 = vrot.lane.b32.xlu0 %v3430, 64
      %v4622 = vpop.permute.xlu0 %4621
      %4623 = vrot.lane.b32.xlu0 %v3431, 64
      %v4624 = vpop.permute.xlu0 %4623
      %4625 = vrot.lane.b32.xlu0 %v3432, 64
      %v4626 = vpop.permute.xlu0 %4625
      %4627 = vrot.lane.b32.xlu0 %v3433, 64
      %v4628 = vpop.permute.xlu0 %4627
      %v4670 = vsel %vm2004, %v3141, %v3476
      %v4671 = vsel %vm2004, %v3142, %v3478
      %v4672 = vsel %vm2004, %v3143, %v3480
      %v4673 = vsel %vm2004, %v3144, %v3482
      %v4674 = vsel %vm2004, %v3145, %v3484
      %v4675 = vsel %vm2004, %v3146, %v3486
      %v4676 = vsel %vm2004, %v3147, %v3488
      %v4677 = vsel %vm2004, %v3148, %v3490
      %v4678 = vsel %vm2004, %v3149, %v3492
      %v4679 = vsel %vm2004, %v3150, %v3494
      %v4680 = vsel %vm2004, %v3151, %v3496
      %v4681 = vsel %vm2004, %v3152, %v3498
      %v4682 = vsel %vm2004, %v3153, %v3500
      %v4683 = vsel %vm2004, %v3154, %v3502
      %v4684 = vsel %vm2004, %v3155, %v3504
      %v4685 = vsel %vm2004, %v3156, %v3506
      %v4686 = vsel %vm2004, %v3157, %v3508
      %v4687 = vsel %vm2004, %v3158, %v3510
      %v4688 = vsel %vm2004, %v3159, %v3512
      %v4689 = vsel %vm2004, %v3160, %v3514
      %v4690 = vsel %vm2004, %v3161, %v3516
      %v4691 = vsel %vm2004, %v3162, %v3518
      %v4692 = vsel %vm2004, %v3163, %v3520
      %v4693 = vsel %vm2004, %v3164, %v3522
      %v4694 = vsel %vm2004, %v3165, %v3524
      %v4695 = vsel %vm2004, %v3166, %v3526
      %v4696 = vsel %vm2004, %v3167, %v3528
      %v4697 = vsel %vm2004, %v3168, %v3530
      %v4698 = vsel %vm2004, %v3169, %v3532
      %v4699 = vsel %vm2004, %v3170, %v3534
      %v4700 = vsel %vm2004, %v3171, %v3536
      %v4701 = vsel %vm2004, %v3172, %v3538
      %v4702 = vsel %vm2004, %v3173, %v3540
      %v4703 = vsel %vm2004, %v3174, %v3542
      %v4704 = vsel %vm2004, %v3175, %v3544
      %v4705 = vsel %vm2004, %v3176, %v3546
      %v4706 = vsel %vm2004, %v3177, %v3548
      %v4707 = vsel %vm2004, %v3178, %v3550
      %v4708 = vsel %vm2004, %v3179, %v3552
      %v4709 = vsel %vm2004, %v3180, %v3554
      %v4710 = vsel %vm2004, %v3181, %v3556
      %v4711 = vsel %vm2088, %v4670, %v3640
      %v4712 = vsel %vm2088, %v4671, %v3642
      %v4713 = vsel %vm2088, %v4672, %v3644
      %v4714 = vsel %vm2088, %v4673, %v3646
      %v4715 = vsel %vm2088, %v4674, %v3648
      %v4716 = vsel %vm2088, %v4675, %v3650
      %v4717 = vsel %vm2088, %v4676, %v3652
      %v4718 = vsel %vm2088, %v4677, %v3654
      %v4719 = vsel %vm2088, %v4678, %v3656
      %v4720 = vsel %vm2088, %v4679, %v3658
      %v4721 = vsel %vm2088, %v4680, %v3660
      %v4722 = vsel %vm2088, %v4681, %v3662
      %v4723 = vsel %vm2088, %v4682, %v3664
      %v4724 = vsel %vm2088, %v4683, %v3666
      %v4725 = vsel %vm2088, %v4684, %v3668
      %v4726 = vsel %vm2088, %v4685, %v3670
      %v4727 = vsel %vm2088, %v4686, %v3672
      %v4728 = vsel %vm2088, %v4687, %v3674
      %v4729 = vsel %vm2088, %v4688, %v3676
      %v4730 = vsel %vm2088, %v4689, %v3678
      %v4731 = vsel %vm2088, %v4690, %v3680
      %v4732 = vsel %vm2088, %v4691, %v3682
      %v4733 = vsel %vm2088, %v4692, %v3684
      %v4734 = vsel %vm2088, %v4693, %v3686
      %v4735 = vsel %vm2088, %v4694, %v3688
      %v4736 = vsel %vm2088, %v4695, %v3690
      %v4737 = vsel %vm2088, %v4696, %v3692
      %v4738 = vsel %vm2088, %v4697, %v3694
      %v4739 = vsel %vm2088, %v4698, %v3696
      %v4740 = vsel %vm2088, %v4699, %v3698
      %v4741 = vsel %vm2088, %v4700, %v3700
      %v4742 = vsel %vm2088, %v4701, %v3702
      %v4743 = vsel %vm2088, %v4702, %v3704
      %v4744 = vsel %vm2088, %v4703, %v3706
      %v4745 = vsel %vm2088, %v4704, %v3708
      %v4746 = vsel %vm2088, %v4705, %v3710
      %v4747 = vsel %vm2088, %v4706, %v3712
      %v4748 = vsel %vm2088, %v4707, %v3714
      %v4749 = vsel %vm2088, %v4708, %v3716
      %v4750 = vsel %vm2088, %v4709, %v3718
      %v4751 = vsel %vm2088, %v4710, %v3720
      %v4752 = vsel %vm2172, %v4711, %v3766
      %v4753 = vsel %vm2172, %v4712, %v3768
      %v4754 = vsel %vm2172, %v4713, %v3770
      %v4755 = vsel %vm2172, %v4714, %v3772
      %v4756 = vsel %vm2172, %v4715, %v3774
      %v4757 = vsel %vm2172, %v4716, %v3776
      %v4758 = vsel %vm2172, %v4717, %v3778
      %v4759 = vsel %vm2172, %v4718, %v3780
      %v4760 = vsel %vm2172, %v4719, %v3782
      %v4761 = vsel %vm2172, %v4720, %v3784
      %v4762 = vsel %vm2172, %v4721, %v3786
      %v4763 = vsel %vm2172, %v4722, %v3788
      %v4764 = vsel %vm2172, %v4723, %v3790
      %v4765 = vsel %vm2172, %v4724, %v3792
      %v4766 = vsel %vm2172, %v4725, %v3794
      %v4767 = vsel %vm2172, %v4726, %v3796
      %v4768 = vsel %vm2172, %v4727, %v3798
      %v4769 = vsel %vm2172, %v4728, %v3800
      %v4770 = vsel %vm2172, %v4729, %v3802
      %v4771 = vsel %vm2172, %v4730, %v3804
      %v4772 = vsel %vm2172, %v4731, %v3806
      %v4773 = vsel %vm2172, %v4732, %v3808
      %v4774 = vsel %vm2172, %v4733, %v3810
      %v4775 = vsel %vm2172, %v4734, %v3812
      %v4776 = vsel %vm2172, %v4735, %v3814
      %v4777 = vsel %vm2172, %v4736, %v3816
      %v4778 = vsel %vm2172, %v4737, %v3818
      %v4779 = vsel %vm2172, %v4738, %v3820
      %v4780 = vsel %vm2172, %v4739, %v3822
      %v4781 = vsel %vm2172, %v4740, %v3824
      %v4782 = vsel %vm2172, %v4741, %v3826
      %v4783 = vsel %vm2172, %v4742, %v3828
      %v4784 = vsel %vm2172, %v4743, %v3830
      %v4785 = vsel %vm2172, %v4744, %v3832
      %v4786 = vsel %vm2172, %v4745, %v3834
      %v4787 = vsel %vm2172, %v4746, %v3836
      %v4788 = vsel %vm2172, %v4747, %v3838
      %v4789 = vsel %vm2172, %v4748, %v3840
      %v4790 = vsel %vm2172, %v4749, %v3842
      %v4791 = vsel %vm2172, %v4750, %v3844
      %v4792 = vsel %vm2172, %v4751, %v3846
      %v4793 = vsel %vm2256, %v4752, %v3930
      %v4794 = vsel %vm2256, %v4753, %v3932
      %v4795 = vsel %vm2256, %v4754, %v3934
      %v4796 = vsel %vm2256, %v4755, %v3936
      %v4797 = vsel %vm2256, %v4756, %v3938
      %v4798 = vsel %vm2256, %v4757, %v3940
      %v4799 = vsel %vm2256, %v4758, %v3942
      %v4800 = vsel %vm2256, %v4759, %v3944
      %v4801 = vsel %vm2256, %v4760, %v3946
      %v4802 = vsel %vm2256, %v4761, %v3948
      %v4803 = vsel %vm2256, %v4762, %v3950
      %v4804 = vsel %vm2256, %v4763, %v3952
      %v4805 = vsel %vm2256, %v4764, %v3954
      %v4806 = vsel %vm2256, %v4765, %v3956
      %v4807 = vsel %vm2256, %v4766, %v3958
      %v4808 = vsel %vm2256, %v4767, %v3960
      %v4809 = vsel %vm2256, %v4768, %v3962
      %v4810 = vsel %vm2256, %v4769, %v3964
      %v4811 = vsel %vm2256, %v4770, %v3966
      %v4812 = vsel %vm2256, %v4771, %v3968
      %v4813 = vsel %vm2256, %v4772, %v3970
      %v4814 = vsel %vm2256, %v4773, %v3972
      %v4815 = vsel %vm2256, %v4774, %v3974
      %v4816 = vsel %vm2256, %v4775, %v3976
      %v4817 = vsel %vm2256, %v4776, %v3978
      %v4818 = vsel %vm2256, %v4777, %v3980
      %v4819 = vsel %vm2256, %v4778, %v3982
      %v4820 = vsel %vm2256, %v4779, %v3984
      %v4821 = vsel %vm2256, %v4780, %v3986
      %v4822 = vsel %vm2256, %v4781, %v3988
      %v4823 = vsel %vm2256, %v4782, %v3990
      %v4824 = vsel %vm2256, %v4783, %v3992
      %v4825 = vsel %vm2256, %v4784, %v3994
      %v4826 = vsel %vm2256, %v4785, %v3996
      %v4827 = vsel %vm2256, %v4786, %v3998
      %v4828 = vsel %vm2256, %v4787, %v4000
      %v4829 = vsel %vm2256, %v4788, %v4002
      %v4830 = vsel %vm2256, %v4789, %v4004
      %v4831 = vsel %vm2256, %v4790, %v4006
      %v4832 = vsel %vm2256, %v4791, %v4008
      %v4833 = vsel %vm2256, %v4792, %v4010
      %vm4834 = vcmask 326656
      %v4835 = vsel %vm4834, %v4793, %v4094
      %v4836 = vsel %vm4834, %v4794, %v4096
      %v4837 = vsel %vm4834, %v4795, %v4098
      %v4838 = vsel %vm4834, %v4796, %v4100
      %v4839 = vsel %vm4834, %v4797, %v4102
      %v4840 = vsel %vm4834, %v4798, %v4104
      %v4841 = vsel %vm4834, %v4799, %v4106
      %v4842 = vsel %vm4834, %v4800, %v4108
      %v4843 = vsel %vm4834, %v4801, %v4110
      %v4844 = vsel %vm4834, %v4802, %v4112
      %v4845 = vsel %vm4834, %v4803, %v4114
      %v4846 = vsel %vm4834, %v4804, %v4116
      %v4847 = vsel %vm4834, %v4805, %v4118
      %v4848 = vsel %vm4834, %v4806, %v4120
      %v4849 = vsel %vm4834, %v4807, %v4122
      %v4850 = vsel %vm4834, %v4808, %v4124
      %v4851 = vsel %vm4834, %v4809, %v4126
      %v4852 = vsel %vm4834, %v4810, %v4128
      %v4853 = vsel %vm4834, %v4811, %v4130
      %v4854 = vsel %vm4834, %v4812, %v4132
      %v4855 = vsel %vm4834, %v4813, %v4134
      %v4856 = vsel %vm4834, %v4814, %v4136
      %v4857 = vsel %vm4834, %v4815, %v4138
      %v4858 = vsel %vm4834, %v4816, %v4140
      %v4859 = vsel %vm4834, %v4817, %v4142
      %v4860 = vsel %vm4834, %v4818, %v4144
      %v4861 = vsel %vm4834, %v4819, %v4146
      %v4862 = vsel %vm4834, %v4820, %v4148
      %v4863 = vsel %vm4834, %v4821, %v4150
      %v4864 = vsel %vm4834, %v4822, %v4152
      %v4865 = vsel %vm4834, %v4823, %v4154
      %v4866 = vsel %vm4834, %v4824, %v4156
      %v4867 = vsel %vm4834, %v4825, %v4158
      %v4868 = vsel %vm4834, %v4826, %v4160
      %v4869 = vsel %vm4834, %v4827, %v4162
      %v4870 = vsel %vm4834, %v4828, %v4164
      %v4871 = vsel %vm4834, %v4829, %v4166
      %v4872 = vsel %vm4834, %v4830, %v4168
      %v4873 = vsel %vm4834, %v4831, %v4170
      %v4874 = vsel %vm4834, %v4832, %v4172
      %v4875 = vsel %vm4834, %v4833, %v4174
      %vm4876 = vcmask 392192
      %v4877 = vsel %vm4876, %v4835, %v4220
      %v4878 = vsel %vm4876, %v4836, %v4222
      %v4879 = vsel %vm4876, %v4837, %v4224
      %v4880 = vsel %vm4876, %v4838, %v4226
      %v4881 = vsel %vm4876, %v4839, %v4228
      %v4882 = vsel %vm4876, %v4840, %v4230
      %v4883 = vsel %vm4876, %v4841, %v4232
      %v4884 = vsel %vm4876, %v4842, %v4234
      %v4885 = vsel %vm4876, %v4843, %v4236
      %v4886 = vsel %vm4876, %v4844, %v4238
      %v4887 = vsel %vm4876, %v4845, %v4240
      %v4888 = vsel %vm4876, %v4846, %v4242
      %v4889 = vsel %vm4876, %v4847, %v4244
      %v4890 = vsel %vm4876, %v4848, %v4246
      %v4891 = vsel %vm4876, %v4849, %v4248
      %v4892 = vsel %vm4876, %v4850, %v4250
      %v4893 = vsel %vm4876, %v4851, %v4252
      %v4894 = vsel %vm4876, %v4852, %v4254
      %v4895 = vsel %vm4876, %v4853, %v4256
      %v4896 = vsel %vm4876, %v4854, %v4258
      %v4897 = vsel %vm4876, %v4855, %v4260
      %v4898 = vsel %vm4876, %v4856, %v4262
      %v4899 = vsel %vm4876, %v4857, %v4264
      %v4900 = vsel %vm4876, %v4858, %v4266
      %v4901 = vsel %vm4876, %v4859, %v4268
      %v4902 = vsel %vm4876, %v4860, %v4270
      %v4903 = vsel %vm4876, %v4861, %v4272
      %v4904 = vsel %vm4876, %v4862, %v4274
      %v4905 = vsel %vm4876, %v4863, %v4276
      %v4906 = vsel %vm4876, %v4864, %v4278
      %v4907 = vsel %vm4876, %v4865, %v4280
      %v4908 = vsel %vm4876, %v4866, %v4282
      %v4909 = vsel %vm4876, %v4867, %v4284
      %v4910 = vsel %vm4876, %v4868, %v4286
      %v4911 = vsel %vm4876, %v4869, %v4288
      %v4912 = vsel %vm4876, %v4870, %v4290
      %v4913 = vsel %vm4876, %v4871, %v4292
      %v4914 = vsel %vm4876, %v4872, %v4294
      %v4915 = vsel %vm4876, %v4873, %v4296
      %v4916 = vsel %vm4876, %v4874, %v4298
      %v4917 = vsel %vm4876, %v4875, %v4300
      %vm4918 = vcmask 457728
      %v4919 = vsel %vm4918, %v4877, %v4384
      %v4920 = vsel %vm4918, %v4878, %v4386
      %v4921 = vsel %vm4918, %v4879, %v4388
      %v4922 = vsel %vm4918, %v4880, %v4390
      %v4923 = vsel %vm4918, %v4881, %v4392
      %v4924 = vsel %vm4918, %v4882, %v4394
      %v4925 = vsel %vm4918, %v4883, %v4396
      %v4926 = vsel %vm4918, %v4884, %v4398
      %v4927 = vsel %vm4918, %v4885, %v4400
      %v4928 = vsel %vm4918, %v4886, %v4402
      %v4929 = vsel %vm4918, %v4887, %v4404
      %v4930 = vsel %vm4918, %v4888, %v4406
      %v4931 = vsel %vm4918, %v4889, %v4408
      %v4932 = vsel %vm4918, %v4890, %v4410
      %v4933 = vsel %vm4918, %v4891, %v4412
      %v4934 = vsel %vm4918, %v4892, %v4414
      %v4935 = vsel %vm4918, %v4893, %v4416
      %v4936 = vsel %vm4918, %v4894, %v4418
      %v4937 = vsel %vm4918, %v4895, %v4420
      %v4938 = vsel %vm4918, %v4896, %v4422
      %v4939 = vsel %vm4918, %v4897, %v4424
      %v4940 = vsel %vm4918, %v4898, %v4426
      %v4941 = vsel %vm4918, %v4899, %v4428
      %v4942 = vsel %vm4918, %v4900, %v4430
      %v4943 = vsel %vm4918, %v4901, %v4432
      %v4944 = vsel %vm4918, %v4902, %v4434
      %v4945 = vsel %vm4918, %v4903, %v4436
      %v4946 = vsel %vm4918, %v4904, %v4438
      %v4947 = vsel %vm4918, %v4905, %v4440
      %v4948 = vsel %vm4918, %v4906, %v4442
      %v4949 = vsel %vm4918, %v4907, %v4444
      %v4950 = vsel %vm4918, %v4908, %v4446
      %v4951 = vsel %vm4918, %v4909, %v4448
      %v4952 = vsel %vm4918, %v4910, %v4450
      %v4953 = vsel %vm4918, %v4911, %v4452
      %v4954 = vsel %vm4918, %v4912, %v4454
      %v4955 = vsel %vm4918, %v4913, %v4456
      %v4956 = vsel %vm4918, %v4914, %v4458
      %v4957 = vsel %vm4918, %v4915, %v4460
      %v4958 = vsel %vm4918, %v4916, %v4462
      %v4959 = vsel %vm4918, %v4917, %v4464
      %vm4960 = vcmask 523264
      %v4961 = vsel %vm4960, %v4919, %v4548
      %v4962 = vsel %vm4960, %v4920, %v4550
      %v4963 = vsel %vm4960, %v4921, %v4552
      %v4964 = vsel %vm4960, %v4922, %v4554
      %v4965 = vsel %vm4960, %v4923, %v4556
      %v4966 = vsel %vm4960, %v4924, %v4558
      %v4967 = vsel %vm4960, %v4925, %v4560
      %v4968 = vsel %vm4960, %v4926, %v4562
      %v4969 = vsel %vm4960, %v4927, %v4564
      %v4970 = vsel %vm4960, %v4928, %v4566
      %v4971 = vsel %vm4960, %v4929, %v4568
      %v4972 = vsel %vm4960, %v4930, %v4570
      %v4973 = vsel %vm4960, %v4931, %v4572
      %v4974 = vsel %vm4960, %v4932, %v4574
      %v4975 = vsel %vm4960, %v4933, %v4576
      %v4976 = vsel %vm4960, %v4934, %v4578
      %v4977 = vsel %vm4960, %v4935, %v4580
      %v4978 = vsel %vm4960, %v4936, %v4582
      %v4979 = vsel %vm4960, %v4937, %v4584
      %v4980 = vsel %vm4960, %v4938, %v4586
      %v4981 = vsel %vm4960, %v4939, %v4588
      %v4982 = vsel %vm4960, %v4940, %v4590
      %v4983 = vsel %vm4960, %v4941, %v4592
      %v4984 = vsel %vm4960, %v4942, %v4594
      %v4985 = vsel %vm4960, %v4943, %v4596
      %v4986 = vsel %vm4960, %v4944, %v4598
      %v4987 = vsel %vm4960, %v4945, %v4600
      %v4988 = vsel %vm4960, %v4946, %v4602
      %v4989 = vsel %vm4960, %v4947, %v4604
      %v4990 = vsel %vm4960, %v4948, %v4606
      %v4991 = vsel %vm4960, %v4949, %v4608
      %v4992 = vsel %vm4960, %v4950, %v4610
      %v4993 = vsel %vm4960, %v4951, %v4612
      %v4994 = vsel %vm4960, %v4952, %v4614
      %v4995 = vsel %vm4960, %v4953, %v4616
      %v4996 = vsel %vm4960, %v4954, %v4618
      %v4997 = vsel %vm4960, %v4955, %v4620
      %v4998 = vsel %vm4960, %v4956, %v4622
      %v4999 = vsel %vm4960, %v4957, %v4624
      %v5000 = vsel %vm4960, %v4958, %v4626
      %v5001 = vsel %vm4960, %v4959, %v4628
      %v5002 = vpack.c.bf16 %v4962, %v4961
      %v5003 = vpack.c.bf16 %v4964, %v4963
      %v5004 = vpack.c.bf16 %v4966, %v4965
      %v5005 = vpack.c.bf16 %v4968, %v4967
      %v5006 = vpack.c.bf16 %v4970, %v4969
      %v5007 = vpack.c.bf16 %v4972, %v4971
      %v5008 = vpack.c.bf16 %v4974, %v4973
      %v5009 = vpack.c.bf16 %v4976, %v4975
      %v5010 = vpack.c.bf16 %v4978, %v4977
      %v5011 = vpack.c.bf16 %v4980, %v4979
      %v5012 = vpack.c.bf16 %v4982, %v4981
      %v5013 = vpack.c.bf16 %v4984, %v4983
      %v5014 = vpack.c.bf16 %v4986, %v4985
      %v5015 = vpack.c.bf16 %v4988, %v4987
      %v5016 = vpack.c.bf16 %v4990, %v4989
      %v5017 = vpack.c.bf16 %v4992, %v4991
      %v5018 = vpack.c.bf16 %v4994, %v4993
      %v5019 = vpack.c.bf16 %v4996, %v4995
      %v5020 = vpack.c.bf16 %v4998, %v4997
      %v5021 = vpack.c.bf16 %v5000, %v4999
      %v5022 = vpack.c.bf16 %v5001, %v5001
      %v5023 = vld [vmem:[%s4] sm:$0xf]
      %v5024 = vld [vmem:[%s4 + $0x4] sm:$0xf]
      %v5025 = vld [vmem:[%s4 + $0x8] sm:$0xf]
      %v5026 = vld [vmem:[%s4 + $0xc] sm:$0xf]
      %v5027 = vld [vmem:[%s4 + $0x10] sm:$0xf]
      %v5028 = vld [vmem:[%s4 + $0x14] sm:$0xf]
      %v5029 = vld [vmem:[%s4 + $0x18] sm:$0xf]
      %v5030 = vld [vmem:[%s4 + $0x1c] sm:$0xf]
      %v5031 = vld [vmem:[%s4 + $0x20] sm:$0xf]
      %v5032 = vld [vmem:[%s5] sm:$0x1]
      %v5034 = vperm.slane %v5032, 0
      %v5045 = vunpack.c.l.b16 %v5023
      %v5046 = vunpack.c.l.b16 %v5024
      %v5047 = vunpack.c.l.b16 %v5025
      %v5048 = vunpack.c.l.b16 %v5026
      %v5049 = vunpack.c.l.b16 %v5027
      %v5050 = vunpack.c.l.b16 %v5028
      %v5051 = vunpack.c.l.b16 %v5029
      %v5052 = vunpack.c.l.b16 %v5030
      %v5053 = vunpack.c.l.b16 %v5031
      %v5054 = vpack.c.b16 %v5046, %v5045
      %v5055 = vpack.c.b16 %v5048, %v5047
      %v5056 = vpack.c.b16 %v5050, %v5049
      %v5057 = vpack.c.b16 %v5052, %v5051
      %v5058 = vpack.c.b16 %v5053, %v5053
      %vm5063 = vcmask 588800
      %v5065 = vsel %vm5063, %v5002, 0
      %v5068 = vsel %vm5063, %v5003, 0
      %v5071 = vsel %vm5063, %v5004, 0
      %v5074 = vsel %vm5063, %v5005, 0
      %v5077 = vsel %vm5063, %v5006, 0
      %v5080 = vsel %vm5063, %v5007, 0
      %v5083 = vsel %vm5063, %v5008, 0
      %v5086 = vsel %vm5063, %v5009, 0
      %v5089 = vsel %vm5063, %v5010, 0
      %v5092 = vsel %vm5063, %v5011, 0
      %v5095 = vsel %vm5063, %v5012, 0
      %v5098 = vsel %vm5063, %v5013, 0
      %v5101 = vsel %vm5063, %v5014, 0
      %v5104 = vsel %vm5063, %v5015, 0
      %v5107 = vsel %vm5063, %v5016, 0
      %v5110 = vsel %vm5063, %v5017, 0
      %v5113 = vsel %vm5063, %v5018, 0
      %v5116 = vsel %vm5063, %v5019, 0
      %v5119 = vsel %vm5063, %v5020, 0
      %v5122 = vsel %vm5063, %v5021, 0
      %v5125 = vsel %vm5063, %v5022, 0
      %vm5127 = vcmask 1043456
      %v5129 = vsel %vm5127, %v5058, 0
      %5131 = vmatpush.bf16.msra.mxu0 0
      %5132 = vmatpush.bf16.msra.mxu0 0
      %5133 = vmatpush.bf16.msra.mxu0 0
      %5134 = vmatpush.bf16.msra.mxu0 %v5129
      %5135 = vmatpush.bf16.msra.mxu0 %v5057
      %5136 = vmatpush.bf16.msra.mxu0 %v5056
      %5137 = vmatpush.bf16.msra.mxu0 %v5055
      %5138 = vmatpush.bf16.msra.mxu0 %v5054
      %5139 = vmatmul.bf16.gmra.mxu0 %v5065
      %v5140 = vpop.f32.mrf.mxu0
      %v5141 = vadd.f32 %v5034, %v5140
      %v5142 = vpop.f32.mrf.mxu0
      %v5143 = vadd.f32 %v5034, %v5142
      %5144 = vmatmul.bf16.gmra.mxu0 %v5068
      %v5145 = vpop.f32.mrf.mxu0
      %v5146 = vadd.f32 %v5034, %v5145
      %v5147 = vpop.f32.mrf.mxu0
      %v5148 = vadd.f32 %v5034, %v5147
      %5149 = vmatmul.bf16.gmra.mxu0 %v5071
      %v5150 = vpop.f32.mrf.mxu0
      %v5151 = vadd.f32 %v5034, %v5150
      %v5152 = vpop.f32.mrf.mxu0
      %v5153 = vadd.f32 %v5034, %v5152
      %5154 = vmatmul.bf16.gmra.mxu0 %v5074
      %v5155 = vpop.f32.mrf.mxu0
      %v5156 = vadd.f32 %v5034, %v5155
      %v5157 = vpop.f32.mrf.mxu0
      %v5158 = vadd.f32 %v5034, %v5157
      %5159 = vmatmul.bf16.gmra.mxu0 %v5077
      %v5160 = vpop.f32.mrf.mxu0
      %v5161 = vadd.f32 %v5034, %v5160
      %v5162 = vpop.f32.mrf.mxu0
      %v5163 = vadd.f32 %v5034, %v5162
      %5164 = vmatmul.bf16.gmra.mxu0 %v5080
      %v5165 = vpop.f32.mrf.mxu0
      %v5166 = vadd.f32 %v5034, %v5165
      %v5167 = vpop.f32.mrf.mxu0
      %v5168 = vadd.f32 %v5034, %v5167
      %5169 = vmatmul.bf16.gmra.mxu0 %v5083
      %v5170 = vpop.f32.mrf.mxu0
      %v5171 = vadd.f32 %v5034, %v5170
      %v5172 = vpop.f32.mrf.mxu0
      %v5173 = vadd.f32 %v5034, %v5172
      %5174 = vmatmul.bf16.gmra.mxu0 %v5086
      %v5175 = vpop.f32.mrf.mxu0
      %v5176 = vadd.f32 %v5034, %v5175
      %v5177 = vpop.f32.mrf.mxu0
      %v5178 = vadd.f32 %v5034, %v5177
      %5179 = vmatmul.bf16.gmra.mxu0 %v5089
      %v5180 = vpop.f32.mrf.mxu0
      %v5181 = vadd.f32 %v5034, %v5180
      %v5182 = vpop.f32.mrf.mxu0
      %v5183 = vadd.f32 %v5034, %v5182
      %5184 = vmatmul.bf16.gmra.mxu0 %v5092
      %v5185 = vpop.f32.mrf.mxu0
      %v5186 = vadd.f32 %v5034, %v5185
      %v5187 = vpop.f32.mrf.mxu0
      %v5188 = vadd.f32 %v5034, %v5187
      %5189 = vmatmul.bf16.gmra.mxu0 %v5095
      %v5190 = vpop.f32.mrf.mxu0
      %v5191 = vadd.f32 %v5034, %v5190
      %v5192 = vpop.f32.mrf.mxu0
      %v5193 = vadd.f32 %v5034, %v5192
      %5194 = vmatmul.bf16.gmra.mxu0 %v5098
      %v5195 = vpop.f32.mrf.mxu0
      %v5196 = vadd.f32 %v5034, %v5195
      %v5197 = vpop.f32.mrf.mxu0
      %v5198 = vadd.f32 %v5034, %v5197
      %5199 = vmatmul.bf16.gmra.mxu0 %v5101
      %v5200 = vpop.f32.mrf.mxu0
      %v5201 = vadd.f32 %v5034, %v5200
      %v5202 = vpop.f32.mrf.mxu0
      %v5203 = vadd.f32 %v5034, %v5202
      %5204 = vmatmul.bf16.gmra.mxu0 %v5104
      %v5205 = vpop.f32.mrf.mxu0
      %v5206 = vadd.f32 %v5034, %v5205
      %v5207 = vpop.f32.mrf.mxu0
      %v5208 = vadd.f32 %v5034, %v5207
      %5209 = vmatmul.bf16.gmra.mxu0 %v5107
      %v5210 = vpop.f32.mrf.mxu0
      %v5211 = vadd.f32 %v5034, %v5210
      %v5212 = vpop.f32.mrf.mxu0
      %v5213 = vadd.f32 %v5034, %v5212
      %5214 = vmatmul.bf16.gmra.mxu0 %v5110
      %v5215 = vpop.f32.mrf.mxu0
      %v5216 = vadd.f32 %v5034, %v5215
      %v5217 = vpop.f32.mrf.mxu0
      %v5218 = vadd.f32 %v5034, %v5217
      %5219 = vmatmul.bf16.gmra.mxu0 %v5113
      %v5220 = vpop.f32.mrf.mxu0
      %v5221 = vadd.f32 %v5034, %v5220
      %v5222 = vpop.f32.mrf.mxu0
      %v5223 = vadd.f32 %v5034, %v5222
      %5224 = vmatmul.bf16.gmra.mxu0 %v5116
      %v5225 = vpop.f32.mrf.mxu0
      %v5226 = vadd.f32 %v5034, %v5225
      %v5227 = vpop.f32.mrf.mxu0
      %v5228 = vadd.f32 %v5034, %v5227
      %5229 = vmatmul.bf16.gmra.mxu0 %v5119
      %v5230 = vpop.f32.mrf.mxu0
      %v5231 = vpop.f32.mrf.mxu0
      %5232 = vmatmul.bf16.gmra.mxu0 %v5122
      %v5233 = vpop.f32.mrf.mxu0
      %v5234 = vpop.f32.mrf.mxu0
      %5235 = vmatmul.bf16.gmra.mxu0 %v5125
      %v5236 = vpop.f32.mrf.mxu0
      %v5237 = vpop.f32.mrf.mxu0
      %5238 = vdwg.mxu0
      %v5239 = vadd.f32 %v5141, %v2667
      %v5240 = vadd.f32 %v5143, %v2669
      %v5241 = vadd.f32 %v5146, %v2672
      %v5242 = vadd.f32 %v5148, %v2674
      %v5243 = vadd.f32 %v5151, %v2677
      %v5244 = vadd.f32 %v5153, %v2679
      %v5245 = vadd.f32 %v5156, %v2682
      %v5246 = vadd.f32 %v5158, %v2684
      %v5247 = vadd.f32 %v5161, %v2687
      %v5248 = vadd.f32 %v5163, %v2689
      %v5249 = vadd.f32 %v5166, %v2692
      %v5250 = vadd.f32 %v5168, %v2694
      %v5251 = vadd.f32 %v5171, %v2697
      %v5252 = vadd.f32 %v5173, %v2699
      %v5253 = vadd.f32 %v5176, %v2702
      %v5254 = vadd.f32 %v5178, %v2704
      %v5255 = vadd.f32 %v5181, %v2707
      %v5256 = vadd.f32 %v5183, %v2709
      %v5257 = vadd.f32 %v5186, %v2712
      %v5258 = vadd.f32 %v5188, %v2714
      %v5259 = vadd.f32 %v5191, %v2717
      %v5260 = vadd.f32 %v5193, %v2719
      %v5261 = vadd.f32 %v5196, %v2722
      %v5262 = vadd.f32 %v5198, %v2724
      %v5263 = vadd.f32 %v5201, %v2727
      %v5264 = vadd.f32 %v5203, %v2729
      %v5265 = vadd.f32 %v5206, %v2732
      %v5266 = vadd.f32 %v5208, %v2734
      %v5267 = vadd.f32 %v5211, %v2737
      %v5268 = vadd.f32 %v5213, %v2739
      %v5269 = vadd.f32 %v5216, %v2742
      %v5270 = vadd.f32 %v5218, %v2744
      %v5271 = vadd.f32 %v5221, %v2747
      %v5272 = vadd.f32 %v5223, %v2749
      %v5273 = vadd.f32 %v5226, %v2752
      %v5274 = vadd.f32 %v5228, %v2754
      %v5275 = vmax.f32 %v5239, 0.0
      %v5276 = vmax.f32 %v5240, 0.0
      %v5277 = vmax.f32 %v5241, 0.0
      %v5278 = vmax.f32 %v5242, 0.0
      %v5279 = vmax.f32 %v5243, 0.0
      %v5280 = vmax.f32 %v5244, 0.0
      %v5281 = vmax.f32 %v5245, 0.0
      %v5282 = vmax.f32 %v5246, 0.0
      %v5283 = vmax.f32 %v5247, 0.0
      %v5284 = vmax.f32 %v5248, 0.0
      %v5285 = vmax.f32 %v5249, 0.0
      %v5286 = vmax.f32 %v5250, 0.0
      %v5287 = vmax.f32 %v5251, 0.0
      %v5288 = vmax.f32 %v5252, 0.0
      %v5289 = vmax.f32 %v5253, 0.0
      %v5290 = vmax.f32 %v5254, 0.0
      %v5291 = vmax.f32 %v5255, 0.0
      %v5292 = vmax.f32 %v5256, 0.0
      %v5293 = vmax.f32 %v5257, 0.0
      %v5294 = vmax.f32 %v5258, 0.0
      %v5295 = vmax.f32 %v5259, 0.0
      %v5296 = vmax.f32 %v5260, 0.0
      %v5297 = vmax.f32 %v5261, 0.0
      %v5298 = vmax.f32 %v5262, 0.0
      %v5299 = vmax.f32 %v5263, 0.0
      %v5300 = vmax.f32 %v5264, 0.0
      %v5301 = vmax.f32 %v5265, 0.0
      %v5302 = vmax.f32 %v5266, 0.0
      %v5303 = vmax.f32 %v5267, 0.0
      %v5304 = vmax.f32 %v5268, 0.0
      %v5305 = vmax.f32 %v5269, 0.0
      %v5306 = vmax.f32 %v5270, 0.0
      %v5307 = vmax.f32 %v5271, 0.0
      %v5308 = vmax.f32 %v5272, 0.0
      %v5309 = vmax.f32 %v5273, 0.0
      %v5310 = vmax.f32 %v5274, 0.0
      %5311 = vst.msk [vmem:[%s305] sm:$0xff] %vm2004, %v5275
      %5312 = vst.msk [vmem:[%s305 + $0x8] sm:$0xff] %vm2004, %v5276
      %s5313 = scalar_lea.vmem %s305, 16
      %vm5314 = vcmask 64514
      %5315 = vst.msk [vmem:[%s5313 - $0x2] sm:$0xfc] %vm5314, %v5277
      %5316 = vst.msk [vmem:[%s5313 + $0x6] sm:$0xff] %vm2004, %v5278
      %5317 = vst.msk [vmem:[%s5313 + $0xe] sm:$0x3] %vm2810, %v5279
      %s5318 = scalar_lea.vmem %s305, 32
      %vm5319 = vcmask 64516
      %5320 = vst.msk [vmem:[%s5318 - $0x4] sm:$0xf0] %vm5319, %v5279
      %5321 = vst.msk [vmem:[%s5318 + $0x4] sm:$0xff] %vm2004, %v5280
      %5322 = vst.msk [vmem:[%s5318 + $0xc] sm:$0xf] %vm3139, %v5281
      %s5323 = scalar_lea.vmem %s305, 48
      %vm5324 = vcmask 64518
      %5325 = vst.msk [vmem:[%s5323 - $0x6] sm:$0xc0] %vm5324, %v5281
      %5326 = vst.msk [vmem:[%s5323 + $0x2] sm:$0xff] %vm2004, %v5282
      %vm5327 = vcmask 62464
      %5328 = vst.msk [vmem:[%s5323 + $0xa] sm:$0x3f] %vm5327, %v5283
      %s5329 = scalar_lea.vmem %s305, 64
      %5330 = vst.msk [vmem:[%s5329] sm:$0xff] %vm2004, %v5284
      %5331 = vst.msk [vmem:[%s5329 + $0x8] sm:$0xff] %vm2004, %v5285
      %s5332 = scalar_lea.vmem %s305, 80
      %5333 = vst.msk [vmem:[%s5332 - $0x2] sm:$0xfc] %vm5314, %v5286
      %5334 = vst.msk [vmem:[%s5332 + $0x6] sm:$0xff] %vm2004, %v5287
      %5335 = vst.msk [vmem:[%s5332 + $0xe] sm:$0x3] %vm2810, %v5288
      %s5336 = scalar_lea.vmem %s305, 96
      %5337 = vst.msk [vmem:[%s5336 - $0x4] sm:$0xf0] %vm5319, %v5288
      %5338 = vst.msk [vmem:[%s5336 + $0x4] sm:$0xff] %vm2004, %v5289
      %5339 = vst.msk [vmem:[%s5336 + $0xc] sm:$0xf] %vm3139, %v5290
      %s5340 = scalar_lea.vmem %s305, 112
      %5341 = vst.msk [vmem:[%s5340 - $0x6] sm:$0xc0] %vm5324, %v5290
      %5342 = vst.msk [vmem:[%s5340 + $0x2] sm:$0xff] %vm2004, %v5291
      %5343 = vst.msk [vmem:[%s5340 + $0xa] sm:$0x3f] %vm5327, %v5292
      %s5344 = scalar_lea.vmem %s305, 128
      %5345 = vst.msk [vmem:[%s5344] sm:$0xff] %vm2004, %v5293
      %5346 = vst.msk [vmem:[%s5344 + $0x8] sm:$0xff] %vm2004, %v5294
      %s5347 = scalar_lea.vmem %s305, 144
      %5348 = vst.msk [vmem:[%s5347 - $0x2] sm:$0xfc] %vm5314, %v5295
      %5349 = vst.msk [vmem:[%s5347 + $0x6] sm:$0xff] %vm2004, %v5296
      %5350 = vst.msk [vmem:[%s5347 + $0xe] sm:$0x3] %vm2810, %v5297
      %s5351 = scalar_lea.vmem %s305, 160
      %5352 = vst.msk [vmem:[%s5351 - $0x4] sm:$0xf0] %vm5319, %v5297
      %5353 = vst.msk [vmem:[%s5351 + $0x4] sm:$0xff] %vm2004, %v5298
      %5354 = vst.msk [vmem:[%s5351 + $0xc] sm:$0xf] %vm3139, %v5299
      %s5355 = scalar_lea.vmem %s305, 176
      %5356 = vst.msk [vmem:[%s5355 - $0x6] sm:$0xc0] %vm5324, %v5299
      %5357 = vst.msk [vmem:[%s5355 + $0x2] sm:$0xff] %vm2004, %v5300
      %5358 = vst.msk [vmem:[%s5355 + $0xa] sm:$0x3f] %vm5327, %v5301
      %s5359 = scalar_lea.vmem %s305, 192
      %5360 = vst.msk [vmem:[%s5359] sm:$0xff] %vm2004, %v5302
      %5361 = vst.msk [vmem:[%s5359 + $0x8] sm:$0xff] %vm2004, %v5303
      %s5362 = scalar_lea.vmem %s305, 208
      %5363 = vst.msk [vmem:[%s5362 - $0x2] sm:$0xfc] %vm5314, %v5304
      %5364 = vst.msk [vmem:[%s5362 + $0x6] sm:$0xff] %vm2004, %v5305
      %5365 = vst.msk [vmem:[%s5362 + $0xe] sm:$0x3] %vm2810, %v5306
      %s5366 = scalar_lea.vmem %s305, 224
      %5367 = vst.msk [vmem:[%s5366 - $0x4] sm:$0xf0] %vm5319, %v5306
      %5368 = vst.msk [vmem:[%s5366 + $0x4] sm:$0xff] %vm2004, %v5307
      %5369 = vst.msk [vmem:[%s5366 + $0xc] sm:$0xf] %vm3139, %v5308
      %s5370 = scalar_lea.vmem %s305, 240
      %5371 = vst.msk [vmem:[%s5370 - $0x6] sm:$0xc0] %vm5324, %v5308
      %5372 = vst.msk [vmem:[%s5370 + $0x2] sm:$0xff] %vm2004, %v5309
      %5373 = vst.msk [vmem:[%s5370 + $0xa] sm:$0x3f] %vm5327, %v5310
      %p5374 = scmp.lt.s32.totalorder %s19, 1
      %s5375 = scalar_select %p5374, %s19, 1
      %s5376 = smul.addr %s5375, 32
      %s5377 = smul.addr %s5376, 8
      %s5378 = scalar_lea.vmem %s8, %s5377
      // Predicated region
      $region53: #{tpu_custom_call.1} parent=51 // pred_check
        %p5379 = pneg %p210
      $region54: #{tpu_custom_call.1} parent=51 // pred_check_branch
        %5381 = sbr.rel (%p5379) target = $region56
      $region55: #{tpu_custom_call.1} parent=51 // pred_region
        _
      $region56: #{tpu_custom_call.1} parent=51 // pred_fallthru
        _
    $region52: #{tpu_custom_call.1} parent=5 // pred_fallthru
      _
    %p5382 = scmp.le.s32.totalorder 2, %s14
    // Predicated region
    $region57: #{tpu_custom_call.1} parent=5 // pred_check
      %p5383 = pneg %p5382
    $region58: #{tpu_custom_call.1} parent=5 // pred_check_branch
      %5385 = sbr.rel (%p5383) target = $region60
    $region59: #{tpu_custom_call.1} parent=5 // pred_region
      %s5386 = ssub.s32 %s14, 2
      // Predicated region
      $region61: #{tpu_custom_call.1} parent=59 // pred_check
        %p5387 = pneg %p216
      $region62: #{tpu_custom_call.1} parent=59 // pred_check_branch
        %5389 = sbr.rel (%p5387) target = $region64
      $region63: #{tpu_custom_call.1} parent=59 // pred_region
        %p5390 = scmp.lt.s32.totalorder %s20, 1
        %s5391 = scalar_select %p5390, %s20, 1
        %s5392 = smul.addr %s5391, 32
        %s5393 = smul.addr %s5392, 8
        %s5394 = scalar_lea.vmem %s8, %s5393
      $region64: #{tpu_custom_call.1} parent=59 // pred_fallthru
        _
    $region60: #{tpu_custom_call.1} parent=5 // pred_fallthru
      _
  $region6: #{tpu_custom_call.1} parent=0 // loop_footer
    %s18 = sadd.s32 1, %s14
  $region7: #{tpu_custom_call.1} parent=0 // loop_footer_branch
    %13 = sbr.rel target = $region3
  $region8: #{tpu_custom_call.1} parent=0 // loop_exit
    _

</llo_original>
